<compile_context>
chip_gen: v5e
topology: v5e:2x2
jax: 0.10.0
libtpu: 0.0.40
codegen_flags: <defaults>
</compile_context>

<pallas_src>
import functools

import numpy as np
import jax
import jax.numpy as jnp
from jax import lax
from jax.experimental import pallas as pl
from jax.experimental.pallas import tpu as pltpu


# ---------------------------------------------------------------------------
# Host-side helpers
# ---------------------------------------------------------------------------
def _centered_dft_matrix(n, inverse):
    """Matrix M with M @ x == fftshift(fft(ifftshift(x), norm='ortho')) along axis 0."""
    eye = np.eye(n, dtype=np.complex64)
    shifted = np.fft.ifftshift(eye, axes=0)
    m = (np.fft.ifft(shifted, axis=0, norm="ortho") if inverse
         else np.fft.fft(shifted, axis=0, norm="ortho"))
    return np.fft.fftshift(m, axes=0).astype(np.complex64)


def _round_up(n, m):
    return ((n + m - 1) // m) * m


def _use_gauss_matmul():
    """Gauss 3-mult complex matmul on MXU-bound chips (<= v5); plain 4-mult on
    v6e/v7x where the VALU slot binds (fewer elementwise passes, MXU has slack)."""
    try:
        kind = jax.devices()[0].device_kind.lower()
    except Exception:
        return False
    return any(t in kind for t in ("v2", "v3", "v4", "v5"))


def _pick_vmem_limit(num_coils, num_masks, hp, wp, mxu_bytes):
    """Derive a per-shape VMEM limit with headroom, clamped to physical capacity."""
    img = hp * wp * 4
    resident = (2 * num_coils * img                  # maps r/i (resident all iterations)
                + num_masks * img                    # mask
                + 4 * img                            # outputs (zf r/i, x r/i)
                + 6 * img                            # scratch: kspace dbl-buf + grad acc
                + 8 * (hp * hp + wp * wp) * mxu_bytes)  # DFT matrices + derived variants
    headroom = 32 * img                              # live matmul temporaries / casts
    needed = int(1.25 * (resident + headroom))
    try:
        cap = int(pltpu.get_tpu_info().vmem_capacity_bytes)
    except Exception:
        cap = 64 * 1024 * 1024                       # v7x per-core floor
    return int(min(cap - 8 * 1024 * 1024, max(needed, 64 * 1024 * 1024)))


# ---------------------------------------------------------------------------
# Fused kernel: SENSE adjoint (zero-filled) + max_iter ISTA iterations.
# Kernel args: 9 inputs, 4 outputs, 5 scratch.
# ---------------------------------------------------------------------------
def _cs_kernel(kr_hbm, ki_hbm, mr_ref, mi_ref, w_ref,
               fh_r_ref, fh_i_ref, fwT_r_ref, fwT_i_ref,
               zfr_ref, zfi_ref, xr_ref, xi_ref,
               kbr, kbi, ksem, gr_ref, gi_ref,
               *, num_coils, mask_per_coil, l1_reg, max_iter, step, gauss):
    f32 = jnp.float32
    H, W = zfr_ref.shape
    mxu_dtype = fh_r_ref.dtype

    # ---- loop-invariant DFT operands (already in the MXU dtype) ------------
    ihr = fh_r_ref[...]          # inverse centered DFT along H  (left multiply)
    ihi = fh_i_ref[...]
    iwr = fwT_r_ref[...]         # (inverse centered DFT along W)^T  (right multiply)
    iwi = fwT_i_ref[...]

    if gauss:
        IH = (ihr, ihi, ihr + ihi)
        FH = (ihr, -ihi, ihr - ihi)      # forward = conj(inverse)
        IW = (iwr, iwi, iwr + iwi)
        FW = (iwr, -iwi, iwr - iwi)
    else:
        IH = (ihr, ihi)
        FH = (ihr, -ihi)
        IW = (iwr, iwi)
        FW = (iwr, -iwi)

    def cmm_left(M, xr, xi):
        """Complex (M) @ (x): low-precision MXU operands, f32 accumulation."""
        a = xr.astype(mxu_dtype)
        b = xi.astype(mxu_dtype)
        if gauss:
            m_r, m_i, m_s = M
            s = (xr + xi).astype(mxu_dtype)
            k1 = jnp.dot(m_r, a, preferred_element_type=f32)
            k2 = jnp.dot(m_i, b, preferred_element_type=f32)
            k3 = jnp.dot(m_s, s, preferred_element_type=f32)
            return k1 - k2, k3 - k1 - k2
        m_r, m_i = M
        rr = (jnp.dot(m_r, a, preferred_element_type=f32)
              - jnp.dot(m_i, b, preferred_element_type=f32))
        ii = (jnp.dot(m_r, b, preferred_element_type=f32)
              + jnp.dot(m_i, a, preferred_element_type=f32))
        return rr, ii

    def cmm_right(xr, xi, M):
        """Complex (x) @ (M): low-precision MXU operands, f32 accumulation."""
        a = xr.astype(mxu_dtype)
        b = xi.astype(mxu_dtype)
        if gauss:
            m_r, m_i, m_s = M
            s = (xr + xi).astype(mxu_dtype)
            k1 = jnp.dot(a, m_r, preferred_element_type=f32)
            k2 = jnp.dot(b, m_i, preferred_element_type=f32)
            k3 = jnp.dot(s, m_s, preferred_element_type=f32)
            return k1 - k2, k3 - k1 - k2
        m_r, m_i = M
        rr = (jnp.dot(a, m_r, preferred_element_type=f32)
              - jnp.dot(b, m_i, preferred_element_type=f32))
        ii = (jnp.dot(b, m_r, preferred_element_type=f32)
              + jnp.dot(a, m_i, preferred_element_type=f32))
        return rr, ii

    def ifft2c(xr, xi):                  # centered 2D inverse FFT (ortho)
        tr, ti = cmm_left(IH, xr, xi)
        return cmm_right(tr, ti, IW)

    def fft2c(xr, xi):                   # centered 2D forward FFT (ortho)
        tr, ti = cmm_left(FH, xr, xi)
        return cmm_right(tr, ti, FW)

    # ---- phase 1: zero-filled SENSE adjoint, kspace streamed from HBM ------
    # kspace is pre-masked host-side and the mask is binary, so no in-kernel
    # mask multiply is needed for the adjoint.
    def kfetch(c, slot):
        pltpu.make_async_copy(kr_hbm.at[c], kbr.at[slot], ksem.at[0, slot]).start()
        pltpu.make_async_copy(ki_hbm.at[c], kbi.at[slot], ksem.at[1, slot]).start()

    def kwait(slot):
        pltpu.make_async_copy(kr_hbm.at[0], kbr.at[slot], ksem.at[0, slot]).wait()
        pltpu.make_async_copy(ki_hbm.at[0], kbi.at[slot], ksem.at[1, slot]).wait()

    kfetch(0, 0)                               # prime slot 0 (overlaps init below)
    zfr_ref[...] = jnp.zeros((H, W), f32)
    zfi_ref[...] = jnp.zeros((H, W), f32)

    def zf_body(c, carry):
        slot = c % 2
        kwait(slot)

        @pl.when(c + 1 < num_coils)
        def _():
            kfetch(c + 1, 1 - slot)            # prefetch next coil into other slot

        vr, vi = ifft2c(kbr[slot], kbi[slot])
        mr = mr_ref[c]
        mi = mi_ref[c]
        zfr_ref[...] += mr * vr + mi * vi      # conj(S_c) * v, accumulated over coils
        zfi_ref[...] += mr * vi - mi * vr
        return carry

    lax.fori_loop(0, num_coils, zf_body, 0)

    # ---- phase 2: ISTA with the SENSE normal operator -----------------------
    # grad = A^H A x - A^H y = sum_c S_c^H IF(W o F(S_c x)) - zf
    thr = step * l1_reg
    xr_ref[...] = zfr_ref[...]
    xi_ref[...] = zfi_ref[...]

    def coil_body(c, carry):
        xr = xr_ref[...]
        xi = xi_ref[...]
        mr = mr_ref[c]
        mi = mi_ref[c]
        w = w_ref[c] if mask_per_coil else w_ref[0]
        # S_c x
        sr = mr * xr - mi * xi
        si = mr * xi + mi * xr
        # W o F(S_c x)
        pr, pi = fft2c(sr, si)
        # adjoint: conj(S_c) * IF(.), accumulated over coils
        ur, ui = ifft2c(pr * w, pi * w)
        gr_ref[...] += mr * ur + mi * ui
        gi_ref[...] += mr * ui - mi * ur
        return carry

    def ista_body(it, carry):
        gr_ref[...] = jnp.zeros((H, W), f32)
        gi_ref[...] = jnp.zeros((H, W), f32)
        lax.fori_loop(0, num_coils, coil_body, 0)
        yr = xr_ref[...] - step * (gr_ref[...] - zfr_ref[...])
        yi = xi_ref[...] - step * (gi_ref[...] - zfi_ref[...])
        # complex (magnitude) soft-threshold, one EUP rsqrt pass
        scl = jnp.maximum(1.0 - thr * lax.rsqrt(yr * yr + yi * yi + 1e-24), 0.0)
        xr_ref[...] = yr * scl
        xi_ref[...] = yi * scl
        return carry

    lax.fori_loop(0, max_iter, ista_body, 0)


# ---------------------------------------------------------------------------
# pallas_call wrapper
# ---------------------------------------------------------------------------
def cs_recon(kr, ki, mr, mi, w, fh_r, fh_i, fwT_r, fwT_i,
             *, l1_reg, max_iter, step=1.0, gauss=False):
    """Returns (zf_r, zf_i, pred_r, pred_i), each (Hp, Wp) float32."""
    C, H, W = kr.shape
    Cw = w.shape[0]
    mxu_bytes = jnp.dtype(fh_r.dtype).itemsize
    vmem_limit = _pick_vmem_limit(C, Cw, H, W, mxu_bytes)

    kernel = functools.partial(
        _cs_kernel,
        num_coils=C,
        mask_per_coil=(Cw != 1),
        l1_reg=float(l1_reg),
        max_iter=int(max_iter),
        step=float(step),
        gauss=bool(gauss),
    )
    img = jax.ShapeDtypeStruct((H, W), jnp.float32)
    vspec = pl.BlockSpec(memory_space=pltpu.MemorySpace.VMEM)
    return pl.pallas_call(
        kernel,
        # No grid: maps/mask/DFT mats are VMEM-resident for the whole recon
        # (loaded once, reused every ISTA iteration); kspace stays in HBM and
        # is streamed per coil during the zero-fill phase only.
        out_shape=(img, img, img, img),
        in_specs=[
            pl.BlockSpec(memory_space=pl.ANY),    # kspace real  (HBM, manual DMA)
            pl.BlockSpec(memory_space=pl.ANY),    # kspace imag  (HBM, manual DMA)
            vspec, vspec,                         # maps r/i
            vspec,                                # mask
            vspec, vspec,                         # H-axis inverse DFT r/i (mxu dtype)
            vspec, vspec,                         # W-axis inverse DFT^T r/i (mxu dtype)
        ],
        out_specs=(vspec, vspec, vspec, vspec),
        scratch_shapes=[
            pltpu.VMEM((2, H, W), jnp.float32),   # kspace real double-buffer
            pltpu.VMEM((2, H, W), jnp.float32),   # kspace imag double-buffer
            pltpu.SemaphoreType.DMA((2, 2)),
            pltpu.VMEM((H, W), jnp.float32),      # gradient accumulator (real)
            pltpu.VMEM((H, W), jnp.float32),      # gradient accumulator (imag)
        ],
        compiler_params=pltpu.CompilerParams(vmem_limit_bytes=vmem_limit),
    )(kr, ki, mr, mi, w, fh_r, fh_i, fwT_r, fwT_i)


# ---------------------------------------------------------------------------
# Host-side glue (mirrors CSModel.forward)
# ---------------------------------------------------------------------------
def cs_model_forward(kspace, maps, mask=None, target=None,
                     l1_reg=0.005, max_iter=5, training=False,
                     mxu_dtype=jnp.bfloat16):
    """
    JAX/Pallas equivalent of CSModel.forward.
      kspace : (1, H, W, C) complex64
      maps   : (1, H, W, C, 1) complex64  (num_emaps == 1)
      mask   : (1, H, W, C) float32 or None (derived from nonzero kspace)
    Returns dict with 'pred', 'target' and (eval mode) 'zf_image'.
    """
    if kspace.shape[0] != 1:
        raise ValueError("Only batch size == 1 is supported in compressed sensing")
    if maps.shape[-1] != 1:
        raise ValueError("CS only supports one sensitivity map.")

    if mask is None:
        mask = (jnp.abs(kspace) > 0).astype(jnp.float32)   # cplx.get_mask
    mask = mask.astype(jnp.float32)
    kspace = kspace * mask                                  # kspace *= mask

    # permute to coil-major (C, H, W), as the torch module does
    k = jnp.transpose(kspace[0], (2, 0, 1))
    m = jnp.transpose(maps[0, ..., 0], (2, 0, 1))
    w3 = jnp.transpose(mask[0], (2, 0, 1))
    C, H, W = k.shape

    # Coil-shared mask (typical MRI column undersampling) -> ship a single map.
    try:
        mask_shared = bool(jnp.all(w3 == w3[:1]))
    except Exception:       # traced values: keep the general per-coil mask
        mask_shared = False
    w3 = w3[:1] if mask_shared else w3

    # Zero-pad spatial dims to multiples of 128 (exact for this pipeline:
    # the padded region stays zero through SENSE, DFT, mask and shrinkage).
    Hp = _round_up(H, 128)
    Wp = _round_up(W, 128)
    pad = ((0, 0), (0, Hp - H), (0, Wp - W))
    kp = jnp.pad(k, pad)
    mp = jnp.pad(m, pad)
    wp = jnp.pad(w3, pad)

    kr = jnp.real(kp).astype(jnp.float32)
    ki = jnp.imag(kp).astype(jnp.float32)
    mr = jnp.real(mp).astype(jnp.float32)
    mi = jnp.imag(mp).astype(jnp.float32)

    # Centered inverse-DFT matrices only (forward = conj); the W-axis matrix is
    # shipped pre-transposed so odd sizes are handled exactly.  Pre-cast to the
    # MXU dtype and embedded in the zero-padded size.
    fh = np.zeros((Hp, Hp), np.complex64)
    fh[:H, :H] = _centered_dft_matrix(H, inverse=True)
    fwT = np.zeros((Wp, Wp), np.complex64)
    fwT[:W, :W] = _centered_dft_matrix(W, inverse=True).T
    fh_r = jnp.asarray(fh.real, dtype=mxu_dtype)
    fh_i = jnp.asarray(fh.imag, dtype=mxu_dtype)
    fwT_r = jnp.asarray(fwT.real, dtype=mxu_dtype)
    fwT_i = jnp.asarray(fwT.imag, dtype=mxu_dtype)

    # step = 1.0 assumes ESPIRiT-normalized maps (sum_c |S_c|^2 == 1) and a <=1
    # binary mask, so ||A^H A|| <= 1 and ISTA with unit step is stable.
    zfr, zfi, xr, xi = cs_recon(
        kr, ki, mr, mi, wp, fh_r, fh_i, fwT_r, fwT_i,
        l1_reg=l1_reg, max_iter=max_iter, step=1.0, gauss=_use_gauss_matmul())

    zfr, zfi = zfr[:H, :W], zfi[:H, :W]
    xr, xi = xr[:H, :W], xi[:H, :W]

    zf_image = (zfr + 1j * zfi)[None, :, :, None]   # (1, H, W, 1) complex
    pred = (xr + 1j * xi)[None, :, :, None]         # image.unsqueeze(0).unsqueeze(-1)

    output = {"pred": pred, "target": target}
    if not training:
        output["zf_image"] = zf_image
    return output


# ---------------------------------------------------------------------------
# Pure-JAX reference (complex64, jnp.fft) for validation
# ---------------------------------------------------------------------------
def _reference_recon(kspace, maps, mask, l1_reg, max_iter, step=1.0):
    def ifft2c(x):
        return jnp.fft.fftshift(
            jnp.fft.ifft2(jnp.fft.ifftshift(x, axes=(-2, -1)), norm="ortho"),
            axes=(-2, -1))

    def fft2c(x):
        return jnp.fft.fftshift(
            jnp.fft.fft2(jnp.fft.ifftshift(x, axes=(-2, -1)), norm="ortho"),
            axes=(-2, -1))

    zf = jnp.sum(jnp.conj(maps) * ifft2c(kspace), axis=0)
    x = zf
    thr = step * l1_reg
    for _ in range(max_iter):
        g = jnp.sum(jnp.conj(maps) * ifft2c(mask * fft2c(maps * x[None])), axis=0) - zf
        y = x - step * g
        mag = jnp.abs(y)
        scl = jnp.maximum(1.0 - thr / jnp.maximum(mag, 1e-12), 0.0)
        x = y * scl
    return zf, x


if __name__ == "__main__":
    key = jax.random.PRNGKey(0)
    B, H, W, C = 1, 16, 16, 4
    k1, k2, k3, k4, k5 = jax.random.split(key, 5)

    kspace = (jax.random.normal(k1, (B, H, W, C), jnp.float32)
              + 1j * jax.random.normal(k2, (B, H, W, C), jnp.float32)).astype(jnp.complex64)
    maps = (jax.random.normal(k3, (B, H, W, C, 1), jnp.float32)
            + 1j * jax.random.normal(k4, (B, H, W, C, 1), jnp.float32)).astype(jnp.complex64)
    # ESPIRiT maps are coil-normalized (required for the unit ISTA step)
    maps = maps / jnp.sqrt(jnp.sum(jnp.abs(maps) ** 2, axis=3, keepdims=True) + 1e-8)
    # undersampling mask: keep random readout columns, shared across coils
    cols = (jax.random.uniform(k5, (W,)) > 0.4).astype(jnp.float32)
    mask = jnp.broadcast_to(cols[None, None, :, None], (B, H, W, C))

    out = cs_model_forward(kspace, maps, mask, target=None, l1_reg=0.005, max_iter=5)
    pred = out["pred"]
    zf = out["zf_image"]
    jax.block_until_ready(pred)
    jax.block_until_ready(zf)

    assert pred.shape == (1, H, W, 1) and zf.shape == (1, H, W, 1)
    assert bool(jnp.all(jnp.isfinite(jnp.abs(pred))))
    assert bool(jnp.all(jnp.isfinite(jnp.abs(zf))))

    # Validate against a pure-JAX complex64 reference (bf16 MXU operands -> loose tol).
    k3c = jnp.transpose((kspace * mask)[0], (2, 0, 1))
    m3c = jnp.transpose(maps[0, ..., 0], (2, 0, 1))
    w3c = jnp.transpose(mask[0], (2, 0, 1))
    zf_ref, x_ref = _reference_recon(k3c, m3c, w3c, 0.005, 5)

    def rel(a, b):
        return float(jnp.linalg.norm(a - b) / (jnp.linalg.norm(b) + 1e-12))

    zf_err = rel(zf[0, :, :, 0], zf_ref)
    pred_err = rel(pred[0, :, :, 0], x_ref)
    assert zf_err < 5e-2, f"zero-filled recon mismatch: rel={zf_err}"
    assert pred_err < 2e-1, f"CS recon mismatch: rel={pred_err}"
    print("KERNEL_OK")
</pallas_src>

<mosaic_0001>
module attributes {stable_mosaic.version = 11 : i64} {
  func.func @_cs_kernel(%arg0: memref<4x128x128xf32, #tpu.memory_space<any>>, %arg1: memref<4x128x128xf32, #tpu.memory_space<any>>, %arg2: memref<4x128x128xf32, #tpu.memory_space<vmem>>, %arg3: memref<4x128x128xf32, #tpu.memory_space<vmem>>, %arg4: memref<1x128x128xf32, #tpu.memory_space<vmem>>, %arg5: memref<128x128xbf16, #tpu.memory_space<vmem>>, %arg6: memref<128x128xbf16, #tpu.memory_space<vmem>>, %arg7: memref<128x128xbf16, #tpu.memory_space<vmem>>, %arg8: memref<128x128xbf16, #tpu.memory_space<vmem>>, %arg9: memref<128x128xf32, #tpu.memory_space<vmem>>, %arg10: memref<128x128xf32, #tpu.memory_space<vmem>>, %arg11: memref<128x128xf32, #tpu.memory_space<vmem>>, %arg12: memref<128x128xf32, #tpu.memory_space<vmem>>, %arg13: memref<2x128x128xf32, #tpu.memory_space<vmem>>, %arg14: memref<2x128x128xf32, #tpu.memory_space<vmem>>, %arg15: memref<2x2x!tpu.dma_semaphore, #tpu.memory_space<semaphore_mem>>, %arg16: memref<128x128xf32, #tpu.memory_space<vmem>>, %arg17: memref<128x128xf32, #tpu.memory_space<vmem>>) attributes {dimension_semantics = [], scalar_prefetch = 0 : i64, scratch_operands = 5 : i64, tpu.core_type = #tpu.core_type<tc>} {
    %c0 = arith.constant 0 : index
    %c0_0 = arith.constant 0 : index
    %0 = vector.load %arg5[%c0, %c0_0] : memref<128x128xbf16, #tpu.memory_space<vmem>>, vector<128x128xbf16>
    %c0_1 = arith.constant 0 : index
    %c0_2 = arith.constant 0 : index
    %1 = vector.load %arg6[%c0_1, %c0_2] : memref<128x128xbf16, #tpu.memory_space<vmem>>, vector<128x128xbf16>
    %c0_3 = arith.constant 0 : index
    %c0_4 = arith.constant 0 : index
    %2 = vector.load %arg7[%c0_3, %c0_4] : memref<128x128xbf16, #tpu.memory_space<vmem>>, vector<128x128xbf16>
    %c0_5 = arith.constant 0 : index
    %c0_6 = arith.constant 0 : index
    %3 = vector.load %arg8[%c0_5, %c0_6] : memref<128x128xbf16, #tpu.memory_space<vmem>>, vector<128x128xbf16>
    %cst = arith.constant 0.000000e+00 : bf16
    %4 = vector.broadcast %cst : bf16 to vector<128x128xbf16>
    %5 = arith.subf %4, %1 : vector<128x128xbf16>
    %cst_7 = arith.constant 0.000000e+00 : bf16
    %6 = vector.broadcast %cst_7 : bf16 to vector<128x128xbf16>
    %7 = arith.subf %6, %3 : vector<128x128xbf16>
    %c0_i32 = arith.constant 0 : i32
    %c0_i32_8 = arith.constant 0 : i32
    %c0_i32_9 = arith.constant 0 : i32
    %c0_i32_10 = arith.constant 0 : i32
    %c0_i32_11 = arith.constant 0 : i32
    %c0_i32_12 = arith.constant 0 : i32
    %8 = tpu.memref_slice %arg0[%c0_i32, %c0_i32_11, %c0_i32_12] : memref<4x128x128xf32, #tpu.memory_space<any>> -> memref<1x128x128xf32, #tpu.memory_space<any>>
    %9 = tpu.memref_squeeze %8 : memref<1x128x128xf32, #tpu.memory_space<any>> -> memref<128x128xf32, #tpu.memory_space<any>>
    %c0_i32_13 = arith.constant 0 : i32
    %c0_i32_14 = arith.constant 0 : i32
    %10 = tpu.memref_slice %arg13[%c0_i32_8, %c0_i32_13, %c0_i32_14] : memref<2x128x128xf32, #tpu.memory_space<vmem>> -> memref<1x128x128xf32, #tpu.memory_space<vmem>>
    %11 = tpu.memref_squeeze %10 : memref<1x128x128xf32, #tpu.memory_space<vmem>> -> memref<128x128xf32, #tpu.memory_space<vmem>>
    %12 = tpu.memref_slice %arg15[%c0_i32_9, %c0_i32_10] : memref<2x2x!tpu.dma_semaphore, #tpu.memory_space<semaphore_mem>> -> memref<1x1x!tpu.dma_semaphore, #tpu.memory_space<semaphore_mem>>
    %13 = tpu.memref_squeeze %12 : memref<1x1x!tpu.dma_semaphore, #tpu.memory_space<semaphore_mem>> -> memref<!tpu.dma_semaphore, #tpu.memory_space<semaphore_mem>>
    tpu.enqueue_dma source(%9 : memref<128x128xf32, #tpu.memory_space<any>>) target(%11 : memref<128x128xf32, #tpu.memory_space<vmem>>) target_semaphore(%13 : memref<!tpu.dma_semaphore, #tpu.memory_space<semaphore_mem>>)
    %c0_i32_15 = arith.constant 0 : i32
    %c0_i32_16 = arith.constant 0 : i32
    %c1_i32 = arith.constant 1 : i32
    %c0_i32_17 = arith.constant 0 : i32
    %c0_i32_18 = arith.constant 0 : i32
    %c0_i32_19 = arith.constant 0 : i32
    %14 = tpu.memref_slice %arg1[%c0_i32_15, %c0_i32_18, %c0_i32_19] : memref<4x128x128xf32, #tpu.memory_space<any>> -> memref<1x128x128xf32, #tpu.memory_space<any>>
    %15 = tpu.memref_squeeze %14 : memref<1x128x128xf32, #tpu.memory_space<any>> -> memref<128x128xf32, #tpu.memory_space<any>>
    %c0_i32_20 = arith.constant 0 : i32
    %c0_i32_21 = arith.constant 0 : i32
    %16 = tpu.memref_slice %arg14[%c0_i32_16, %c0_i32_20, %c0_i32_21] : memref<2x128x128xf32, #tpu.memory_space<vmem>> -> memref<1x128x128xf32, #tpu.memory_space<vmem>>
    %17 = tpu.memref_squeeze %16 : memref<1x128x128xf32, #tpu.memory_space<vmem>> -> memref<128x128xf32, #tpu.memory_space<vmem>>
    %18 = tpu.memref_slice %arg15[%c1_i32, %c0_i32_17] : memref<2x2x!tpu.dma_semaphore, #tpu.memory_space<semaphore_mem>> -> memref<1x1x!tpu.dma_semaphore, #tpu.memory_space<semaphore_mem>>
    %19 = tpu.memref_squeeze %18 : memref<1x1x!tpu.dma_semaphore, #tpu.memory_space<semaphore_mem>> -> memref<!tpu.dma_semaphore, #tpu.memory_space<semaphore_mem>>
    tpu.enqueue_dma source(%15 : memref<128x128xf32, #tpu.memory_space<any>>) target(%17 : memref<128x128xf32, #tpu.memory_space<vmem>>) target_semaphore(%19 : memref<!tpu.dma_semaphore, #tpu.memory_space<semaphore_mem>>)
    %cst_22 = arith.constant 0.000000e+00 : f32
    %20 = vector.broadcast %cst_22 : f32 to vector<128x128xf32>
    %c0_23 = arith.constant 0 : index
    %c0_24 = arith.constant 0 : index
    %21 = vector.load %arg9[%c0_23, %c0_24] : memref<128x128xf32, #tpu.memory_space<vmem>>, vector<128x128xf32>
    tpu.vector_store %arg9[%c0_23, %c0_24], %20 {strides = array<i32>} : memref<128x128xf32, #tpu.memory_space<vmem>>, vector<128x128xf32>,
    %cst_25 = arith.constant 0.000000e+00 : f32
    %22 = vector.broadcast %cst_25 : f32 to vector<128x128xf32>
    %c0_26 = arith.constant 0 : index
    %c0_27 = arith.constant 0 : index
    %23 = vector.load %arg10[%c0_26, %c0_27] : memref<128x128xf32, #tpu.memory_space<vmem>>, vector<128x128xf32>
    tpu.vector_store %arg10[%c0_26, %c0_27], %22 {strides = array<i32>} : memref<128x128xf32, #tpu.memory_space<vmem>>, vector<128x128xf32>,
    %c0_i32_28 = arith.constant 0 : i32
    %c4_i32 = arith.constant 4 : i32
    %24 = arith.addi %c0_i32_28, %c4_i32 : i32
    %c1_i32_29 = arith.constant 1 : i32
    scf.for %arg18 = %c0_i32_28 to %24 step %c1_i32_29  : i32 {
      %c2_i32 = arith.constant 2 : i32
      %c0_i32_41 = arith.constant 0 : i32
      %30 = arith.cmpi eq, %c2_i32, %c0_i32_41 : i32
      %c1_i32_42 = arith.constant 1 : i32
      %31 = arith.select %30, %c1_i32_42, %c2_i32 : i32
      %32 = arith.remsi %arg18, %31 : i32
      %c0_i32_43 = arith.constant 0 : i32
      %33 = arith.cmpi ne, %32, %c0_i32_43 : i32
      %c0_i32_44 = arith.constant 0 : i32
      %34 = arith.cmpi slt, %32, %c0_i32_44 : i32
      %c0_i32_45 = arith.constant 0 : i32
      %35 = arith.cmpi slt, %31, %c0_i32_45 : i32
      %36 = arith.xori %34, %35 : i1
      %37 = arith.andi %36, %33 : i1
      %38 = arith.addi %32, %31 : i32
      %39 = arith.select %37, %38, %32 : i32
      %c0_i32_46 = arith.constant 0 : i32
      %c0_i32_47 = arith.constant 0 : i32
      %c0_i32_48 = arith.constant 0 : i32
      %c0_i32_49 = arith.constant 0 : i32
      %40 = tpu.memref_slice %arg0[%c0_i32_46, %c0_i32_48, %c0_i32_49] : memref<4x128x128xf32, #tpu.memory_space<any>> -> memref<1x128x128xf32, #tpu.memory_space<any>>
      %41 = tpu.memref_squeeze %40 : memref<1x128x128xf32, #tpu.memory_space<any>> -> memref<128x128xf32, #tpu.memory_space<any>>
      %c0_i32_50 = arith.constant 0 : i32
      %c0_i32_51 = arith.constant 0 : i32
      %42 = tpu.memref_slice %arg13[%39, %c0_i32_50, %c0_i32_51] : memref<2x128x128xf32, #tpu.memory_space<vmem>> -> memref<1x128x128xf32, #tpu.memory_space<vmem>>
      %43 = tpu.memref_squeeze %42 : memref<1x128x128xf32, #tpu.memory_space<vmem>> -> memref<128x128xf32, #tpu.memory_space<vmem>>
      %44 = tpu.memref_slice %arg15[%c0_i32_47, %39] : memref<2x2x!tpu.dma_semaphore, #tpu.memory_space<semaphore_mem>> -> memref<1x1x!tpu.dma_semaphore, #tpu.memory_space<semaphore_mem>>
      %45 = tpu.memref_squeeze %44 : memref<1x1x!tpu.dma_semaphore, #tpu.memory_space<semaphore_mem>> -> memref<!tpu.dma_semaphore, #tpu.memory_space<semaphore_mem>>
      tpu.wait_dma2 semaphore(%45 : memref<!tpu.dma_semaphore, #tpu.memory_space<semaphore_mem>>) src(%41 : memref<128x128xf32, #tpu.memory_space<any>>) dst(%43 : memref<128x128xf32, #tpu.memory_space<vmem>>)
      %c0_i32_52 = arith.constant 0 : i32
      %c1_i32_53 = arith.constant 1 : i32
      %c0_i32_54 = arith.constant 0 : i32
      %c0_i32_55 = arith.constant 0 : i32
      %46 = tpu.memref_slice %arg1[%c0_i32_52, %c0_i32_54, %c0_i32_55] : memref<4x128x128xf32, #tpu.memory_space<any>> -> memref<1x128x128xf32, #tpu.memory_space<any>>
      %47 = tpu.memref_squeeze %46 : memref<1x128x128xf32, #tpu.memory_space<any>> -> memref<128x128xf32, #tpu.memory_space<any>>
      %c0_i32_56 = arith.constant 0 : i32
      %c0_i32_57 = arith.constant 0 : i32
      %48 = tpu.memref_slice %arg14[%39, %c0_i32_56, %c0_i32_57] : memref<2x128x128xf32, #tpu.memory_space<vmem>> -> memref<1x128x128xf32, #tpu.memory_space<vmem>>
      %49 = tpu.memref_squeeze %48 : memref<1x128x128xf32, #tpu.memory_space<vmem>> -> memref<128x128xf32, #tpu.memory_space<vmem>>
      %50 = tpu.memref_slice %arg15[%c1_i32_53, %39] : memref<2x2x!tpu.dma_semaphore, #tpu.memory_space<semaphore_mem>> -> memref<1x1x!tpu.dma_semaphore, #tpu.memory_space<semaphore_mem>>
      %51 = tpu.memref_squeeze %50 : memref<1x1x!tpu.dma_semaphore, #tpu.memory_space<semaphore_mem>> -> memref<!tpu.dma_semaphore, #tpu.memory_space<semaphore_mem>>
      tpu.wait_dma2 semaphore(%51 : memref<!tpu.dma_semaphore, #tpu.memory_space<semaphore_mem>>) src(%47 : memref<128x128xf32, #tpu.memory_space<any>>) dst(%49 : memref<128x128xf32, #tpu.memory_space<vmem>>)
      %c1_i32_58 = arith.constant 1 : i32
      %52 = arith.addi %arg18, %c1_i32_58 : i32
      %c4_i32_59 = arith.constant 4 : i32
      %53 = arith.cmpi slt, %52, %c4_i32_59 : i32
      %54 = arith.extui %53 : i1 to i32
      %c0_i32_60 = arith.constant 0 : i32
      %55 = arith.cmpi ne, %54, %c0_i32_60 : i32
      scf.if %55 {
        %c1_i32_85 = arith.constant 1 : i32
        %96 = arith.addi %arg18, %c1_i32_85 : i32
        %c1_i32_86 = arith.constant 1 : i32
        %97 = arith.subi %c1_i32_86, %39 : i32
        %c0_i32_87 = arith.constant 0 : i32
        %c0_i32_88 = arith.constant 0 : i32
        %c0_i32_89 = arith.constant 0 : i32
        %98 = tpu.memref_slice %arg0[%96, %c0_i32_88, %c0_i32_89] : memref<4x128x128xf32, #tpu.memory_space<any>> -> memref<1x128x128xf32, #tpu.memory_space<any>>
        %99 = tpu.memref_squeeze %98 : memref<1x128x128xf32, #tpu.memory_space<any>> -> memref<128x128xf32, #tpu.memory_space<any>>
        %c0_i32_90 = arith.constant 0 : i32
        %c0_i32_91 = arith.constant 0 : i32
        %100 = tpu.memref_slice %arg13[%97, %c0_i32_90, %c0_i32_91] : memref<2x128x128xf32, #tpu.memory_space<vmem>> -> memref<1x128x128xf32, #tpu.memory_space<vmem>>
        %101 = tpu.memref_squeeze %100 : memref<1x128x128xf32, #tpu.memory_space<vmem>> -> memref<128x128xf32, #tpu.memory_space<vmem>>
        %102 = tpu.memref_slice %arg15[%c0_i32_87, %97] : memref<2x2x!tpu.dma_semaphore, #tpu.memory_space<semaphore_mem>> -> memref<1x1x!tpu.dma_semaphore, #tpu.memory_space<semaphore_mem>>
        %103 = tpu.memref_squeeze %102 : memref<1x1x!tpu.dma_semaphore, #tpu.memory_space<semaphore_mem>> -> memref<!tpu.dma_semaphore, #tpu.memory_space<semaphore_mem>>
        tpu.enqueue_dma source(%99 : memref<128x128xf32, #tpu.memory_space<any>>) target(%101 : memref<128x128xf32, #tpu.memory_space<vmem>>) target_semaphore(%103 : memref<!tpu.dma_semaphore, #tpu.memory_space<semaphore_mem>>)
        %c1_i32_92 = arith.constant 1 : i32
        %c0_i32_93 = arith.constant 0 : i32
        %c0_i32_94 = arith.constant 0 : i32
        %104 = tpu.memref_slice %arg1[%96, %c0_i32_93, %c0_i32_94] : memref<4x128x128xf32, #tpu.memory_space<any>> -> memref<1x128x128xf32, #tpu.memory_space<any>>
        %105 = tpu.memref_squeeze %104 : memref<1x128x128xf32, #tpu.memory_space<any>> -> memref<128x128xf32, #tpu.memory_space<any>>
        %c0_i32_95 = arith.constant 0 : i32
        %c0_i32_96 = arith.constant 0 : i32
        %106 = tpu.memref_slice %arg14[%97, %c0_i32_95, %c0_i32_96] : memref<2x128x128xf32, #tpu.memory_space<vmem>> -> memref<1x128x128xf32, #tpu.memory_space<vmem>>
        %107 = tpu.memref_squeeze %106 : memref<1x128x128xf32, #tpu.memory_space<vmem>> -> memref<128x128xf32, #tpu.memory_space<vmem>>
        %108 = tpu.memref_slice %arg15[%c1_i32_92, %97] : memref<2x2x!tpu.dma_semaphore, #tpu.memory_space<semaphore_mem>> -> memref<1x1x!tpu.dma_semaphore, #tpu.memory_space<semaphore_mem>>
        %109 = tpu.memref_squeeze %108 : memref<1x1x!tpu.dma_semaphore, #tpu.memory_space<semaphore_mem>> -> memref<!tpu.dma_semaphore, #tpu.memory_space<semaphore_mem>>
        tpu.enqueue_dma source(%105 : memref<128x128xf32, #tpu.memory_space<any>>) target(%107 : memref<128x128xf32, #tpu.memory_space<vmem>>) target_semaphore(%109 : memref<!tpu.dma_semaphore, #tpu.memory_space<semaphore_mem>>)
      } else {
      }
      %56 = arith.index_cast %39 : i32 to index
      %c0_61 = arith.constant 0 : index
      %c0_62 = arith.constant 0 : index
      %57 = vector.load %arg13[%56, %c0_61, %c0_62] : memref<2x128x128xf32, #tpu.memory_space<vmem>>, vector<1x128x128xf32>
      %58 = vector.shape_cast %57 : vector<1x128x128xf32> to vector<128x128xf32>
      %59 = arith.index_cast %39 : i32 to index
      %c0_63 = arith.constant 0 : index
      %c0_64 = arith.constant 0 : index
      %60 = vector.load %arg14[%59, %c0_63, %c0_64] : memref<2x128x128xf32, #tpu.memory_space<vmem>>, vector<1x128x128xf32>
      %61 = vector.shape_cast %60 : vector<1x128x128xf32> to vector<128x128xf32>
      %62 = arith.truncf %58 : vector<128x128xf32> to vector<128x128xbf16>
      %63 = arith.truncf %61 : vector<128x128xf32> to vector<128x128xbf16>
      %cst_65 = arith.constant dense<0.000000e+00> : vector<128x128xf32>
      %64 = tpu.matmul %0, %62, %cst_65 {dimension_numbers = #tpu.dot_dimension_numbers<[1], [0], [0], [1], [0, 0, 1, 1], [], []>} : vector<128x128xbf16>, vector<128x128xbf16>, vector<128x128xf32> -> vector<128x128xf32>
      %cst_66 = arith.constant dense<0.000000e+00> : vector<128x128xf32>
      %65 = tpu.matmul %1, %63, %cst_66 {dimension_numbers = #tpu.dot_dimension_numbers<[1], [0], [0], [1], [0, 0, 1, 1], [], []>} : vector<128x128xbf16>, vector<128x128xbf16>, vector<128x128xf32> -> vector<128x128xf32>
      %66 = arith.subf %64, %65 : vector<128x128xf32>
      %cst_67 = arith.constant dense<0.000000e+00> : vector<128x128xf32>
      %67 = tpu.matmul %0, %63, %cst_67 {dimension_numbers = #tpu.dot_dimension_numbers<[1], [0], [0], [1], [0, 0, 1, 1], [], []>} : vector<128x128xbf16>, vector<128x128xbf16>, vector<128x128xf32> -> vector<128x128xf32>
      %cst_68 = arith.constant dense<0.000000e+00> : vector<128x128xf32>
      %68 = tpu.matmul %1, %62, %cst_68 {dimension_numbers = #tpu.dot_dimension_numbers<[1], [0], [0], [1], [0, 0, 1, 1], [], []>} : vector<128x128xbf16>, vector<128x128xbf16>, vector<128x128xf32> -> vector<128x128xf32>
      %69 = arith.addf %67, %68 : vector<128x128xf32>
      %70 = arith.truncf %66 : vector<128x128xf32> to vector<128x128xbf16>
      %71 = arith.truncf %69 : vector<128x128xf32> to vector<128x128xbf16>
      %cst_69 = arith.constant dense<0.000000e+00> : vector<128x128xf32>
      %72 = tpu.matmul %70, %2, %cst_69 {dimension_numbers = #tpu.dot_dimension_numbers<[1], [0], [0], [1], [0, 0, 1, 1], [], []>} : vector<128x128xbf16>, vector<128x128xbf16>, vector<128x128xf32> -> vector<128x128xf32>
      %cst_70 = arith.constant dense<0.000000e+00> : vector<128x128xf32>
      %73 = tpu.matmul %71, %3, %cst_70 {dimension_numbers = #tpu.dot_dimension_numbers<[1], [0], [0], [1], [0, 0, 1, 1], [], []>} : vector<128x128xbf16>, vector<128x128xbf16>, vector<128x128xf32> -> vector<128x128xf32>
      %74 = arith.subf %72, %73 : vector<128x128xf32>
      %cst_71 = arith.constant dense<0.000000e+00> : vector<128x128xf32>
      %75 = tpu.matmul %71, %2, %cst_71 {dimension_numbers = #tpu.dot_dimension_numbers<[1], [0], [0], [1], [0, 0, 1, 1], [], []>} : vector<128x128xbf16>, vector<128x128xbf16>, vector<128x128xf32> -> vector<128x128xf32>
      %cst_72 = arith.constant dense<0.000000e+00> : vector<128x128xf32>
      %76 = tpu.matmul %70, %3, %cst_72 {dimension_numbers = #tpu.dot_dimension_numbers<[1], [0], [0], [1], [0, 0, 1, 1], [], []>} : vector<128x128xbf16>, vector<128x128xbf16>, vector<128x128xf32> -> vector<128x128xf32>
      %77 = arith.addf %75, %76 : vector<128x128xf32>
      %78 = arith.index_cast %arg18 : i32 to index
      %c0_73 = arith.constant 0 : index
      %c0_74 = arith.constant 0 : index
      %79 = vector.load %arg2[%78, %c0_73, %c0_74] : memref<4x128x128xf32, #tpu.memory_space<vmem>>, vector<1x128x128xf32>
      %80 = vector.shape_cast %79 : vector<1x128x128xf32> to vector<128x128xf32>
      %81 = arith.index_cast %arg18 : i32 to index
      %c0_75 = arith.constant 0 : index
      %c0_76 = arith.constant 0 : index
      %82 = vector.load %arg3[%81, %c0_75, %c0_76] : memref<4x128x128xf32, #tpu.memory_space<vmem>>, vector<1x128x128xf32>
      %83 = vector.shape_cast %82 : vector<1x128x128xf32> to vector<128x128xf32>
      %c0_77 = arith.constant 0 : index
      %c0_78 = arith.constant 0 : index
      %84 = vector.load %arg9[%c0_77, %c0_78] : memref<128x128xf32, #tpu.memory_space<vmem>>, vector<128x128xf32>
      %85 = arith.mulf %80, %74 : vector<128x128xf32>
      %86 = arith.mulf %83, %77 : vector<128x128xf32>
      %87 = arith.addf %85, %86 : vector<128x128xf32>
      %88 = arith.addf %84, %87 : vector<128x128xf32>
      %c0_79 = arith.constant 0 : index
      %c0_80 = arith.constant 0 : index
      %89 = vector.load %arg9[%c0_79, %c0_80] : memref<128x128xf32, #tpu.memory_space<vmem>>, vector<128x128xf32>
      tpu.vector_store %arg9[%c0_79, %c0_80], %88 {strides = array<i32>} : memref<128x128xf32, #tpu.memory_space<vmem>>, vector<128x128xf32>,
      %c0_81 = arith.constant 0 : index
      %c0_82 = arith.constant 0 : index
      %90 = vector.load %arg10[%c0_81, %c0_82] : memref<128x128xf32, #tpu.memory_space<vmem>>, vector<128x128xf32>
      %91 = arith.mulf %80, %77 : vector<128x128xf32>
      %92 = arith.mulf %83, %74 : vector<128x128xf32>
      %93 = arith.subf %91, %92 : vector<128x128xf32>
      %94 = arith.addf %90, %93 : vector<128x128xf32>
      %c0_83 = arith.constant 0 : index
      %c0_84 = arith.constant 0 : index
      %95 = vector.load %arg10[%c0_83, %c0_84] : memref<128x128xf32, #tpu.memory_space<vmem>>, vector<128x128xf32>
      tpu.vector_store %arg10[%c0_83, %c0_84], %94 {strides = array<i32>} : memref<128x128xf32, #tpu.memory_space<vmem>>, vector<128x128xf32>,
    }
    %c4_i32_30 = arith.constant 4 : i32
    %c0_31 = arith.constant 0 : index
    %c0_32 = arith.constant 0 : index
    %25 = vector.load %arg9[%c0_31, %c0_32] : memref<128x128xf32, #tpu.memory_space<vmem>>, vector<128x128xf32>
    %c0_33 = arith.constant 0 : index
    %c0_34 = arith.constant 0 : index
    %26 = vector.load %arg11[%c0_33, %c0_34] : memref<128x128xf32, #tpu.memory_space<vmem>>, vector<128x128xf32>
    tpu.vector_store %arg11[%c0_33, %c0_34], %25 {strides = array<i32>} : memref<128x128xf32, #tpu.memory_space<vmem>>, vector<128x128xf32>,
    %c0_35 = arith.constant 0 : index
    %c0_36 = arith.constant 0 : index
    %27 = vector.load %arg10[%c0_35, %c0_36] : memref<128x128xf32, #tpu.memory_space<vmem>>, vector<128x128xf32>
    %c0_37 = arith.constant 0 : index
    %c0_38 = arith.constant 0 : index
    %28 = vector.load %arg12[%c0_37, %c0_38] : memref<128x128xf32, #tpu.memory_space<vmem>>, vector<128x128xf32>
    tpu.vector_store %arg12[%c0_37, %c0_38], %27 {strides = array<i32>} : memref<128x128xf32, #tpu.memory_space<vmem>>, vector<128x128xf32>,
    %c0_i32_39 = arith.constant 0 : i32
    %c5_i32 = arith.constant 5 : i32
    %29 = arith.addi %c0_i32_39, %c5_i32 : i32
    %c1_i32_40 = arith.constant 1 : i32
    scf.for %arg18 = %c0_i32_39 to %29 step %c1_i32_40  : i32 {
      %cst_41 = arith.constant 0.000000e+00 : f32
      %30 = vector.broadcast %cst_41 : f32 to vector<128x128xf32>
      %c0_42 = arith.constant 0 : index
      %c0_43 = arith.constant 0 : index
      %31 = vector.load %arg16[%c0_42, %c0_43] : memref<128x128xf32, #tpu.memory_space<vmem>>, vector<128x128xf32>
      tpu.vector_store %arg16[%c0_42, %c0_43], %30 {strides = array<i32>} : memref<128x128xf32, #tpu.memory_space<vmem>>, vector<128x128xf32>,
      %cst_44 = arith.constant 0.000000e+00 : f32
      %32 = vector.broadcast %cst_44 : f32 to vector<128x128xf32>
      %c0_45 = arith.constant 0 : index
      %c0_46 = arith.constant 0 : index
      %33 = vector.load %arg17[%c0_45, %c0_46] : memref<128x128xf32, #tpu.memory_space<vmem>>, vector<128x128xf32>
      tpu.vector_store %arg17[%c0_45, %c0_46], %32 {strides = array<i32>} : memref<128x128xf32, #tpu.memory_space<vmem>>, vector<128x128xf32>,
      %c0_i32_47 = arith.constant 0 : i32
      %c4_i32_48 = arith.constant 4 : i32
      %34 = arith.addi %c0_i32_47, %c4_i32_48 : i32
      %c1_i32_49 = arith.constant 1 : i32
      scf.for %arg19 = %c0_i32_47 to %34 step %c1_i32_49  : i32 {
        %c0_73 = arith.constant 0 : index
        %c0_74 = arith.constant 0 : index
        %65 = vector.load %arg11[%c0_73, %c0_74] : memref<128x128xf32, #tpu.memory_space<vmem>>, vector<128x128xf32>
        %c0_75 = arith.constant 0 : index
        %c0_76 = arith.constant 0 : index
        %66 = vector.load %arg12[%c0_75, %c0_76] : memref<128x128xf32, #tpu.memory_space<vmem>>, vector<128x128xf32>
        %67 = arith.index_cast %arg19 : i32 to index
        %c0_77 = arith.constant 0 : index
        %c0_78 = arith.constant 0 : index
        %68 = vector.load %arg2[%67, %c0_77, %c0_78] : memref<4x128x128xf32, #tpu.memory_space<vmem>>, vector<1x128x128xf32>
        %69 = vector.shape_cast %68 : vector<1x128x128xf32> to vector<128x128xf32>
        %70 = arith.index_cast %arg19 : i32 to index
        %c0_79 = arith.constant 0 : index
        %c0_80 = arith.constant 0 : index
        %71 = vector.load %arg3[%70, %c0_79, %c0_80] : memref<4x128x128xf32, #tpu.memory_space<vmem>>, vector<1x128x128xf32>
        %72 = vector.shape_cast %71 : vector<1x128x128xf32> to vector<128x128xf32>
        %c0_81 = arith.constant 0 : index
        %c0_82 = arith.constant 0 : index
        %c0_83 = arith.constant 0 : index
        %73 = vector.load %arg4[%c0_81, %c0_82, %c0_83] : memref<1x128x128xf32, #tpu.memory_space<vmem>>, vector<1x128x128xf32>
        %74 = vector.shape_cast %73 : vector<1x128x128xf32> to vector<128x128xf32>
        %75 = arith.mulf %69, %65 : vector<128x128xf32>
        %76 = arith.mulf %72, %66 : vector<128x128xf32>
        %77 = arith.subf %75, %76 : vector<128x128xf32>
        %78 = arith.mulf %69, %66 : vector<128x128xf32>
        %79 = arith.mulf %72, %65 : vector<128x128xf32>
        %80 = arith.addf %78, %79 : vector<128x128xf32>
        %81 = arith.truncf %77 : vector<128x128xf32> to vector<128x128xbf16>
        %82 = arith.truncf %80 : vector<128x128xf32> to vector<128x128xbf16>
        %cst_84 = arith.constant dense<0.000000e+00> : vector<128x128xf32>
        %83 = tpu.matmul %0, %81, %cst_84 {dimension_numbers = #tpu.dot_dimension_numbers<[1], [0], [0], [1], [0, 0, 1, 1], [], []>} : vector<128x128xbf16>, vector<128x128xbf16>, vector<128x128xf32> -> vector<128x128xf32>
        %cst_85 = arith.constant dense<0.000000e+00> : vector<128x128xf32>
        %84 = tpu.matmul %5, %82, %cst_85 {dimension_numbers = #tpu.dot_dimension_numbers<[1], [0], [0], [1], [0, 0, 1, 1], [], []>} : vector<128x128xbf16>, vector<128x128xbf16>, vector<128x128xf32> -> vector<128x128xf32>
        %85 = arith.subf %83, %84 : vector<128x128xf32>
        %cst_86 = arith.constant dense<0.000000e+00> : vector<128x128xf32>
        %86 = tpu.matmul %0, %82, %cst_86 {dimension_numbers = #tpu.dot_dimension_numbers<[1], [0], [0], [1], [0, 0, 1, 1], [], []>} : vector<128x128xbf16>, vector<128x128xbf16>, vector<128x128xf32> -> vector<128x128xf32>
        %cst_87 = arith.constant dense<0.000000e+00> : vector<128x128xf32>
        %87 = tpu.matmul %5, %81, %cst_87 {dimension_numbers = #tpu.dot_dimension_numbers<[1], [0], [0], [1], [0, 0, 1, 1], [], []>} : vector<128x128xbf16>, vector<128x128xbf16>, vector<128x128xf32> -> vector<128x128xf32>
        %88 = arith.addf %86, %87 : vector<128x128xf32>
        %89 = arith.truncf %85 : vector<128x128xf32> to vector<128x128xbf16>
        %90 = arith.truncf %88 : vector<128x128xf32> to vector<128x128xbf16>
        %cst_88 = arith.constant dense<0.000000e+00> : vector<128x128xf32>
        %91 = tpu.matmul %89, %2, %cst_88 {dimension_numbers = #tpu.dot_dimension_numbers<[1], [0], [0], [1], [0, 0, 1, 1], [], []>} : vector<128x128xbf16>, vector<128x128xbf16>, vector<128x128xf32> -> vector<128x128xf32>
        %cst_89 = arith.constant dense<0.000000e+00> : vector<128x128xf32>
        %92 = tpu.matmul %90, %7, %cst_89 {dimension_numbers = #tpu.dot_dimension_numbers<[1], [0], [0], [1], [0, 0, 1, 1], [], []>} : vector<128x128xbf16>, vector<128x128xbf16>, vector<128x128xf32> -> vector<128x128xf32>
        %93 = arith.subf %91, %92 : vector<128x128xf32>
        %cst_90 = arith.constant dense<0.000000e+00> : vector<128x128xf32>
        %94 = tpu.matmul %90, %2, %cst_90 {dimension_numbers = #tpu.dot_dimension_numbers<[1], [0], [0], [1], [0, 0, 1, 1], [], []>} : vector<128x128xbf16>, vector<128x128xbf16>, vector<128x128xf32> -> vector<128x128xf32>
        %cst_91 = arith.constant dense<0.000000e+00> : vector<128x128xf32>
        %95 = tpu.matmul %89, %7, %cst_91 {dimension_numbers = #tpu.dot_dimension_numbers<[1], [0], [0], [1], [0, 0, 1, 1], [], []>} : vector<128x128xbf16>, vector<128x128xbf16>, vector<128x128xf32> -> vector<128x128xf32>
        %96 = arith.addf %94, %95 : vector<128x128xf32>
        %97 = arith.mulf %93, %74 : vector<128x128xf32>
        %98 = arith.mulf %96, %74 : vector<128x128xf32>
        %99 = arith.truncf %97 : vector<128x128xf32> to vector<128x128xbf16>
        %100 = arith.truncf %98 : vector<128x128xf32> to vector<128x128xbf16>
        %cst_92 = arith.constant dense<0.000000e+00> : vector<128x128xf32>
        %101 = tpu.matmul %0, %99, %cst_92 {dimension_numbers = #tpu.dot_dimension_numbers<[1], [0], [0], [1], [0, 0, 1, 1], [], []>} : vector<128x128xbf16>, vector<128x128xbf16>, vector<128x128xf32> -> vector<128x128xf32>
        %cst_93 = arith.constant dense<0.000000e+00> : vector<128x128xf32>
        %102 = tpu.matmul %1, %100, %cst_93 {dimension_numbers = #tpu.dot_dimension_numbers<[1], [0], [0], [1], [0, 0, 1, 1], [], []>} : vector<128x128xbf16>, vector<128x128xbf16>, vector<128x128xf32> -> vector<128x128xf32>
        %103 = arith.subf %101, %102 : vector<128x128xf32>
        %cst_94 = arith.constant dense<0.000000e+00> : vector<128x128xf32>
        %104 = tpu.matmul %0, %100, %cst_94 {dimension_numbers = #tpu.dot_dimension_numbers<[1], [0], [0], [1], [0, 0, 1, 1], [], []>} : vector<128x128xbf16>, vector<128x128xbf16>, vector<128x128xf32> -> vector<128x128xf32>
        %cst_95 = arith.constant dense<0.000000e+00> : vector<128x128xf32>
        %105 = tpu.matmul %1, %99, %cst_95 {dimension_numbers = #tpu.dot_dimension_numbers<[1], [0], [0], [1], [0, 0, 1, 1], [], []>} : vector<128x128xbf16>, vector<128x128xbf16>, vector<128x128xf32> -> vector<128x128xf32>
        %106 = arith.addf %104, %105 : vector<128x128xf32>
        %107 = arith.truncf %103 : vector<128x128xf32> to vector<128x128xbf16>
        %108 = arith.truncf %106 : vector<128x128xf32> to vector<128x128xbf16>
        %cst_96 = arith.constant dense<0.000000e+00> : vector<128x128xf32>
        %109 = tpu.matmul %107, %2, %cst_96 {dimension_numbers = #tpu.dot_dimension_numbers<[1], [0], [0], [1], [0, 0, 1, 1], [], []>} : vector<128x128xbf16>, vector<128x128xbf16>, vector<128x128xf32> -> vector<128x128xf32>
        %cst_97 = arith.constant dense<0.000000e+00> : vector<128x128xf32>
        %110 = tpu.matmul %108, %3, %cst_97 {dimension_numbers = #tpu.dot_dimension_numbers<[1], [0], [0], [1], [0, 0, 1, 1], [], []>} : vector<128x128xbf16>, vector<128x128xbf16>, vector<128x128xf32> -> vector<128x128xf32>
        %111 = arith.subf %109, %110 : vector<128x128xf32>
        %cst_98 = arith.constant dense<0.000000e+00> : vector<128x128xf32>
        %112 = tpu.matmul %108, %2, %cst_98 {dimension_numbers = #tpu.dot_dimension_numbers<[1], [0], [0], [1], [0, 0, 1, 1], [], []>} : vector<128x128xbf16>, vector<128x128xbf16>, vector<128x128xf32> -> vector<128x128xf32>
        %cst_99 = arith.constant dense<0.000000e+00> : vector<128x128xf32>
        %113 = tpu.matmul %107, %3, %cst_99 {dimension_numbers = #tpu.dot_dimension_numbers<[1], [0], [0], [1], [0, 0, 1, 1], [], []>} : vector<128x128xbf16>, vector<128x128xbf16>, vector<128x128xf32> -> vector<128x128xf32>
        %114 = arith.addf %112, %113 : vector<128x128xf32>
        %c0_100 = arith.constant 0 : index
        %c0_101 = arith.constant 0 : index
        %115 = vector.load %arg16[%c0_100, %c0_101] : memref<128x128xf32, #tpu.memory_space<vmem>>, vector<128x128xf32>
        %116 = arith.mulf %69, %111 : vector<128x128xf32>
        %117 = arith.mulf %72, %114 : vector<128x128xf32>
        %118 = arith.addf %116, %117 : vector<128x128xf32>
        %119 = arith.addf %115, %118 : vector<128x128xf32>
        %c0_102 = arith.constant 0 : index
        %c0_103 = arith.constant 0 : index
        %120 = vector.load %arg16[%c0_102, %c0_103] : memref<128x128xf32, #tpu.memory_space<vmem>>, vector<128x128xf32>
        tpu.vector_store %arg16[%c0_102, %c0_103], %119 {strides = array<i32>} : memref<128x128xf32, #tpu.memory_space<vmem>>, vector<128x128xf32>,
        %c0_104 = arith.constant 0 : index
        %c0_105 = arith.constant 0 : index
        %121 = vector.load %arg17[%c0_104, %c0_105] : memref<128x128xf32, #tpu.memory_space<vmem>>, vector<128x128xf32>
        %122 = arith.mulf %69, %114 : vector<128x128xf32>
        %123 = arith.mulf %72, %111 : vector<128x128xf32>
        %124 = arith.subf %122, %123 : vector<128x128xf32>
        %125 = arith.addf %121, %124 : vector<128x128xf32>
        %c0_106 = arith.constant 0 : index
        %c0_107 = arith.constant 0 : index
        %126 = vector.load %arg17[%c0_106, %c0_107] : memref<128x128xf32, #tpu.memory_space<vmem>>, vector<128x128xf32>
        tpu.vector_store %arg17[%c0_106, %c0_107], %125 {strides = array<i32>} : memref<128x128xf32, #tpu.memory_space<vmem>>, vector<128x128xf32>,
      }
      %c4_i32_50 = arith.constant 4 : i32
      %c0_51 = arith.constant 0 : index
      %c0_52 = arith.constant 0 : index
      %35 = vector.load %arg11[%c0_51, %c0_52] : memref<128x128xf32, #tpu.memory_space<vmem>>, vector<128x128xf32>
      %c0_53 = arith.constant 0 : index
      %c0_54 = arith.constant 0 : index
      %36 = vector.load %arg16[%c0_53, %c0_54] : memref<128x128xf32, #tpu.memory_space<vmem>>, vector<128x128xf32>
      %c0_55 = arith.constant 0 : index
      %c0_56 = arith.constant 0 : index
      %37 = vector.load %arg9[%c0_55, %c0_56] : memref<128x128xf32, #tpu.memory_space<vmem>>, vector<128x128xf32>
      %38 = arith.subf %36, %37 : vector<128x128xf32>
      %cst_57 = arith.constant 1.000000e+00 : f32
      %39 = vector.broadcast %cst_57 : f32 to vector<128x128xf32>
      %40 = arith.mulf %39, %38 : vector<128x128xf32>
      %41 = arith.subf %35, %40 : vector<128x128xf32>
      %c0_58 = arith.constant 0 : index
      %c0_59 = arith.constant 0 : index
      %42 = vector.load %arg12[%c0_58, %c0_59] : memref<128x128xf32, #tpu.memory_space<vmem>>, vector<128x128xf32>
      %c0_60 = arith.constant 0 : index
      %c0_61 = arith.constant 0 : index
      %43 = vector.load %arg17[%c0_60, %c0_61] : memref<128x128xf32, #tpu.memory_space<vmem>>, vector<128x128xf32>
      %c0_62 = arith.constant 0 : index
      %c0_63 = arith.constant 0 : index
      %44 = vector.load %arg10[%c0_62, %c0_63] : memref<128x128xf32, #tpu.memory_space<vmem>>, vector<128x128xf32>
      %45 = arith.subf %43, %44 : vector<128x128xf32>
      %cst_64 = arith.constant 1.000000e+00 : f32
      %46 = vector.broadcast %cst_64 : f32 to vector<128x128xf32>
      %47 = arith.mulf %46, %45 : vector<128x128xf32>
      %48 = arith.subf %42, %47 : vector<128x128xf32>
      %49 = arith.mulf %41, %41 : vector<128x128xf32>
      %50 = arith.mulf %48, %48 : vector<128x128xf32>
      %51 = arith.addf %49, %50 : vector<128x128xf32>
      %cst_65 = arith.constant 1.000000e-24 : f32
      %52 = vector.broadcast %cst_65 : f32 to vector<128x128xf32>
      %53 = arith.addf %51, %52 : vector<128x128xf32>
      %54 = math.rsqrt %53 : vector<128x128xf32>
      %cst_66 = arith.constant 5.000000e-03 : f32
      %55 = vector.broadcast %cst_66 : f32 to vector<128x128xf32>
      %56 = arith.mulf %55, %54 : vector<128x128xf32>
      %cst_67 = arith.constant 1.000000e+00 : f32
      %57 = vector.broadcast %cst_67 : f32 to vector<128x128xf32>
      %58 = arith.subf %57, %56 : vector<128x128xf32>
      %cst_68 = arith.constant 0.000000e+00 : f32
      %59 = vector.broadcast %cst_68 : f32 to vector<128x128xf32>
      %60 = arith.maximumf %58, %59 : vector<128x128xf32>
      %61 = arith.mulf %41, %60 : vector<128x128xf32>
      %c0_69 = arith.constant 0 : index
      %c0_70 = arith.constant 0 : index
      %62 = vector.load %arg11[%c0_69, %c0_70] : memref<128x128xf32, #tpu.memory_space<vmem>>, vector<128x128xf32>
      tpu.vector_store %arg11[%c0_69, %c0_70], %61 {strides = array<i32>} : memref<128x128xf32, #tpu.memory_space<vmem>>, vector<128x128xf32>,
      %63 = arith.mulf %48, %60 : vector<128x128xf32>
      %c0_71 = arith.constant 0 : index
      %c0_72 = arith.constant 0 : index
      %64 = vector.load %arg12[%c0_71, %c0_72] : memref<128x128xf32, #tpu.memory_space<vmem>>, vector<128x128xf32>
      tpu.vector_store %arg12[%c0_71, %c0_72], %63 {strides = array<i32>} : memref<128x128xf32, #tpu.memory_space<vmem>>, vector<128x128xf32>,
    }
    return
  }
}

</mosaic_0001>

<llo_original>
// kernel: tpu_custom_call.1
$region0: #{tpu_custom_call.1}
  #allocation0 [shape = 'u32[]', space=smem, size = 0x4, offset = 0x4, fixed_abs, tag = 'smem constant byte address 0x4 - core index']
  #allocation1 [shape = 'u32[72,128]{1,0:T(1,128)}', space=vmem, size = 0x9000, scoped, tag = 'internal scratch']
  #allocation2 [shape = 'f32[2,128,128]{2,1,0:T(8,128)}', space=vmem, size = 0x20000, scoped, tag = 'scratch operand']
  #allocation3 [shape = 'f32[2,128,128]{2,1,0:T(8,128)}', space=vmem, size = 0x20000, scoped, tag = 'scratch operand']
  #allocation4 [shape = 's32[4]{0}', space=sflag, size = 0x10, scoped, tag = 'scratch operand']
  #allocation5 [shape = 'f32[128,128]{1,0:T(8,128)}', space=vmem, size = 0x10000, scoped, tag = 'scratch operand']
  #allocation6 [shape = 'f32[128,128]{1,0:T(8,128)}', space=vmem, size = 0x10000, scoped, tag = 'scratch operand']
  #allocation25 [shape = 's32[]', space=sflag, size = 0x4, offset = 0, fixed_abs, tag = 'sflag constant byte address 0x0 - dummy sync flag']
  #allocation26 [shape = 's32[]', space=sflag, size = 0x4, offset = 0, fixed_abs, tag = 'sflag constant byte address 0x0 - dummy sync flag']
  #allocation27 [shape = 'u32[]', space=smem, size = 0x4, offset = 0x44, fixed_abs, tag = 'smem constant byte address 0x44 - assertion arg 0']
  #allocation28 [shape = 'u32[]', space=smem, size = 0x4, offset = 0x48, fixed_abs, tag = 'smem constant byte address 0x48 - assertion arg 1']
  #allocation29 [shape = 's32[]', space=sflag, size = 0x4, offset = 0, fixed_abs, tag = 'sflag constant byte address 0x0 - dummy sync flag']
  #allocation30 [shape = 's32[]', space=sflag, size = 0x4, offset = 0, fixed_abs, tag = 'sflag constant byte address 0x0 - dummy sync flag']
  #allocation31 [shape = 's32[]', space=sflag, size = 0x4, offset = 0, fixed_abs, tag = 'sflag constant byte address 0x0 - dummy sync flag']
  #allocation32 [shape = 's32[]', space=sflag, size = 0x4, offset = 0, fixed_abs, tag = 'sflag constant byte address 0x0 - dummy sync flag']
  #allocation33 [shape = 's32[]', space=sflag, size = 0x4, offset = 0, fixed_abs, tag = 'sflag constant byte address 0x0 - dummy sync flag']
  #allocation34 [shape = 's32[]', space=sflag, size = 0x4, offset = 0, fixed_abs, tag = 'sflag constant byte address 0x0 - dummy sync flag']
  %s0 = inlined_call_operand.hbm [shape: f32[4,128,128], index: 0, kind: input, shape index: {}]
  %s1 = inlined_call_operand.hbm [shape: f32[4,128,128], index: 1, kind: input, shape index: {}]
  %s2 = inlined_call_operand.hbm [shape: f32[4,128,128], index: 2, kind: input, shape index: {}]
  %s3 = inlined_call_operand.hbm [shape: f32[4,128,128], index: 3, kind: input, shape index: {}]
  %s4 = inlined_call_operand.hbm [shape: f32[1,128,128], index: 4, kind: input, shape index: {}]
  %s5 = inlined_call_operand.hbm [shape: bf16[128,128], index: 5, kind: input, shape index: {}]
  %s6 = inlined_call_operand.hbm [shape: bf16[128,128], index: 6, kind: input, shape index: {}]
  %s7 = inlined_call_operand.hbm [shape: bf16[128,128], index: 7, kind: input, shape index: {}]
  %s8 = inlined_call_operand.hbm [shape: bf16[128,128], index: 8, kind: input, shape index: {}]
  %s9 = inlined_call_operand.hbm [shape: f32[128,128], index: 9, kind: output, shape index: {0}]
  %s10 = inlined_call_operand.hbm [shape: f32[128,128], index: 10, kind: output, shape index: {1}]
  %s11 = inlined_call_operand.hbm [shape: f32[128,128], index: 11, kind: output, shape index: {2}]
  %s12 = inlined_call_operand.hbm [shape: f32[128,128], index: 12, kind: output, shape index: {3}]
  %13 = xla_tuple %s9, %s10, %s11, %s12
  %s14 = sld [smem:[#allocation0]]
  $region131: #{tpu_custom_call.1} parent=0
    _
  %s16 = ssub.s32 1, %s14
  %s17 = scalar_select 0, %s16, %s14
  $region1: #{tpu_custom_call.1} parent=0
    #allocation7 [shape = 'u8[262144]{0}', space=vmem, size = 0x40000, scoped, tag = 'input window, operand 2, single buffered']
    #allocation8 [shape = 's32[1]{0}', space=sflag, size = 0x4, scoped, tag = 'scoped memory for tpu_custom_call.1']
    #allocation9 [shape = 's32[1]{0}', space=sflag, size = 0x4, scoped, tag = 'scoped memory for tpu_custom_call.1']
    #allocation10 [shape = 'u8[262144]{0}', space=vmem, size = 0x40000, scoped, tag = 'input window, operand 3, single buffered']
    #allocation11 [shape = 's32[1]{0}', space=sflag, size = 0x4, scoped, tag = 'scoped memory for tpu_custom_call.1']
    #allocation12 [shape = 'u8[65536]{0}', space=vmem, size = 0x10000, scoped, tag = 'input window, operand 4, single buffered']
    #allocation13 [shape = 'u8[32768]{0}', space=vmem, size = 0x8000, scoped, tag = 'input window, operand 5, single buffered']
    #allocation14 [shape = 's32[1]{0}', space=sflag, size = 0x4, scoped, tag = 'scoped memory for tpu_custom_call.1']
    #allocation15 [shape = 'u8[32768]{0}', space=vmem, size = 0x8000, scoped, tag = 'input window, operand 6, single buffered']
    #allocation16 [shape = 'u8[32768]{0}', space=vmem, size = 0x8000, scoped, tag = 'input window, operand 7, single buffered']
    #allocation17 [shape = 's32[1]{0}', space=sflag, size = 0x4, scoped, tag = 'scoped memory for tpu_custom_call.1']
    #allocation18 [shape = 'u8[32768]{0}', space=vmem, size = 0x8000, scoped, tag = 'input window, operand 8, single buffered']
    #allocation19 [shape = 'u8[65536]{0}', space=vmem, size = 0x10000, scoped, tag = 'output window, operand 0, single buffered']
    #allocation20 [shape = 'u8[65536]{0}', space=vmem, size = 0x10000, scoped, tag = 'output window, operand 1, single buffered']
    #allocation21 [shape = 's32[1]{0}', space=sflag, size = 0x4, scoped, tag = 'scoped memory for tpu_custom_call.1']
    #allocation22 [shape = 'u8[65536]{0}', space=vmem, size = 0x10000, scoped, tag = 'output window, operand 2, single buffered']
    #allocation23 [shape = 'u8[65536]{0}', space=vmem, size = 0x10000, scoped, tag = 'output window, operand 3, single buffered']
    #allocation24 [shape = 's32[1]{0}', space=sflag, size = 0x4, scoped, tag = 'scoped memory for tpu_custom_call.1']
    %18 = vsyncpa [#allocation8], 0
    %19 = vsyncpa [#allocation11], 0
    %20 = vsyncpa [#allocation14], 0
    %21 = vsyncpa [#allocation17], 0
    %22 = vsyncpa [#allocation9], 0
    %23 = vsyncpa [#allocation21], 0
    %24 = vsyncpa [#allocation24], 0
    // Predicated region
    $region2: #{tpu_custom_call.1} parent=1 // pred_check
      _
    $region3: #{tpu_custom_call.1} parent=1 // pred_check_branch
      %26 = sbr.rel (0) target = $region5
    $region4: #{tpu_custom_call.1} parent=1 // pred_region
      %28 = vsyncadd [#allocation8], 0
      %s29 = sshll.u32 %s2, 4
      %s30 = int_to_ptr.hbm [resolvable:$true] %s29
      %s31 = sshll.u32 [#allocation7], 4
      %s32 = int_to_ptr.vmem [resolvable:$true] %s31
      %37 = dma.hbm_to_vmem [thread:$0]  %s30, 8192, %s32, [#allocation8], 128, 128, 8
    $region5: #{tpu_custom_call.1} parent=1 // pred_fallthru
      _
    // Predicated region
    $region6: #{tpu_custom_call.1} parent=1 // pred_check
      _
    $region7: #{tpu_custom_call.1} parent=1 // pred_check_branch
      %39 = sbr.rel (0) target = $region9
    $region8: #{tpu_custom_call.1} parent=1 // pred_region
      %41 = vsyncadd [#allocation11], 0
      %s42 = sshll.u32 %s3, 4
      %s43 = int_to_ptr.hbm [resolvable:$true] %s42
      %s44 = sshll.u32 [#allocation10], 4
      %s45 = int_to_ptr.vmem [resolvable:$true] %s44
      %50 = dma.hbm_to_vmem [thread:$0]  %s43, 8192, %s45, [#allocation11], 128, 128, 8
    $region9: #{tpu_custom_call.1} parent=1 // pred_fallthru
      _
    // Predicated region
    $region10: #{tpu_custom_call.1} parent=1 // pred_check
      _
    $region11: #{tpu_custom_call.1} parent=1 // pred_check_branch
      %52 = sbr.rel (0) target = $region13
    $region12: #{tpu_custom_call.1} parent=1 // pred_region
      %54 = vsyncadd [#allocation11], 0
      %s55 = sshll.u32 %s4, 4
      %s56 = int_to_ptr.hbm [resolvable:$true] %s55
      %s57 = sshll.u32 [#allocation12], 4
      %s58 = int_to_ptr.vmem [resolvable:$true] %s57
      %63 = dma.hbm_to_vmem [thread:$0]  %s56, 2048, %s58, [#allocation11], 128, 128, 8
    $region13: #{tpu_custom_call.1} parent=1 // pred_fallthru
      _
    // Predicated region
    $region14: #{tpu_custom_call.1} parent=1 // pred_check
      _
    $region15: #{tpu_custom_call.1} parent=1 // pred_check_branch
      %65 = sbr.rel (0) target = $region17
    $region16: #{tpu_custom_call.1} parent=1 // pred_region
      %67 = vsyncadd [#allocation14], 0
      %s68 = sshll.u32 %s5, 4
      %s69 = int_to_ptr.hbm [resolvable:$true] %s68
      %s70 = sshll.u32 [#allocation13], 4
      %s71 = int_to_ptr.vmem [resolvable:$true] %s70
      %76 = dma.hbm_to_vmem [thread:$0]  %s69, 1024, %s71, [#allocation14], 64, 64, 4
    $region17: #{tpu_custom_call.1} parent=1 // pred_fallthru
      _
    // Predicated region
    $region18: #{tpu_custom_call.1} parent=1 // pred_check
      _
    $region19: #{tpu_custom_call.1} parent=1 // pred_check_branch
      %78 = sbr.rel (0) target = $region21
    $region20: #{tpu_custom_call.1} parent=1 // pred_region
      %80 = vsyncadd [#allocation14], 0
      %s81 = sshll.u32 %s6, 4
      %s82 = int_to_ptr.hbm [resolvable:$true] %s81
      %s83 = sshll.u32 [#allocation15], 4
      %s84 = int_to_ptr.vmem [resolvable:$true] %s83
      %89 = dma.hbm_to_vmem [thread:$0]  %s82, 1024, %s84, [#allocation14], 64, 64, 4
    $region21: #{tpu_custom_call.1} parent=1 // pred_fallthru
      _
    // Predicated region
    $region22: #{tpu_custom_call.1} parent=1 // pred_check
      _
    $region23: #{tpu_custom_call.1} parent=1 // pred_check_branch
      %91 = sbr.rel (0) target = $region25
    $region24: #{tpu_custom_call.1} parent=1 // pred_region
      %93 = vsyncadd [#allocation17], 0
      %s94 = sshll.u32 %s7, 4
      %s95 = int_to_ptr.hbm [resolvable:$true] %s94
      %s96 = sshll.u32 [#allocation16], 4
      %s97 = int_to_ptr.vmem [resolvable:$true] %s96
      %102 = dma.hbm_to_vmem [thread:$0]  %s95, 1024, %s97, [#allocation17], 64, 64, 4
    $region25: #{tpu_custom_call.1} parent=1 // pred_fallthru
      _
    // Predicated region
    $region26: #{tpu_custom_call.1} parent=1 // pred_check
      _
    $region27: #{tpu_custom_call.1} parent=1 // pred_check_branch
      %104 = sbr.rel (0) target = $region29
    $region28: #{tpu_custom_call.1} parent=1 // pred_region
      %106 = vsyncadd [#allocation17], 0
      %s107 = sshll.u32 %s8, 4
      %s108 = int_to_ptr.hbm [resolvable:$true] %s107
      %s109 = sshll.u32 [#allocation18], 4
      %s110 = int_to_ptr.vmem [resolvable:$true] %s109
      %115 = dma.hbm_to_vmem [thread:$0]  %s108, 1024, %s110, [#allocation17], 64, 64, 4
    $region29: #{tpu_custom_call.1} parent=1 // pred_fallthru
      _
    // Predicated region
    $region30: #{tpu_custom_call.1} parent=1 // pred_check
      _
    $region31: #{tpu_custom_call.1} parent=1 // pred_check_branch
      %117 = sbr.rel (0) target = $region33
    $region32: #{tpu_custom_call.1} parent=1 // pred_region
      %119 = dma.done [#allocation8], 8192
    $region33: #{tpu_custom_call.1} parent=1 // pred_fallthru
      _
    // Predicated region
    $region34: #{tpu_custom_call.1} parent=1 // pred_check
      _
    $region35: #{tpu_custom_call.1} parent=1 // pred_check_branch
      %121 = sbr.rel (0) target = $region37
    $region36: #{tpu_custom_call.1} parent=1 // pred_region
      %123 = dma.done [#allocation11], 8192
    $region37: #{tpu_custom_call.1} parent=1 // pred_fallthru
      _
    // Predicated region
    $region38: #{tpu_custom_call.1} parent=1 // pred_check
      _
    $region39: #{tpu_custom_call.1} parent=1 // pred_check_branch
      %125 = sbr.rel (0) target = $region41
    $region40: #{tpu_custom_call.1} parent=1 // pred_region
      %127 = dma.done [#allocation11], 2048
    $region41: #{tpu_custom_call.1} parent=1 // pred_fallthru
      _
    // Predicated region
    $region42: #{tpu_custom_call.1} parent=1 // pred_check
      _
    $region43: #{tpu_custom_call.1} parent=1 // pred_check_branch
      %129 = sbr.rel (0) target = $region45
    $region44: #{tpu_custom_call.1} parent=1 // pred_region
      %131 = dma.done [#allocation14], 1024
    $region45: #{tpu_custom_call.1} parent=1 // pred_fallthru
      _
    // Predicated region
    $region46: #{tpu_custom_call.1} parent=1 // pred_check
      _
    $region47: #{tpu_custom_call.1} parent=1 // pred_check_branch
      %133 = sbr.rel (0) target = $region49
    $region48: #{tpu_custom_call.1} parent=1 // pred_region
      %135 = dma.done [#allocation14], 1024
    $region49: #{tpu_custom_call.1} parent=1 // pred_fallthru
      _
    // Predicated region
    $region50: #{tpu_custom_call.1} parent=1 // pred_check
      _
    $region51: #{tpu_custom_call.1} parent=1 // pred_check_branch
      %137 = sbr.rel (0) target = $region53
    $region52: #{tpu_custom_call.1} parent=1 // pred_region
      %139 = dma.done [#allocation17], 1024
    $region53: #{tpu_custom_call.1} parent=1 // pred_fallthru
      _
    // Predicated region
    $region54: #{tpu_custom_call.1} parent=1 // pred_check
      _
    $region55: #{tpu_custom_call.1} parent=1 // pred_check_branch
      %141 = sbr.rel (0) target = $region57
    $region56: #{tpu_custom_call.1} parent=1 // pred_region
      %143 = dma.done [#allocation17], 1024
    $region57: #{tpu_custom_call.1} parent=1 // pred_fallthru
      _
    %v144 = vld [vmem:[#allocation13] sm:$0xf]
    %v145 = vld [vmem:[#allocation13 + $0x4] sm:$0xf]
    %v146 = vld [vmem:[#allocation13 + $0x8] sm:$0xf]
    %v147 = vld [vmem:[#allocation13 + $0xc] sm:$0xf]
    %v148 = vld [vmem:[#allocation13 + $0x10] sm:$0xf]
    %v149 = vld [vmem:[#allocation13 + $0x14] sm:$0xf]
    %v150 = vld [vmem:[#allocation13 + $0x18] sm:$0xf]
    %v151 = vld [vmem:[#allocation13 + $0x1c] sm:$0xf]
    %v152 = vld [vmem:[#allocation13 + $0x20] sm:$0xf]
    %v153 = vld [vmem:[#allocation13 + $0x24] sm:$0xf]
    %v154 = vld [vmem:[#allocation13 + $0x28] sm:$0xf]
    %v155 = vld [vmem:[#allocation13 + $0x2c] sm:$0xf]
    %v156 = vld [vmem:[#allocation13 + $0x30] sm:$0xf]
    %v157 = vld [vmem:[#allocation13 + $0x34] sm:$0xf]
    %v158 = vld [vmem:[#allocation13 + $0x38] sm:$0xf]
    %v159 = vld [vmem:[#allocation13 + $0x3c] sm:$0xf]
    %v160 = vld [vmem:[#allocation15] sm:$0xf]
    %v161 = vld [vmem:[#allocation15 + $0x4] sm:$0xf]
    %v162 = vld [vmem:[#allocation15 + $0x8] sm:$0xf]
    %v163 = vld [vmem:[#allocation15 + $0xc] sm:$0xf]
    %v164 = vld [vmem:[#allocation15 + $0x10] sm:$0xf]
    %v165 = vld [vmem:[#allocation15 + $0x14] sm:$0xf]
    %v166 = vld [vmem:[#allocation15 + $0x18] sm:$0xf]
    %v167 = vld [vmem:[#allocation15 + $0x1c] sm:$0xf]
    %v168 = vld [vmem:[#allocation15 + $0x20] sm:$0xf]
    %v169 = vld [vmem:[#allocation15 + $0x24] sm:$0xf]
    %v170 = vld [vmem:[#allocation15 + $0x28] sm:$0xf]
    %v171 = vld [vmem:[#allocation15 + $0x2c] sm:$0xf]
    %v172 = vld [vmem:[#allocation15 + $0x30] sm:$0xf]
    %v173 = vld [vmem:[#allocation15 + $0x34] sm:$0xf]
    %v174 = vld [vmem:[#allocation15 + $0x38] sm:$0xf]
    %v175 = vld [vmem:[#allocation15 + $0x3c] sm:$0xf]
    %v176 = vld [vmem:[#allocation16] sm:$0xf]
    %v177 = vld [vmem:[#allocation16 + $0x4] sm:$0xf]
    %v178 = vld [vmem:[#allocation16 + $0x8] sm:$0xf]
    %v179 = vld [vmem:[#allocation16 + $0xc] sm:$0xf]
    %v180 = vld [vmem:[#allocation16 + $0x10] sm:$0xf]
    %v181 = vld [vmem:[#allocation16 + $0x14] sm:$0xf]
    %v182 = vld [vmem:[#allocation16 + $0x18] sm:$0xf]
    %v183 = vld [vmem:[#allocation16 + $0x1c] sm:$0xf]
    %v184 = vld [vmem:[#allocation16 + $0x20] sm:$0xf]
    %v185 = vld [vmem:[#allocation16 + $0x24] sm:$0xf]
    %v186 = vld [vmem:[#allocation16 + $0x28] sm:$0xf]
    %v187 = vld [vmem:[#allocation16 + $0x2c] sm:$0xf]
    %v188 = vld [vmem:[#allocation16 + $0x30] sm:$0xf]
    %v189 = vld [vmem:[#allocation16 + $0x34] sm:$0xf]
    %v190 = vld [vmem:[#allocation16 + $0x38] sm:$0xf]
    %v191 = vld [vmem:[#allocation16 + $0x3c] sm:$0xf]
    %v192 = vld [vmem:[#allocation18] sm:$0xf]
    %v193 = vld [vmem:[#allocation18 + $0x4] sm:$0xf]
    %v194 = vld [vmem:[#allocation18 + $0x8] sm:$0xf]
    %v195 = vld [vmem:[#allocation18 + $0xc] sm:$0xf]
    %v196 = vld [vmem:[#allocation18 + $0x10] sm:$0xf]
    %v197 = vld [vmem:[#allocation18 + $0x14] sm:$0xf]
    %v198 = vld [vmem:[#allocation18 + $0x18] sm:$0xf]
    %v199 = vld [vmem:[#allocation18 + $0x1c] sm:$0xf]
    %v200 = vld [vmem:[#allocation18 + $0x20] sm:$0xf]
    %v201 = vld [vmem:[#allocation18 + $0x24] sm:$0xf]
    %v202 = vld [vmem:[#allocation18 + $0x28] sm:$0xf]
    %v203 = vld [vmem:[#allocation18 + $0x2c] sm:$0xf]
    %v204 = vld [vmem:[#allocation18 + $0x30] sm:$0xf]
    %v205 = vld [vmem:[#allocation18 + $0x34] sm:$0xf]
    %v206 = vld [vmem:[#allocation18 + $0x38] sm:$0xf]
    %v207 = vld [vmem:[#allocation18 + $0x3c] sm:$0xf]
    %v208 = vunpack.c.l.bf16 %v160
    %v209 = vunpack.c.l.bf16 %v161
    %v210 = vunpack.c.l.bf16 %v162
    %v211 = vunpack.c.l.bf16 %v163
    %v212 = vunpack.c.l.bf16 %v164
    %v213 = vunpack.c.l.bf16 %v165
    %v214 = vunpack.c.l.bf16 %v166
    %v215 = vunpack.c.l.bf16 %v167
    %v216 = vunpack.c.l.bf16 %v168
    %v217 = vunpack.c.l.bf16 %v169
    %v218 = vunpack.c.l.bf16 %v170
    %v219 = vunpack.c.l.bf16 %v171
    %v220 = vunpack.c.l.bf16 %v172
    %v221 = vunpack.c.l.bf16 %v173
    %v222 = vunpack.c.l.bf16 %v174
    %v223 = vunpack.c.l.bf16 %v175
    %v224 = vsub.f32 0.0, %v208
    %v225 = vsub.f32 0.0, %v209
    %v226 = vsub.f32 0.0, %v210
    %v227 = vsub.f32 0.0, %v211
    %v228 = vsub.f32 0.0, %v212
    %v229 = vsub.f32 0.0, %v213
    %v230 = vsub.f32 0.0, %v214
    %v231 = vsub.f32 0.0, %v215
    %v232 = vsub.f32 0.0, %v216
    %v233 = vsub.f32 0.0, %v217
    %v234 = vsub.f32 0.0, %v218
    %v235 = vsub.f32 0.0, %v219
    %v236 = vsub.f32 0.0, %v220
    %v237 = vsub.f32 0.0, %v221
    %v238 = vsub.f32 0.0, %v222
    %v239 = vsub.f32 0.0, %v223
    %v240 = vpack.c.bf16 %v225, %v224
    %v241 = vpack.c.bf16 %v227, %v226
    %v242 = vpack.c.bf16 %v229, %v228
    %v243 = vpack.c.bf16 %v231, %v230
    %v244 = vpack.c.bf16 %v233, %v232
    %v245 = vpack.c.bf16 %v235, %v234
    %v246 = vpack.c.bf16 %v237, %v236
    %v247 = vpack.c.bf16 %v239, %v238
    %v248 = vunpack.c.l.bf16 %v192
    %v249 = vunpack.c.l.bf16 %v193
    %v250 = vunpack.c.l.bf16 %v194
    %v251 = vunpack.c.l.bf16 %v195
    %v252 = vunpack.c.l.bf16 %v196
    %v253 = vunpack.c.l.bf16 %v197
    %v254 = vunpack.c.l.bf16 %v198
    %v255 = vunpack.c.l.bf16 %v199
    %v256 = vunpack.c.l.bf16 %v200
    %v257 = vunpack.c.l.bf16 %v201
    %v258 = vunpack.c.l.bf16 %v202
    %v259 = vunpack.c.l.bf16 %v203
    %v260 = vunpack.c.l.bf16 %v204
    %v261 = vunpack.c.l.bf16 %v205
    %v262 = vunpack.c.l.bf16 %v206
    %v263 = vunpack.c.l.bf16 %v207
    %v264 = vsub.f32 0.0, %v248
    %v265 = vsub.f32 0.0, %v249
    %v266 = vsub.f32 0.0, %v250
    %v267 = vsub.f32 0.0, %v251
    %v268 = vsub.f32 0.0, %v252
    %v269 = vsub.f32 0.0, %v253
    %v270 = vsub.f32 0.0, %v254
    %v271 = vsub.f32 0.0, %v255
    %v272 = vsub.f32 0.0, %v256
    %v273 = vsub.f32 0.0, %v257
    %v274 = vsub.f32 0.0, %v258
    %v275 = vsub.f32 0.0, %v259
    %v276 = vsub.f32 0.0, %v260
    %v277 = vsub.f32 0.0, %v261
    %v278 = vsub.f32 0.0, %v262
    %v279 = vsub.f32 0.0, %v263
    %v280 = vpack.c.bf16 %v265, %v264
    %v281 = vpack.c.bf16 %v267, %v266
    %v282 = vpack.c.bf16 %v269, %v268
    %v283 = vpack.c.bf16 %v271, %v270
    %v284 = vpack.c.bf16 %v273, %v272
    %v285 = vpack.c.bf16 %v275, %v274
    %v286 = vpack.c.bf16 %v277, %v276
    %v287 = vpack.c.bf16 %v279, %v278
    // Predicated region
    $region58: #{tpu_custom_call.1} parent=1 // pred_check
      _
    $region59: #{tpu_custom_call.1} parent=1 // pred_check_branch
      %289 = sbr.rel target = $region61
    $region60: #{tpu_custom_call.1} parent=1 // pred_region
      %290 = sst [smem:[#allocation27]] [#allocation26]
      %291 = sst [smem:[#allocation28]] [#allocation25]
    $region61: #{tpu_custom_call.1} parent=1 // pred_fallthru
      _
    %293 = shalt.err (0)
    %s295 = sshll.u32 %s0, 4
    %s296 = int_to_ptr.hbm [resolvable:$true] %s295
    %s297 = sshll.u32 [#allocation2], 4
    %s298 = int_to_ptr.vmem [resolvable:$true] %s297
    %300 = dma.hbm_to_vmem [thread:$0]  %s296, 2048, %s298, [#allocation4]
    %s301 = scalar_lea.sflag [#allocation4], 2
    // Predicated region
    $region62: #{tpu_custom_call.1} parent=1 // pred_check
      _
    $region63: #{tpu_custom_call.1} parent=1 // pred_check_branch
      %303 = sbr.rel target = $region65
    $region64: #{tpu_custom_call.1} parent=1 // pred_region
      %304 = sst [smem:[#allocation27]] [#allocation30]
      %305 = sst [smem:[#allocation28]] [#allocation29]
    $region65: #{tpu_custom_call.1} parent=1 // pred_fallthru
      _
    %307 = shalt.err (0)
    %s309 = sshll.u32 %s1, 4
    %s310 = int_to_ptr.hbm [resolvable:$true] %s309
    %s311 = sshll.u32 [#allocation3], 4
    %s312 = int_to_ptr.vmem [resolvable:$true] %s311
    %314 = dma.hbm_to_vmem [thread:$0]  %s310, 2048, %s312, %s301
    %315 = vst [vmem:[#allocation19] sm:$0xff] 0.0
    %316 = vst [vmem:[#allocation19 + $0x8] sm:$0xff] 0.0
    %317 = vst [vmem:[#allocation19 + $0x10] sm:$0xff] 0.0
    %318 = vst [vmem:[#allocation19 + $0x18] sm:$0xff] 0.0
    %319 = vst [vmem:[#allocation19 + $0x20] sm:$0xff] 0.0
    %320 = vst [vmem:[#allocation19 + $0x28] sm:$0xff] 0.0
    %321 = vst [vmem:[#allocation19 + $0x30] sm:$0xff] 0.0
    %322 = vst [vmem:[#allocation19 + $0x38] sm:$0xff] 0.0
    %323 = vst [vmem:[#allocation19 + $0x40] sm:$0xff] 0.0
    %324 = vst [vmem:[#allocation19 + $0x48] sm:$0xff] 0.0
    %325 = vst [vmem:[#allocation19 + $0x50] sm:$0xff] 0.0
    %326 = vst [vmem:[#allocation19 + $0x58] sm:$0xff] 0.0
    %327 = vst [vmem:[#allocation19 + $0x60] sm:$0xff] 0.0
    %328 = vst [vmem:[#allocation19 + $0x68] sm:$0xff] 0.0
    %329 = vst [vmem:[#allocation19 + $0x70] sm:$0xff] 0.0
    %330 = vst [vmem:[#allocation19 + $0x78] sm:$0xff] 0.0
    %331 = vst [vmem:[#allocation20] sm:$0xff] 0.0
    %332 = vst [vmem:[#allocation20 + $0x8] sm:$0xff] 0.0
    %333 = vst [vmem:[#allocation20 + $0x10] sm:$0xff] 0.0
    %334 = vst [vmem:[#allocation20 + $0x18] sm:$0xff] 0.0
    %335 = vst [vmem:[#allocation20 + $0x20] sm:$0xff] 0.0
    %336 = vst [vmem:[#allocation20 + $0x28] sm:$0xff] 0.0
    %337 = vst [vmem:[#allocation20 + $0x30] sm:$0xff] 0.0
    %338 = vst [vmem:[#allocation20 + $0x38] sm:$0xff] 0.0
    %339 = vst [vmem:[#allocation20 + $0x40] sm:$0xff] 0.0
    %340 = vst [vmem:[#allocation20 + $0x48] sm:$0xff] 0.0
    %341 = vst [vmem:[#allocation20 + $0x50] sm:$0xff] 0.0
    %342 = vst [vmem:[#allocation20 + $0x58] sm:$0xff] 0.0
    %343 = vst [vmem:[#allocation20 + $0x60] sm:$0xff] 0.0
    %344 = vst [vmem:[#allocation20 + $0x68] sm:$0xff] 0.0
    %345 = vst [vmem:[#allocation20 + $0x70] sm:$0xff] 0.0
    %346 = vst [vmem:[#allocation20 + $0x78] sm:$0xff] 0.0
    loop: start=0, step=1, limit=4
    $region66: #{tpu_custom_call.1} parent=1 // loop_pre_header
      _
    $region67: #{tpu_custom_call.1} parent=1 // loop_header
      %s348 = sphi 0, %s352
      %p349 = scmp.ge.s32.totalorder %s348, 4
    $region68: #{tpu_custom_call.1} parent=1 // loop_header_branch
      %351 = sbr.rel (%p349) target = $region72
    $region69: #{tpu_custom_call.1} parent=1 // loop_body
      %p353 = scmp.lt.s32.totalorder %s348, 0
      %s354 = ssub.s32 0, %s348
      %s355 = scalar_select %p353, %s354, %s348
      %s356 = sand.u32 %s355, 1
      %s357 = ssub.s32 0, %s356
      %s358 = scalar_select %p353, %s357, %s356
      %p359 = scmp.ne.s32.totalorder %s358, 0
      %p360 = scmp.lt.s32.totalorder %s358, 0
      %p361 = pnand %p360, %p359
      %p362 = pneg %p361
      %s363 = sadd.s32 %s358, 2
      %s364 = scalar_select %p362, %s363, %s358
      %s365 = smul.u32 %s364, 128
      %s366 = scalar_lea.vmem [#allocation2], %s365
      %s367 = scalar_lea.sflag [#allocation4], %s364
      %s368 = smul.u32 128, 1
      %s369 = sshll.u32 %s368, 4
      %370 = dma.done %s367, %s369
      %s371 = scalar_lea.vmem [#allocation3], %s365
      %s372 = sadd.s32 %s364, 2
      %s373 = scalar_lea.sflag [#allocation4], %s372
      %s374 = sshll.u32 %s368, 4
      %375 = dma.done %s373, %s374
      %s376 = sadd.s32 %s348, 1
      %p377 = scmp.lt.s32.totalorder %s376, 4
      // Predicated region
      $region73: #{tpu_custom_call.1} parent=69 // pred_check
        %p378 = pneg %p377
      $region74: #{tpu_custom_call.1} parent=69 // pred_check_branch
        %380 = sbr.rel (%p378) target = $region76
      $region75: #{tpu_custom_call.1} parent=69 // pred_region
        %s381 = ssub.s32 1, %s364
        %s382 = smul.u32 %s376, 128
        %s383 = scalar_lea.hbm %s0, %s382
        %s384 = smul.u32 %s381, 128
        %s385 = scalar_lea.vmem [#allocation2], %s384
        %s386 = scalar_lea.sflag [#allocation4], %s381
        // Predicated region
        $region77: #{tpu_custom_call.1} parent=75 // pred_check
          _
        $region78: #{tpu_custom_call.1} parent=75 // pred_check_branch
          %388 = sbr.rel target = $region80
        $region79: #{tpu_custom_call.1} parent=75 // pred_region
          %389 = sst [smem:[#allocation27]] [#allocation32]
          %390 = sst [smem:[#allocation28]] [#allocation31]
        $region80: #{tpu_custom_call.1} parent=75 // pred_fallthru
          _
        %392 = shalt.err (0)
        %s394 = sshll.u32 %s383, 4
        %s395 = int_to_ptr.hbm [resolvable:$true] %s394
        %s396 = sshll.u32 %s385, 4
        %s397 = int_to_ptr.vmem [resolvable:$true] %s396
        %399 = dma.hbm_to_vmem [thread:$0]  %s395, 2048, %s397, %s386
        %s400 = scalar_lea.hbm %s1, %s382
        %s401 = scalar_lea.vmem [#allocation3], %s384
        %s402 = sadd.s32 %s381, 2
        %s403 = scalar_lea.sflag [#allocation4], %s402
        // Predicated region
        $region81: #{tpu_custom_call.1} parent=75 // pred_check
          _
        $region82: #{tpu_custom_call.1} parent=75 // pred_check_branch
          %405 = sbr.rel target = $region84
        $region83: #{tpu_custom_call.1} parent=75 // pred_region
          %406 = sst [smem:[#allocation27]] [#allocation34]
          %407 = sst [smem:[#allocation28]] [#allocation33]
        $region84: #{tpu_custom_call.1} parent=75 // pred_fallthru
          _
        %409 = shalt.err (0)
        %s411 = sshll.u32 %s400, 4
        %s412 = int_to_ptr.hbm [resolvable:$true] %s411
        %s413 = sshll.u32 %s401, 4
        %s414 = int_to_ptr.vmem [resolvable:$true] %s413
        %416 = dma.hbm_to_vmem [thread:$0]  %s412, 2048, %s414, %s403
      $region76: #{tpu_custom_call.1} parent=69 // pred_fallthru
        _
      %v417 = vld [vmem:[%s366] sm:$0xff]
      %v418 = vld [vmem:[%s366 + $0x8] sm:$0xff]
      %v419 = vld [vmem:[%s366 + $0x10] sm:$0xff]
      %v420 = vld [vmem:[%s366 + $0x18] sm:$0xff]
      %v421 = vld [vmem:[%s366 + $0x20] sm:$0xff]
      %v422 = vld [vmem:[%s366 + $0x28] sm:$0xff]
      %v423 = vld [vmem:[%s366 + $0x30] sm:$0xff]
      %v424 = vld [vmem:[%s366 + $0x38] sm:$0xff]
      %v425 = vld [vmem:[%s366 + $0x40] sm:$0xff]
      %v426 = vld [vmem:[%s366 + $0x48] sm:$0xff]
      %v427 = vld [vmem:[%s366 + $0x50] sm:$0xff]
      %v428 = vld [vmem:[%s366 + $0x58] sm:$0xff]
      %v429 = vld [vmem:[%s366 + $0x60] sm:$0xff]
      %v430 = vld [vmem:[%s366 + $0x68] sm:$0xff]
      %v431 = vld [vmem:[%s366 + $0x70] sm:$0xff]
      %v432 = vld [vmem:[%s366 + $0x78] sm:$0xff]
      %v433 = vld [vmem:[%s371] sm:$0xff]
      %v434 = vld [vmem:[%s371 + $0x8] sm:$0xff]
      %v435 = vld [vmem:[%s371 + $0x10] sm:$0xff]
      %v436 = vld [vmem:[%s371 + $0x18] sm:$0xff]
      %v437 = vld [vmem:[%s371 + $0x20] sm:$0xff]
      %v438 = vld [vmem:[%s371 + $0x28] sm:$0xff]
      %v439 = vld [vmem:[%s371 + $0x30] sm:$0xff]
      %v440 = vld [vmem:[%s371 + $0x38] sm:$0xff]
      %v441 = vld [vmem:[%s371 + $0x40] sm:$0xff]
      %v442 = vld [vmem:[%s371 + $0x48] sm:$0xff]
      %v443 = vld [vmem:[%s371 + $0x50] sm:$0xff]
      %v444 = vld [vmem:[%s371 + $0x58] sm:$0xff]
      %v445 = vld [vmem:[%s371 + $0x60] sm:$0xff]
      %v446 = vld [vmem:[%s371 + $0x68] sm:$0xff]
      %v447 = vld [vmem:[%s371 + $0x70] sm:$0xff]
      %v448 = vld [vmem:[%s371 + $0x78] sm:$0xff]
      %v449 = vpack.c.bf16 %v418, %v417
      %v450 = vpack.c.bf16 %v420, %v419
      %v451 = vpack.c.bf16 %v422, %v421
      %v452 = vpack.c.bf16 %v424, %v423
      %v453 = vpack.c.bf16 %v426, %v425
      %v454 = vpack.c.bf16 %v428, %v427
      %v455 = vpack.c.bf16 %v430, %v429
      %v456 = vpack.c.bf16 %v432, %v431
      %v457 = vpack.c.bf16 %v434, %v433
      %v458 = vpack.c.bf16 %v436, %v435
      %v459 = vpack.c.bf16 %v438, %v437
      %v460 = vpack.c.bf16 %v440, %v439
      %v461 = vpack.c.bf16 %v442, %v441
      %v462 = vpack.c.bf16 %v444, %v443
      %v463 = vpack.c.bf16 %v446, %v445
      %v464 = vpack.c.bf16 %v448, %v447
      %v481 = vunpack.c.l.b16 %v144
      %v482 = vunpack.c.l.b16 %v145
      %v483 = vunpack.c.l.b16 %v146
      %v484 = vunpack.c.l.b16 %v147
      %v485 = vunpack.c.l.b16 %v148
      %v486 = vunpack.c.l.b16 %v149
      %v487 = vunpack.c.l.b16 %v150
      %v488 = vunpack.c.l.b16 %v151
      %v489 = vunpack.c.l.b16 %v152
      %v490 = vunpack.c.l.b16 %v153
      %v491 = vunpack.c.l.b16 %v154
      %v492 = vunpack.c.l.b16 %v155
      %v493 = vunpack.c.l.b16 %v156
      %v494 = vunpack.c.l.b16 %v157
      %v495 = vunpack.c.l.b16 %v158
      %v496 = vunpack.c.l.b16 %v159
      %v497 = vpack.c.b16 %v482, %v481
      %v498 = vpack.c.b16 %v484, %v483
      %v499 = vpack.c.b16 %v486, %v485
      %v500 = vpack.c.b16 %v488, %v487
      %v501 = vpack.c.b16 %v490, %v489
      %v502 = vpack.c.b16 %v492, %v491
      %v503 = vpack.c.b16 %v494, %v493
      %v504 = vpack.c.b16 %v496, %v495
      %513 = vmatpush.bf16.msra.mxu0 %v456
      %514 = vmatpush.bf16.msra.mxu0 %v455
      %515 = vmatpush.bf16.msra.mxu0 %v454
      %516 = vmatpush.bf16.msra.mxu0 %v453
      %517 = vmatpush.bf16.msra.mxu0 %v452
      %518 = vmatpush.bf16.msra.mxu0 %v451
      %519 = vmatpush.bf16.msra.mxu0 %v450
      %520 = vmatpush.bf16.msra.mxu0 %v449
      %521 = vmatmul.bf16.gmra.mxu0 %v497
      %v522 = vpop.f32.mrf.mxu0
      %v523 = vadd.f32 0.0, %v522
      %v524 = vpop.f32.mrf.mxu0
      %v525 = vadd.f32 0.0, %v524
      %526 = vmatmul.bf16.gmra.mxu0 %v498
      %v527 = vpop.f32.mrf.mxu0
      %v528 = vadd.f32 0.0, %v527
      %v529 = vpop.f32.mrf.mxu0
      %v530 = vadd.f32 0.0, %v529
      %531 = vmatmul.bf16.gmra.mxu0 %v499
      %v532 = vpop.f32.mrf.mxu0
      %v533 = vadd.f32 0.0, %v532
      %v534 = vpop.f32.mrf.mxu0
      %v535 = vadd.f32 0.0, %v534
      %536 = vmatmul.bf16.gmra.mxu0 %v500
      %v537 = vpop.f32.mrf.mxu0
      %v538 = vadd.f32 0.0, %v537
      %v539 = vpop.f32.mrf.mxu0
      %v540 = vadd.f32 0.0, %v539
      %541 = vmatmul.bf16.gmra.mxu0 %v501
      %v542 = vpop.f32.mrf.mxu0
      %v543 = vadd.f32 0.0, %v542
      %v544 = vpop.f32.mrf.mxu0
      %v545 = vadd.f32 0.0, %v544
      %546 = vmatmul.bf16.gmra.mxu0 %v502
      %v547 = vpop.f32.mrf.mxu0
      %v548 = vadd.f32 0.0, %v547
      %v549 = vpop.f32.mrf.mxu0
      %v550 = vadd.f32 0.0, %v549
      %551 = vmatmul.bf16.gmra.mxu0 %v503
      %v552 = vpop.f32.mrf.mxu0
      %v553 = vadd.f32 0.0, %v552
      %v554 = vpop.f32.mrf.mxu0
      %v555 = vadd.f32 0.0, %v554
      %556 = vmatmul.bf16.gmra.mxu0 %v504
      %v557 = vpop.f32.mrf.mxu0
      %v558 = vadd.f32 0.0, %v557
      %v559 = vpop.f32.mrf.mxu0
      %v560 = vadd.f32 0.0, %v559
      %561 = vdwg.mxu0
      %v578 = vunpack.c.l.b16 %v160
      %v579 = vunpack.c.l.b16 %v161
      %v580 = vunpack.c.l.b16 %v162
      %v581 = vunpack.c.l.b16 %v163
      %v582 = vunpack.c.l.b16 %v164
      %v583 = vunpack.c.l.b16 %v165
      %v584 = vunpack.c.l.b16 %v166
      %v585 = vunpack.c.l.b16 %v167
      %v586 = vunpack.c.l.b16 %v168
      %v587 = vunpack.c.l.b16 %v169
      %v588 = vunpack.c.l.b16 %v170
      %v589 = vunpack.c.l.b16 %v171
      %v590 = vunpack.c.l.b16 %v172
      %v591 = vunpack.c.l.b16 %v173
      %v592 = vunpack.c.l.b16 %v174
      %v593 = vunpack.c.l.b16 %v175
      %v594 = vpack.c.b16 %v579, %v578
      %v595 = vpack.c.b16 %v581, %v580
      %v596 = vpack.c.b16 %v583, %v582
      %v597 = vpack.c.b16 %v585, %v584
      %v598 = vpack.c.b16 %v587, %v586
      %v599 = vpack.c.b16 %v589, %v588
      %v600 = vpack.c.b16 %v591, %v590
      %v601 = vpack.c.b16 %v593, %v592
      %610 = vmatpush.bf16.msra.mxu0 %v464
      %611 = vmatpush.bf16.msra.mxu0 %v463
      %612 = vmatpush.bf16.msra.mxu0 %v462
      %613 = vmatpush.bf16.msra.mxu0 %v461
      %614 = vmatpush.bf16.msra.mxu0 %v460
      %615 = vmatpush.bf16.msra.mxu0 %v459
      %616 = vmatpush.bf16.msra.mxu0 %v458
      %617 = vmatpush.bf16.msra.mxu0 %v457
      %618 = vmatmul.bf16.gmra.mxu0 %v594
      %v619 = vpop.f32.mrf.mxu0
      %v620 = vadd.f32 0.0, %v619
      %v621 = vpop.f32.mrf.mxu0
      %v622 = vadd.f32 0.0, %v621
      %623 = vmatmul.bf16.gmra.mxu0 %v595
      %v624 = vpop.f32.mrf.mxu0
      %v625 = vadd.f32 0.0, %v624
      %v626 = vpop.f32.mrf.mxu0
      %v627 = vadd.f32 0.0, %v626
      %628 = vmatmul.bf16.gmra.mxu0 %v596
      %v629 = vpop.f32.mrf.mxu0
      %v630 = vadd.f32 0.0, %v629
      %v631 = vpop.f32.mrf.mxu0
      %v632 = vadd.f32 0.0, %v631
      %633 = vmatmul.bf16.gmra.mxu0 %v597
      %v634 = vpop.f32.mrf.mxu0
      %v635 = vadd.f32 0.0, %v634
      %v636 = vpop.f32.mrf.mxu0
      %v637 = vadd.f32 0.0, %v636
      %638 = vmatmul.bf16.gmra.mxu0 %v598
      %v639 = vpop.f32.mrf.mxu0
      %v640 = vadd.f32 0.0, %v639
      %v641 = vpop.f32.mrf.mxu0
      %v642 = vadd.f32 0.0, %v641
      %643 = vmatmul.bf16.gmra.mxu0 %v599
      %v644 = vpop.f32.mrf.mxu0
      %v645 = vadd.f32 0.0, %v644
      %v646 = vpop.f32.mrf.mxu0
      %v647 = vadd.f32 0.0, %v646
      %648 = vmatmul.bf16.gmra.mxu0 %v600
      %v649 = vpop.f32.mrf.mxu0
      %v650 = vadd.f32 0.0, %v649
      %v651 = vpop.f32.mrf.mxu0
      %v652 = vadd.f32 0.0, %v651
      %653 = vmatmul.bf16.gmra.mxu0 %v601
      %v654 = vpop.f32.mrf.mxu0
      %v655 = vadd.f32 0.0, %v654
      %v656 = vpop.f32.mrf.mxu0
      %v657 = vadd.f32 0.0, %v656
      %658 = vdwg.mxu0
      %v659 = vsub.f32 %v523, %v620
      %v660 = vsub.f32 %v525, %v622
      %v661 = vsub.f32 %v528, %v625
      %v662 = vsub.f32 %v530, %v627
      %v663 = vsub.f32 %v533, %v630
      %v664 = vsub.f32 %v535, %v632
      %v665 = vsub.f32 %v538, %v635
      %v666 = vsub.f32 %v540, %v637
      %v667 = vsub.f32 %v543, %v640
      %v668 = vsub.f32 %v545, %v642
      %v669 = vsub.f32 %v548, %v645
      %v670 = vsub.f32 %v550, %v647
      %v671 = vsub.f32 %v553, %v650
      %v672 = vsub.f32 %v555, %v652
      %v673 = vsub.f32 %v558, %v655
      %v674 = vsub.f32 %v560, %v657
      %675 = vmatpush.bf16.msra.mxu0 %v456
      %676 = vmatpush.bf16.msra.mxu0 %v455
      %677 = vmatpush.bf16.msra.mxu0 %v454
      %678 = vmatpush.bf16.msra.mxu0 %v453
      %679 = vmatpush.bf16.msra.mxu0 %v452
      %680 = vmatpush.bf16.msra.mxu0 %v451
      %681 = vmatpush.bf16.msra.mxu0 %v450
      %682 = vmatpush.bf16.msra.mxu0 %v449
      %683 = vmatmul.bf16.gmra.mxu0 %v594
      %v684 = vpop.f32.mrf.mxu0
      %v685 = vadd.f32 0.0, %v684
      %v686 = vpop.f32.mrf.mxu0
      %v687 = vadd.f32 0.0, %v686
      %688 = vmatmul.bf16.gmra.mxu0 %v595
      %v689 = vpop.f32.mrf.mxu0
      %v690 = vadd.f32 0.0, %v689
      %v691 = vpop.f32.mrf.mxu0
      %v692 = vadd.f32 0.0, %v691
      %693 = vmatmul.bf16.gmra.mxu0 %v596
      %v694 = vpop.f32.mrf.mxu0
      %v695 = vadd.f32 0.0, %v694
      %v696 = vpop.f32.mrf.mxu0
      %v697 = vadd.f32 0.0, %v696
      %698 = vmatmul.bf16.gmra.mxu0 %v597
      %v699 = vpop.f32.mrf.mxu0
      %v700 = vadd.f32 0.0, %v699
      %v701 = vpop.f32.mrf.mxu0
      %v702 = vadd.f32 0.0, %v701
      %703 = vmatmul.bf16.gmra.mxu0 %v598
      %v704 = vpop.f32.mrf.mxu0
      %v705 = vadd.f32 0.0, %v704
      %v706 = vpop.f32.mrf.mxu0
      %v707 = vadd.f32 0.0, %v706
      %708 = vmatmul.bf16.gmra.mxu0 %v599
      %v709 = vpop.f32.mrf.mxu0
      %v710 = vadd.f32 0.0, %v709
      %v711 = vpop.f32.mrf.mxu0
      %v712 = vadd.f32 0.0, %v711
      %713 = vmatmul.bf16.gmra.mxu0 %v600
      %v714 = vpop.f32.mrf.mxu0
      %v715 = vadd.f32 0.0, %v714
      %v716 = vpop.f32.mrf.mxu0
      %v717 = vadd.f32 0.0, %v716
      %718 = vmatmul.bf16.gmra.mxu0 %v601
      %v719 = vpop.f32.mrf.mxu0
      %v720 = vadd.f32 0.0, %v719
      %v721 = vpop.f32.mrf.mxu0
      %v722 = vadd.f32 0.0, %v721
      %723 = vdwg.mxu0
      %724 = vmatpush.bf16.msra.mxu0 %v464
      %725 = vmatpush.bf16.msra.mxu0 %v463
      %726 = vmatpush.bf16.msra.mxu0 %v462
      %727 = vmatpush.bf16.msra.mxu0 %v461
      %728 = vmatpush.bf16.msra.mxu0 %v460
      %729 = vmatpush.bf16.msra.mxu0 %v459
      %730 = vmatpush.bf16.msra.mxu0 %v458
      %731 = vmatpush.bf16.msra.mxu0 %v457
      %732 = vmatmul.bf16.gmra.mxu0 %v497
      %v733 = vpop.f32.mrf.mxu0
      %v734 = vadd.f32 %v685, %v733
      %v735 = vpop.f32.mrf.mxu0
      %v736 = vadd.f32 %v687, %v735
      %737 = vmatmul.bf16.gmra.mxu0 %v498
      %v738 = vpop.f32.mrf.mxu0
      %v739 = vadd.f32 %v690, %v738
      %v740 = vpop.f32.mrf.mxu0
      %v741 = vadd.f32 %v692, %v740
      %742 = vmatmul.bf16.gmra.mxu0 %v499
      %v743 = vpop.f32.mrf.mxu0
      %v744 = vadd.f32 %v695, %v743
      %v745 = vpop.f32.mrf.mxu0
      %v746 = vadd.f32 %v697, %v745
      %747 = vmatmul.bf16.gmra.mxu0 %v500
      %v748 = vpop.f32.mrf.mxu0
      %v749 = vadd.f32 %v700, %v748
      %v750 = vpop.f32.mrf.mxu0
      %v751 = vadd.f32 %v702, %v750
      %752 = vmatmul.bf16.gmra.mxu0 %v501
      %v753 = vpop.f32.mrf.mxu0
      %v754 = vadd.f32 %v705, %v753
      %v755 = vpop.f32.mrf.mxu0
      %v756 = vadd.f32 %v707, %v755
      %757 = vmatmul.bf16.gmra.mxu0 %v502
      %v758 = vpop.f32.mrf.mxu0
      %v759 = vadd.f32 %v710, %v758
      %v760 = vpop.f32.mrf.mxu0
      %v761 = vadd.f32 %v712, %v760
      %762 = vmatmul.bf16.gmra.mxu0 %v503
      %v763 = vpop.f32.mrf.mxu0
      %v764 = vadd.f32 %v715, %v763
      %v765 = vpop.f32.mrf.mxu0
      %v766 = vadd.f32 %v717, %v765
      %767 = vmatmul.bf16.gmra.mxu0 %v504
      %v768 = vpop.f32.mrf.mxu0
      %v769 = vadd.f32 %v720, %v768
      %v770 = vpop.f32.mrf.mxu0
      %v771 = vadd.f32 %v722, %v770
      %772 = vdwg.mxu0
      %v773 = vpack.c.bf16 %v660, %v659
      %v774 = vpack.c.bf16 %v662, %v661
      %v775 = vpack.c.bf16 %v664, %v663
      %v776 = vpack.c.bf16 %v666, %v665
      %v777 = vpack.c.bf16 %v668, %v667
      %v778 = vpack.c.bf16 %v670, %v669
      %v779 = vpack.c.bf16 %v672, %v671
      %v780 = vpack.c.bf16 %v674, %v673
      %v781 = vpack.c.bf16 %v736, %v734
      %v782 = vpack.c.bf16 %v741, %v739
      %v783 = vpack.c.bf16 %v746, %v744
      %v784 = vpack.c.bf16 %v751, %v749
      %v785 = vpack.c.bf16 %v756, %v754
      %v786 = vpack.c.bf16 %v761, %v759
      %v787 = vpack.c.bf16 %v766, %v764
      %v788 = vpack.c.bf16 %v771, %v769
      %v805 = vunpack.c.l.b16 %v176
      %v806 = vunpack.c.l.b16 %v177
      %v807 = vunpack.c.l.b16 %v178
      %v808 = vunpack.c.l.b16 %v179
      %v809 = vunpack.c.l.b16 %v180
      %v810 = vunpack.c.l.b16 %v181
      %v811 = vunpack.c.l.b16 %v182
      %v812 = vunpack.c.l.b16 %v183
      %v813 = vunpack.c.l.b16 %v184
      %v814 = vunpack.c.l.b16 %v185
      %v815 = vunpack.c.l.b16 %v186
      %v816 = vunpack.c.l.b16 %v187
      %v817 = vunpack.c.l.b16 %v188
      %v818 = vunpack.c.l.b16 %v189
      %v819 = vunpack.c.l.b16 %v190
      %v820 = vunpack.c.l.b16 %v191
      %v821 = vpack.c.b16 %v806, %v805
      %v822 = vpack.c.b16 %v808, %v807
      %v823 = vpack.c.b16 %v810, %v809
      %v824 = vpack.c.b16 %v812, %v811
      %v825 = vpack.c.b16 %v814, %v813
      %v826 = vpack.c.b16 %v816, %v815
      %v827 = vpack.c.b16 %v818, %v817
      %v828 = vpack.c.b16 %v820, %v819
      %837 = vmatpush.bf16.msra.mxu0 %v828
      %838 = vmatpush.bf16.msra.mxu0 %v827
      %839 = vmatpush.bf16.msra.mxu0 %v826
      %840 = vmatpush.bf16.msra.mxu0 %v825
      %841 = vmatpush.bf16.msra.mxu0 %v824
      %842 = vmatpush.bf16.msra.mxu0 %v823
      %843 = vmatpush.bf16.msra.mxu0 %v822
      %844 = vmatpush.bf16.msra.mxu0 %v821
      %845 = vmatmul.bf16.gmra.mxu0 %v773
      %v846 = vpop.f32.mrf.mxu0
      %v847 = vadd.f32 0.0, %v846
      %v848 = vpop.f32.mrf.mxu0
      %v849 = vadd.f32 0.0, %v848
      %850 = vmatmul.bf16.gmra.mxu0 %v774
      %v851 = vpop.f32.mrf.mxu0
      %v852 = vadd.f32 0.0, %v851
      %v853 = vpop.f32.mrf.mxu0
      %v854 = vadd.f32 0.0, %v853
      %855 = vmatmul.bf16.gmra.mxu0 %v775
      %v856 = vpop.f32.mrf.mxu0
      %v857 = vadd.f32 0.0, %v856
      %v858 = vpop.f32.mrf.mxu0
      %v859 = vadd.f32 0.0, %v858
      %860 = vmatmul.bf16.gmra.mxu0 %v776
      %v861 = vpop.f32.mrf.mxu0
      %v862 = vadd.f32 0.0, %v861
      %v863 = vpop.f32.mrf.mxu0
      %v864 = vadd.f32 0.0, %v863
      %865 = vmatmul.bf16.gmra.mxu0 %v777
      %v866 = vpop.f32.mrf.mxu0
      %v867 = vadd.f32 0.0, %v866
      %v868 = vpop.f32.mrf.mxu0
      %v869 = vadd.f32 0.0, %v868
      %870 = vmatmul.bf16.gmra.mxu0 %v778
      %v871 = vpop.f32.mrf.mxu0
      %v872 = vadd.f32 0.0, %v871
      %v873 = vpop.f32.mrf.mxu0
      %v874 = vadd.f32 0.0, %v873
      %875 = vmatmul.bf16.gmra.mxu0 %v779
      %v876 = vpop.f32.mrf.mxu0
      %v877 = vadd.f32 0.0, %v876
      %v878 = vpop.f32.mrf.mxu0
      %v879 = vadd.f32 0.0, %v878
      %880 = vmatmul.bf16.gmra.mxu0 %v780
      %v881 = vpop.f32.mrf.mxu0
      %v882 = vadd.f32 0.0, %v881
      %v883 = vpop.f32.mrf.mxu0
      %v884 = vadd.f32 0.0, %v883
      %885 = vdwg.mxu0
      %v902 = vunpack.c.l.b16 %v192
      %v903 = vunpack.c.l.b16 %v193
      %v904 = vunpack.c.l.b16 %v194
      %v905 = vunpack.c.l.b16 %v195
      %v906 = vunpack.c.l.b16 %v196
      %v907 = vunpack.c.l.b16 %v197
      %v908 = vunpack.c.l.b16 %v198
      %v909 = vunpack.c.l.b16 %v199
      %v910 = vunpack.c.l.b16 %v200
      %v911 = vunpack.c.l.b16 %v201
      %v912 = vunpack.c.l.b16 %v202
      %v913 = vunpack.c.l.b16 %v203
      %v914 = vunpack.c.l.b16 %v204
      %v915 = vunpack.c.l.b16 %v205
      %v916 = vunpack.c.l.b16 %v206
      %v917 = vunpack.c.l.b16 %v207
      %v918 = vpack.c.b16 %v903, %v902
      %v919 = vpack.c.b16 %v905, %v904
      %v920 = vpack.c.b16 %v907, %v906
      %v921 = vpack.c.b16 %v909, %v908
      %v922 = vpack.c.b16 %v911, %v910
      %v923 = vpack.c.b16 %v913, %v912
      %v924 = vpack.c.b16 %v915, %v914
      %v925 = vpack.c.b16 %v917, %v916
      %934 = vmatpush.bf16.msra.mxu0 %v925
      %935 = vmatpush.bf16.msra.mxu0 %v924
      %936 = vmatpush.bf16.msra.mxu0 %v923
      %937 = vmatpush.bf16.msra.mxu0 %v922
      %938 = vmatpush.bf16.msra.mxu0 %v921
      %939 = vmatpush.bf16.msra.mxu0 %v920
      %940 = vmatpush.bf16.msra.mxu0 %v919
      %941 = vmatpush.bf16.msra.mxu0 %v918
      %942 = vmatmul.bf16.gmra.mxu0 %v781
      %v943 = vpop.f32.mrf.mxu0
      %v944 = vadd.f32 0.0, %v943
      %v945 = vpop.f32.mrf.mxu0
      %v946 = vadd.f32 0.0, %v945
      %947 = vmatmul.bf16.gmra.mxu0 %v782
      %v948 = vpop.f32.mrf.mxu0
      %v949 = vadd.f32 0.0, %v948
      %v950 = vpop.f32.mrf.mxu0
      %v951 = vadd.f32 0.0, %v950
      %952 = vmatmul.bf16.gmra.mxu0 %v783
      %v953 = vpop.f32.mrf.mxu0
      %v954 = vadd.f32 0.0, %v953
      %v955 = vpop.f32.mrf.mxu0
      %v956 = vadd.f32 0.0, %v955
      %957 = vmatmul.bf16.gmra.mxu0 %v784
      %v958 = vpop.f32.mrf.mxu0
      %v959 = vadd.f32 0.0, %v958
      %v960 = vpop.f32.mrf.mxu0
      %v961 = vadd.f32 0.0, %v960
      %962 = vmatmul.bf16.gmra.mxu0 %v785
      %v963 = vpop.f32.mrf.mxu0
      %v964 = vadd.f32 0.0, %v963
      %v965 = vpop.f32.mrf.mxu0
      %v966 = vadd.f32 0.0, %v965
      %967 = vmatmul.bf16.gmra.mxu0 %v786
      %v968 = vpop.f32.mrf.mxu0
      %v969 = vadd.f32 0.0, %v968
      %v970 = vpop.f32.mrf.mxu0
      %v971 = vadd.f32 0.0, %v970
      %972 = vmatmul.bf16.gmra.mxu0 %v787
      %v973 = vpop.f32.mrf.mxu0
      %v974 = vadd.f32 0.0, %v973
      %v975 = vpop.f32.mrf.mxu0
      %v976 = vadd.f32 0.0, %v975
      %977 = vmatmul.bf16.gmra.mxu0 %v788
      %v978 = vpop.f32.mrf.mxu0
      %v979 = vadd.f32 0.0, %v978
      %v980 = vpop.f32.mrf.mxu0
      %v981 = vadd.f32 0.0, %v980
      %982 = vdwg.mxu0
      %v983 = vsub.f32 %v847, %v944
      %v984 = vsub.f32 %v849, %v946
      %v985 = vsub.f32 %v852, %v949
      %v986 = vsub.f32 %v854, %v951
      %v987 = vsub.f32 %v857, %v954
      %v988 = vsub.f32 %v859, %v956
      %v989 = vsub.f32 %v862, %v959
      %v990 = vsub.f32 %v864, %v961
      %v991 = vsub.f32 %v867, %v964
      %v992 = vsub.f32 %v869, %v966
      %v993 = vsub.f32 %v872, %v969
      %v994 = vsub.f32 %v874, %v971
      %v995 = vsub.f32 %v877, %v974
      %v996 = vsub.f32 %v879, %v976
      %v997 = vsub.f32 %v882, %v979
      %v998 = vsub.f32 %v884, %v981
      %999 = vmatpush.bf16.msra.mxu0 %v925
      %1000 = vmatpush.bf16.msra.mxu0 %v924
      %1001 = vmatpush.bf16.msra.mxu0 %v923
      %1002 = vmatpush.bf16.msra.mxu0 %v922
      %1003 = vmatpush.bf16.msra.mxu0 %v921
      %1004 = vmatpush.bf16.msra.mxu0 %v920
      %1005 = vmatpush.bf16.msra.mxu0 %v919
      %1006 = vmatpush.bf16.msra.mxu0 %v918
      %1007 = vmatmul.bf16.gmra.mxu0 %v773
      %v1008 = vpop.f32.mrf.mxu0
      %v1009 = vadd.f32 0.0, %v1008
      %v1010 = vpop.f32.mrf.mxu0
      %v1011 = vadd.f32 0.0, %v1010
      %1012 = vmatmul.bf16.gmra.mxu0 %v774
      %v1013 = vpop.f32.mrf.mxu0
      %v1014 = vadd.f32 0.0, %v1013
      %v1015 = vpop.f32.mrf.mxu0
      %v1016 = vadd.f32 0.0, %v1015
      %1017 = vmatmul.bf16.gmra.mxu0 %v775
      %v1018 = vpop.f32.mrf.mxu0
      %v1019 = vadd.f32 0.0, %v1018
      %v1020 = vpop.f32.mrf.mxu0
      %v1021 = vadd.f32 0.0, %v1020
      %1022 = vmatmul.bf16.gmra.mxu0 %v776
      %v1023 = vpop.f32.mrf.mxu0
      %v1024 = vadd.f32 0.0, %v1023
      %v1025 = vpop.f32.mrf.mxu0
      %v1026 = vadd.f32 0.0, %v1025
      %1027 = vmatmul.bf16.gmra.mxu0 %v777
      %v1028 = vpop.f32.mrf.mxu0
      %v1029 = vadd.f32 0.0, %v1028
      %v1030 = vpop.f32.mrf.mxu0
      %v1031 = vadd.f32 0.0, %v1030
      %1032 = vmatmul.bf16.gmra.mxu0 %v778
      %v1033 = vpop.f32.mrf.mxu0
      %v1034 = vadd.f32 0.0, %v1033
      %v1035 = vpop.f32.mrf.mxu0
      %v1036 = vadd.f32 0.0, %v1035
      %1037 = vmatmul.bf16.gmra.mxu0 %v779
      %v1038 = vpop.f32.mrf.mxu0
      %v1039 = vadd.f32 0.0, %v1038
      %v1040 = vpop.f32.mrf.mxu0
      %v1041 = vadd.f32 0.0, %v1040
      %1042 = vmatmul.bf16.gmra.mxu0 %v780
      %v1043 = vpop.f32.mrf.mxu0
      %v1044 = vadd.f32 0.0, %v1043
      %v1045 = vpop.f32.mrf.mxu0
      %v1046 = vadd.f32 0.0, %v1045
      %1047 = vdwg.mxu0
      %1048 = vmatpush.bf16.msra.mxu0 %v828
      %1049 = vmatpush.bf16.msra.mxu0 %v827
      %1050 = vmatpush.bf16.msra.mxu0 %v826
      %1051 = vmatpush.bf16.msra.mxu0 %v825
      %1052 = vmatpush.bf16.msra.mxu0 %v824
      %1053 = vmatpush.bf16.msra.mxu0 %v823
      %1054 = vmatpush.bf16.msra.mxu0 %v822
      %1055 = vmatpush.bf16.msra.mxu0 %v821
      %1056 = vmatmul.bf16.gmra.mxu0 %v781
      %v1057 = vpop.f32.mrf.mxu0
      %v1058 = vadd.f32 %v1009, %v1057
      %v1059 = vpop.f32.mrf.mxu0
      %v1060 = vadd.f32 %v1011, %v1059
      %1061 = vmatmul.bf16.gmra.mxu0 %v782
      %v1062 = vpop.f32.mrf.mxu0
      %v1063 = vadd.f32 %v1014, %v1062
      %v1064 = vpop.f32.mrf.mxu0
      %v1065 = vadd.f32 %v1016, %v1064
      %1066 = vmatmul.bf16.gmra.mxu0 %v783
      %v1067 = vpop.f32.mrf.mxu0
      %v1068 = vadd.f32 %v1019, %v1067
      %v1069 = vpop.f32.mrf.mxu0
      %v1070 = vadd.f32 %v1021, %v1069
      %1071 = vmatmul.bf16.gmra.mxu0 %v784
      %v1072 = vpop.f32.mrf.mxu0
      %v1073 = vadd.f32 %v1024, %v1072
      %v1074 = vpop.f32.mrf.mxu0
      %v1075 = vadd.f32 %v1026, %v1074
      %1076 = vmatmul.bf16.gmra.mxu0 %v785
      %v1077 = vpop.f32.mrf.mxu0
      %v1078 = vadd.f32 %v1029, %v1077
      %v1079 = vpop.f32.mrf.mxu0
      %v1080 = vadd.f32 %v1031, %v1079
      %1081 = vmatmul.bf16.gmra.mxu0 %v786
      %v1082 = vpop.f32.mrf.mxu0
      %v1083 = vadd.f32 %v1034, %v1082
      %v1084 = vpop.f32.mrf.mxu0
      %v1085 = vadd.f32 %v1036, %v1084
      %1086 = vmatmul.bf16.gmra.mxu0 %v787
      %v1087 = vpop.f32.mrf.mxu0
      %v1088 = vadd.f32 %v1039, %v1087
      %v1089 = vpop.f32.mrf.mxu0
      %v1090 = vadd.f32 %v1041, %v1089
      %1091 = vmatmul.bf16.gmra.mxu0 %v788
      %v1092 = vpop.f32.mrf.mxu0
      %v1093 = vadd.f32 %v1044, %v1092
      %v1094 = vpop.f32.mrf.mxu0
      %v1095 = vadd.f32 %v1046, %v1094
      %1096 = vdwg.mxu0
      %s1097 = smul.u32 %s348, 128
      %s1098 = scalar_lea.vmem [#allocation7], %s1097
      %v1099 = vld [vmem:[%s1098] sm:$0xff]
      %v1100 = vld [vmem:[%s1098 + $0x8] sm:$0xff]
      %v1101 = vld [vmem:[%s1098 + $0x10] sm:$0xff]
      %v1102 = vld [vmem:[%s1098 + $0x18] sm:$0xff]
      %v1103 = vld [vmem:[%s1098 + $0x20] sm:$0xff]
      %v1104 = vld [vmem:[%s1098 + $0x28] sm:$0xff]
      %v1105 = vld [vmem:[%s1098 + $0x30] sm:$0xff]
      %v1106 = vld [vmem:[%s1098 + $0x38] sm:$0xff]
      %v1107 = vld [vmem:[%s1098 + $0x40] sm:$0xff]
      %v1108 = vld [vmem:[%s1098 + $0x48] sm:$0xff]
      %v1109 = vld [vmem:[%s1098 + $0x50] sm:$0xff]
      %v1110 = vld [vmem:[%s1098 + $0x58] sm:$0xff]
      %v1111 = vld [vmem:[%s1098 + $0x60] sm:$0xff]
      %v1112 = vld [vmem:[%s1098 + $0x68] sm:$0xff]
      %v1113 = vld [vmem:[%s1098 + $0x70] sm:$0xff]
      %v1114 = vld [vmem:[%s1098 + $0x78] sm:$0xff]
      %s1115 = scalar_lea.vmem [#allocation10], %s1097
      %v1116 = vld [vmem:[%s1115] sm:$0xff]
      %v1117 = vld [vmem:[%s1115 + $0x8] sm:$0xff]
      %v1118 = vld [vmem:[%s1115 + $0x10] sm:$0xff]
      %v1119 = vld [vmem:[%s1115 + $0x18] sm:$0xff]
      %v1120 = vld [vmem:[%s1115 + $0x20] sm:$0xff]
      %v1121 = vld [vmem:[%s1115 + $0x28] sm:$0xff]
      %v1122 = vld [vmem:[%s1115 + $0x30] sm:$0xff]
      %v1123 = vld [vmem:[%s1115 + $0x38] sm:$0xff]
      %v1124 = vld [vmem:[%s1115 + $0x40] sm:$0xff]
      %v1125 = vld [vmem:[%s1115 + $0x48] sm:$0xff]
      %v1126 = vld [vmem:[%s1115 + $0x50] sm:$0xff]
      %v1127 = vld [vmem:[%s1115 + $0x58] sm:$0xff]
      %v1128 = vld [vmem:[%s1115 + $0x60] sm:$0xff]
      %v1129 = vld [vmem:[%s1115 + $0x68] sm:$0xff]
      %v1130 = vld [vmem:[%s1115 + $0x70] sm:$0xff]
      %v1131 = vld [vmem:[%s1115 + $0x78] sm:$0xff]
      %v1132 = vld [vmem:[#allocation19] sm:$0xff]
      %v1133 = vld [vmem:[#allocation19 + $0x8] sm:$0xff]
      %v1134 = vld [vmem:[#allocation19 + $0x10] sm:$0xff]
      %v1135 = vld [vmem:[#allocation19 + $0x18] sm:$0xff]
      %v1136 = vld [vmem:[#allocation19 + $0x20] sm:$0xff]
      %v1137 = vld [vmem:[#allocation19 + $0x28] sm:$0xff]
      %v1138 = vld [vmem:[#allocation19 + $0x30] sm:$0xff]
      %v1139 = vld [vmem:[#allocation19 + $0x38] sm:$0xff]
      %v1140 = vld [vmem:[#allocation19 + $0x40] sm:$0xff]
      %v1141 = vld [vmem:[#allocation19 + $0x48] sm:$0xff]
      %v1142 = vld [vmem:[#allocation19 + $0x50] sm:$0xff]
      %v1143 = vld [vmem:[#allocation19 + $0x58] sm:$0xff]
      %v1144 = vld [vmem:[#allocation19 + $0x60] sm:$0xff]
      %v1145 = vld [vmem:[#allocation19 + $0x68] sm:$0xff]
      %v1146 = vld [vmem:[#allocation19 + $0x70] sm:$0xff]
      %v1147 = vld [vmem:[#allocation19 + $0x78] sm:$0xff]
      %v1148 = vmul.f32 %v1099, %v983
      %v1149 = vmul.f32 %v1100, %v984
      %v1150 = vmul.f32 %v1101, %v985
      %v1151 = vmul.f32 %v1102, %v986
      %v1152 = vmul.f32 %v1103, %v987
      %v1153 = vmul.f32 %v1104, %v988
      %v1154 = vmul.f32 %v1105, %v989
      %v1155 = vmul.f32 %v1106, %v990
      %v1156 = vmul.f32 %v1107, %v991
      %v1157 = vmul.f32 %v1108, %v992
      %v1158 = vmul.f32 %v1109, %v993
      %v1159 = vmul.f32 %v1110, %v994
      %v1160 = vmul.f32 %v1111, %v995
      %v1161 = vmul.f32 %v1112, %v996
      %v1162 = vmul.f32 %v1113, %v997
      %v1163 = vmul.f32 %v1114, %v998
      %v1164 = vmul.f32 %v1116, %v1058
      %v1165 = vmul.f32 %v1117, %v1060
      %v1166 = vmul.f32 %v1118, %v1063
      %v1167 = vmul.f32 %v1119, %v1065
      %v1168 = vmul.f32 %v1120, %v1068
      %v1169 = vmul.f32 %v1121, %v1070
      %v1170 = vmul.f32 %v1122, %v1073
      %v1171 = vmul.f32 %v1123, %v1075
      %v1172 = vmul.f32 %v1124, %v1078
      %v1173 = vmul.f32 %v1125, %v1080
      %v1174 = vmul.f32 %v1126, %v1083
      %v1175 = vmul.f32 %v1127, %v1085
      %v1176 = vmul.f32 %v1128, %v1088
      %v1177 = vmul.f32 %v1129, %v1090
      %v1178 = vmul.f32 %v1130, %v1093
      %v1179 = vmul.f32 %v1131, %v1095
      %v1180 = vadd.f32 %v1148, %v1164
      %v1181 = vadd.f32 %v1149, %v1165
      %v1182 = vadd.f32 %v1150, %v1166
      %v1183 = vadd.f32 %v1151, %v1167
      %v1184 = vadd.f32 %v1152, %v1168
      %v1185 = vadd.f32 %v1153, %v1169
      %v1186 = vadd.f32 %v1154, %v1170
      %v1187 = vadd.f32 %v1155, %v1171
      %v1188 = vadd.f32 %v1156, %v1172
      %v1189 = vadd.f32 %v1157, %v1173
      %v1190 = vadd.f32 %v1158, %v1174
      %v1191 = vadd.f32 %v1159, %v1175
      %v1192 = vadd.f32 %v1160, %v1176
      %v1193 = vadd.f32 %v1161, %v1177
      %v1194 = vadd.f32 %v1162, %v1178
      %v1195 = vadd.f32 %v1163, %v1179
      %v1196 = vadd.f32 %v1132, %v1180
      %v1197 = vadd.f32 %v1133, %v1181
      %v1198 = vadd.f32 %v1134, %v1182
      %v1199 = vadd.f32 %v1135, %v1183
      %v1200 = vadd.f32 %v1136, %v1184
      %v1201 = vadd.f32 %v1137, %v1185
      %v1202 = vadd.f32 %v1138, %v1186
      %v1203 = vadd.f32 %v1139, %v1187
      %v1204 = vadd.f32 %v1140, %v1188
      %v1205 = vadd.f32 %v1141, %v1189
      %v1206 = vadd.f32 %v1142, %v1190
      %v1207 = vadd.f32 %v1143, %v1191
      %v1208 = vadd.f32 %v1144, %v1192
      %v1209 = vadd.f32 %v1145, %v1193
      %v1210 = vadd.f32 %v1146, %v1194
      %v1211 = vadd.f32 %v1147, %v1195
      %1212 = vst [vmem:[#allocation19] sm:$0xff] %v1196
      %1213 = vst [vmem:[#allocation19 + $0x8] sm:$0xff] %v1197
      %1214 = vst [vmem:[#allocation19 + $0x10] sm:$0xff] %v1198
      %1215 = vst [vmem:[#allocation19 + $0x18] sm:$0xff] %v1199
      %1216 = vst [vmem:[#allocation19 + $0x20] sm:$0xff] %v1200
      %1217 = vst [vmem:[#allocation19 + $0x28] sm:$0xff] %v1201
      %1218 = vst [vmem:[#allocation19 + $0x30] sm:$0xff] %v1202
      %1219 = vst [vmem:[#allocation19 + $0x38] sm:$0xff] %v1203
      %1220 = vst [vmem:[#allocation19 + $0x40] sm:$0xff] %v1204
      %1221 = vst [vmem:[#allocation19 + $0x48] sm:$0xff] %v1205
      %1222 = vst [vmem:[#allocation19 + $0x50] sm:$0xff] %v1206
      %1223 = vst [vmem:[#allocation19 + $0x58] sm:$0xff] %v1207
      %1224 = vst [vmem:[#allocation19 + $0x60] sm:$0xff] %v1208
      %1225 = vst [vmem:[#allocation19 + $0x68] sm:$0xff] %v1209
      %1226 = vst [vmem:[#allocation19 + $0x70] sm:$0xff] %v1210
      %1227 = vst [vmem:[#allocation19 + $0x78] sm:$0xff] %v1211
      %v1228 = vld [vmem:[#allocation20] sm:$0xff]
      %v1229 = vld [vmem:[#allocation20 + $0x8] sm:$0xff]
      %v1230 = vld [vmem:[#allocation20 + $0x10] sm:$0xff]
      %v1231 = vld [vmem:[#allocation20 + $0x18] sm:$0xff]
      %v1232 = vld [vmem:[#allocation20 + $0x20] sm:$0xff]
      %v1233 = vld [vmem:[#allocation20 + $0x28] sm:$0xff]
      %v1234 = vld [vmem:[#allocation20 + $0x30] sm:$0xff]
      %v1235 = vld [vmem:[#allocation20 + $0x38] sm:$0xff]
      %v1236 = vld [vmem:[#allocation20 + $0x40] sm:$0xff]
      %v1237 = vld [vmem:[#allocation20 + $0x48] sm:$0xff]
      %v1238 = vld [vmem:[#allocation20 + $0x50] sm:$0xff]
      %v1239 = vld [vmem:[#allocation20 + $0x58] sm:$0xff]
      %v1240 = vld [vmem:[#allocation20 + $0x60] sm:$0xff]
      %v1241 = vld [vmem:[#allocation20 + $0x68] sm:$0xff]
      %v1242 = vld [vmem:[#allocation20 + $0x70] sm:$0xff]
      %v1243 = vld [vmem:[#allocation20 + $0x78] sm:$0xff]
      %v1244 = vmul.f32 %v1099, %v1058
      %v1245 = vmul.f32 %v1100, %v1060
      %v1246 = vmul.f32 %v1101, %v1063
      %v1247 = vmul.f32 %v1102, %v1065
      %v1248 = vmul.f32 %v1103, %v1068
      %v1249 = vmul.f32 %v1104, %v1070
      %v1250 = vmul.f32 %v1105, %v1073
      %v1251 = vmul.f32 %v1106, %v1075
      %v1252 = vmul.f32 %v1107, %v1078
      %v1253 = vmul.f32 %v1108, %v1080
      %v1254 = vmul.f32 %v1109, %v1083
      %v1255 = vmul.f32 %v1110, %v1085
      %v1256 = vmul.f32 %v1111, %v1088
      %v1257 = vmul.f32 %v1112, %v1090
      %v1258 = vmul.f32 %v1113, %v1093
      %v1259 = vmul.f32 %v1114, %v1095
      %v1260 = vmul.f32 %v1116, %v983
      %v1261 = vmul.f32 %v1117, %v984
      %v1262 = vmul.f32 %v1118, %v985
      %v1263 = vmul.f32 %v1119, %v986
      %v1264 = vmul.f32 %v1120, %v987
      %v1265 = vmul.f32 %v1121, %v988
      %v1266 = vmul.f32 %v1122, %v989
      %v1267 = vmul.f32 %v1123, %v990
      %v1268 = vmul.f32 %v1124, %v991
      %v1269 = vmul.f32 %v1125, %v992
      %v1270 = vmul.f32 %v1126, %v993
      %v1271 = vmul.f32 %v1127, %v994
      %v1272 = vmul.f32 %v1128, %v995
      %v1273 = vmul.f32 %v1129, %v996
      %v1274 = vmul.f32 %v1130, %v997
      %v1275 = vmul.f32 %v1131, %v998
      %v1276 = vsub.f32 %v1244, %v1260
      %v1277 = vsub.f32 %v1245, %v1261
      %v1278 = vsub.f32 %v1246, %v1262
      %v1279 = vsub.f32 %v1247, %v1263
      %v1280 = vsub.f32 %v1248, %v1264
      %v1281 = vsub.f32 %v1249, %v1265
      %v1282 = vsub.f32 %v1250, %v1266
      %v1283 = vsub.f32 %v1251, %v1267
      %v1284 = vsub.f32 %v1252, %v1268
      %v1285 = vsub.f32 %v1253, %v1269
      %v1286 = vsub.f32 %v1254, %v1270
      %v1287 = vsub.f32 %v1255, %v1271
      %v1288 = vsub.f32 %v1256, %v1272
      %v1289 = vsub.f32 %v1257, %v1273
      %v1290 = vsub.f32 %v1258, %v1274
      %v1291 = vsub.f32 %v1259, %v1275
      %v1292 = vadd.f32 %v1228, %v1276
      %v1293 = vadd.f32 %v1229, %v1277
      %v1294 = vadd.f32 %v1230, %v1278
      %v1295 = vadd.f32 %v1231, %v1279
      %v1296 = vadd.f32 %v1232, %v1280
      %v1297 = vadd.f32 %v1233, %v1281
      %v1298 = vadd.f32 %v1234, %v1282
      %v1299 = vadd.f32 %v1235, %v1283
      %v1300 = vadd.f32 %v1236, %v1284
      %v1301 = vadd.f32 %v1237, %v1285
      %v1302 = vadd.f32 %v1238, %v1286
      %v1303 = vadd.f32 %v1239, %v1287
      %v1304 = vadd.f32 %v1240, %v1288
      %v1305 = vadd.f32 %v1241, %v1289
      %v1306 = vadd.f32 %v1242, %v1290
      %v1307 = vadd.f32 %v1243, %v1291
      %1308 = vst [vmem:[#allocation20] sm:$0xff] %v1292
      %1309 = vst [vmem:[#allocation20 + $0x8] sm:$0xff] %v1293
      %1310 = vst [vmem:[#allocation20 + $0x10] sm:$0xff] %v1294
      %1311 = vst [vmem:[#allocation20 + $0x18] sm:$0xff] %v1295
      %1312 = vst [vmem:[#allocation20 + $0x20] sm:$0xff] %v1296
      %1313 = vst [vmem:[#allocation20 + $0x28] sm:$0xff] %v1297
      %1314 = vst [vmem:[#allocation20 + $0x30] sm:$0xff] %v1298
      %1315 = vst [vmem:[#allocation20 + $0x38] sm:$0xff] %v1299
      %1316 = vst [vmem:[#allocation20 + $0x40] sm:$0xff] %v1300
      %1317 = vst [vmem:[#allocation20 + $0x48] sm:$0xff] %v1301
      %1318 = vst [vmem:[#allocation20 + $0x50] sm:$0xff] %v1302
      %1319 = vst [vmem:[#allocation20 + $0x58] sm:$0xff] %v1303
      %1320 = vst [vmem:[#allocation20 + $0x60] sm:$0xff] %v1304
      %1321 = vst [vmem:[#allocation20 + $0x68] sm:$0xff] %v1305
      %1322 = vst [vmem:[#allocation20 + $0x70] sm:$0xff] %v1306
      %1323 = vst [vmem:[#allocation20 + $0x78] sm:$0xff] %v1307
    $region70: #{tpu_custom_call.1} parent=1 // loop_footer
      %s352 = sadd.s32 1, %s348
    $region71: #{tpu_custom_call.1} parent=1 // loop_footer_branch
      %347 = sbr.rel target = $region67
    $region72: #{tpu_custom_call.1} parent=1 // loop_exit
      _
    %v1324 = vld [vmem:[#allocation19] sm:$0xff]
    %v1325 = vld [vmem:[#allocation19 + $0x8] sm:$0xff]
    %v1326 = vld [vmem:[#allocation19 + $0x10] sm:$0xff]
    %v1327 = vld [vmem:[#allocation19 + $0x18] sm:$0xff]
    %v1328 = vld [vmem:[#allocation19 + $0x20] sm:$0xff]
    %v1329 = vld [vmem:[#allocation19 + $0x28] sm:$0xff]
    %v1330 = vld [vmem:[#allocation19 + $0x30] sm:$0xff]
    %v1331 = vld [vmem:[#allocation19 + $0x38] sm:$0xff]
    %v1332 = vld [vmem:[#allocation19 + $0x40] sm:$0xff]
    %v1333 = vld [vmem:[#allocation19 + $0x48] sm:$0xff]
    %v1334 = vld [vmem:[#allocation19 + $0x50] sm:$0xff]
    %v1335 = vld [vmem:[#allocation19 + $0x58] sm:$0xff]
    %v1336 = vld [vmem:[#allocation19 + $0x60] sm:$0xff]
    %v1337 = vld [vmem:[#allocation19 + $0x68] sm:$0xff]
    %v1338 = vld [vmem:[#allocation19 + $0x70] sm:$0xff]
    %v1339 = vld [vmem:[#allocation19 + $0x78] sm:$0xff]
    %1340 = vst [vmem:[#allocation22] sm:$0xff] %v1324
    %1341 = vst [vmem:[#allocation22 + $0x8] sm:$0xff] %v1325
    %1342 = vst [vmem:[#allocation22 + $0x10] sm:$0xff] %v1326
    %1343 = vst [vmem:[#allocation22 + $0x18] sm:$0xff] %v1327
    %1344 = vst [vmem:[#allocation22 + $0x20] sm:$0xff] %v1328
    %1345 = vst [vmem:[#allocation22 + $0x28] sm:$0xff] %v1329
    %1346 = vst [vmem:[#allocation22 + $0x30] sm:$0xff] %v1330
    %1347 = vst [vmem:[#allocation22 + $0x38] sm:$0xff] %v1331
    %1348 = vst [vmem:[#allocation22 + $0x40] sm:$0xff] %v1332
    %1349 = vst [vmem:[#allocation22 + $0x48] sm:$0xff] %v1333
    %1350 = vst [vmem:[#allocation22 + $0x50] sm:$0xff] %v1334
    %1351 = vst [vmem:[#allocation22 + $0x58] sm:$0xff] %v1335
    %1352 = vst [vmem:[#allocation22 + $0x60] sm:$0xff] %v1336
    %1353 = vst [vmem:[#allocation22 + $0x68] sm:$0xff] %v1337
    %1354 = vst [vmem:[#allocation22 + $0x70] sm:$0xff] %v1338
    %1355 = vst [vmem:[#allocation22 + $0x78] sm:$0xff] %v1339
    %v1356 = vld [vmem:[#allocation20] sm:$0xff]
    %v1357 = vld [vmem:[#allocation20 + $0x8] sm:$0xff]
    %v1358 = vld [vmem:[#allocation20 + $0x10] sm:$0xff]
    %v1359 = vld [vmem:[#allocation20 + $0x18] sm:$0xff]
    %v1360 = vld [vmem:[#allocation20 + $0x20] sm:$0xff]
    %v1361 = vld [vmem:[#allocation20 + $0x28] sm:$0xff]
    %v1362 = vld [vmem:[#allocation20 + $0x30] sm:$0xff]
    %v1363 = vld [vmem:[#allocation20 + $0x38] sm:$0xff]
    %v1364 = vld [vmem:[#allocation20 + $0x40] sm:$0xff]
    %v1365 = vld [vmem:[#allocation20 + $0x48] sm:$0xff]
    %v1366 = vld [vmem:[#allocation20 + $0x50] sm:$0xff]
    %v1367 = vld [vmem:[#allocation20 + $0x58] sm:$0xff]
    %v1368 = vld [vmem:[#allocation20 + $0x60] sm:$0xff]
    %v1369 = vld [vmem:[#allocation20 + $0x68] sm:$0xff]
    %v1370 = vld [vmem:[#allocation20 + $0x70] sm:$0xff]
    %v1371 = vld [vmem:[#allocation20 + $0x78] sm:$0xff]
    %1372 = vst [vmem:[#allocation23] sm:$0xff] %v1356
    %1373 = vst [vmem:[#allocation23 + $0x8] sm:$0xff] %v1357
    %1374 = vst [vmem:[#allocation23 + $0x10] sm:$0xff] %v1358
    %1375 = vst [vmem:[#allocation23 + $0x18] sm:$0xff] %v1359
    %1376 = vst [vmem:[#allocation23 + $0x20] sm:$0xff] %v1360
    %1377 = vst [vmem:[#allocation23 + $0x28] sm:$0xff] %v1361
    %1378 = vst [vmem:[#allocation23 + $0x30] sm:$0xff] %v1362
    %1379 = vst [vmem:[#allocation23 + $0x38] sm:$0xff] %v1363
    %1380 = vst [vmem:[#allocation23 + $0x40] sm:$0xff] %v1364
    %1381 = vst [vmem:[#allocation23 + $0x48] sm:$0xff] %v1365
    %1382 = vst [vmem:[#allocation23 + $0x50] sm:$0xff] %v1366
    %1383 = vst [vmem:[#allocation23 + $0x58] sm:$0xff] %v1367
    %1384 = vst [vmem:[#allocation23 + $0x60] sm:$0xff] %v1368
    %1385 = vst [vmem:[#allocation23 + $0x68] sm:$0xff] %v1369
    %1386 = vst [vmem:[#allocation23 + $0x70] sm:$0xff] %v1370
    %1387 = vst [vmem:[#allocation23 + $0x78] sm:$0xff] %v1371
    loop: start=0, step=1, limit=5
    $region85: #{tpu_custom_call.1} parent=1 // loop_pre_header
      _
    $region86: #{tpu_custom_call.1} parent=1 // loop_header
      %s1389 = sphi 0, %s1393
      %p1390 = scmp.ge.s32.totalorder %s1389, 5
    $region87: #{tpu_custom_call.1} parent=1 // loop_header_branch
      %1392 = sbr.rel (%p1390) target = $region91
    $region88: #{tpu_custom_call.1} parent=1 // loop_body
      %1394 = vst [vmem:[#allocation5] sm:$0xff] 0.0
      %1395 = vst [vmem:[#allocation5 + $0x8] sm:$0xff] 0.0
      %1396 = vst [vmem:[#allocation5 + $0x10] sm:$0xff] 0.0
      %1397 = vst [vmem:[#allocation5 + $0x18] sm:$0xff] 0.0
      %1398 = vst [vmem:[#allocation5 + $0x20] sm:$0xff] 0.0
      %1399 = vst [vmem:[#allocation5 + $0x28] sm:$0xff] 0.0
      %1400 = vst [vmem:[#allocation5 + $0x30] sm:$0xff] 0.0
      %1401 = vst [vmem:[#allocation5 + $0x38] sm:$0xff] 0.0
      %1402 = vst [vmem:[#allocation5 + $0x40] sm:$0xff] 0.0
      %1403 = vst [vmem:[#allocation5 + $0x48] sm:$0xff] 0.0
      %1404 = vst [vmem:[#allocation5 + $0x50] sm:$0xff] 0.0
      %1405 = vst [vmem:[#allocation5 + $0x58] sm:$0xff] 0.0
      %1406 = vst [vmem:[#allocation5 + $0x60] sm:$0xff] 0.0
      %1407 = vst [vmem:[#allocation5 + $0x68] sm:$0xff] 0.0
      %1408 = vst [vmem:[#allocation5 + $0x70] sm:$0xff] 0.0
      %1409 = vst [vmem:[#allocation5 + $0x78] sm:$0xff] 0.0
      %1410 = vst [vmem:[#allocation6] sm:$0xff] 0.0
      %1411 = vst [vmem:[#allocation6 + $0x8] sm:$0xff] 0.0
      %1412 = vst [vmem:[#allocation6 + $0x10] sm:$0xff] 0.0
      %1413 = vst [vmem:[#allocation6 + $0x18] sm:$0xff] 0.0
      %1414 = vst [vmem:[#allocation6 + $0x20] sm:$0xff] 0.0
      %1415 = vst [vmem:[#allocation6 + $0x28] sm:$0xff] 0.0
      %1416 = vst [vmem:[#allocation6 + $0x30] sm:$0xff] 0.0
      %1417 = vst [vmem:[#allocation6 + $0x38] sm:$0xff] 0.0
      %1418 = vst [vmem:[#allocation6 + $0x40] sm:$0xff] 0.0
      %1419 = vst [vmem:[#allocation6 + $0x48] sm:$0xff] 0.0
      %1420 = vst [vmem:[#allocation6 + $0x50] sm:$0xff] 0.0
      %1421 = vst [vmem:[#allocation6 + $0x58] sm:$0xff] 0.0
      %1422 = vst [vmem:[#allocation6 + $0x60] sm:$0xff] 0.0
      %1423 = vst [vmem:[#allocation6 + $0x68] sm:$0xff] 0.0
      %1424 = vst [vmem:[#allocation6 + $0x70] sm:$0xff] 0.0
      %1425 = vst [vmem:[#allocation6 + $0x78] sm:$0xff] 0.0
      loop: start=0, step=1, limit=4
      $region92: #{tpu_custom_call.1} parent=88 // loop_pre_header
        _
      $region93: #{tpu_custom_call.1} parent=88 // loop_header
        %s1427 = sphi 0, %s1431
        %p1428 = scmp.ge.s32.totalorder %s1427, 4
      $region94: #{tpu_custom_call.1} parent=88 // loop_header_branch
        %1430 = sbr.rel (%p1428) target = $region98
      $region95: #{tpu_custom_call.1} parent=88 // loop_body
        %v1432 = vld [vmem:[#allocation22] sm:$0xff]
        %v1433 = vld [vmem:[#allocation22 + $0x8] sm:$0xff]
        %v1434 = vld [vmem:[#allocation22 + $0x10] sm:$0xff]
        %v1435 = vld [vmem:[#allocation22 + $0x18] sm:$0xff]
        %v1436 = vld [vmem:[#allocation22 + $0x20] sm:$0xff]
        %v1437 = vld [vmem:[#allocation22 + $0x28] sm:$0xff]
        %v1438 = vld [vmem:[#allocation22 + $0x30] sm:$0xff]
        %v1439 = vld [vmem:[#allocation22 + $0x38] sm:$0xff]
        %v1440 = vld [vmem:[#allocation22 + $0x40] sm:$0xff]
        %v1441 = vld [vmem:[#allocation22 + $0x48] sm:$0xff]
        %v1442 = vld [vmem:[#allocation22 + $0x50] sm:$0xff]
        %v1443 = vld [vmem:[#allocation22 + $0x58] sm:$0xff]
        %v1444 = vld [vmem:[#allocation22 + $0x60] sm:$0xff]
        %v1445 = vld [vmem:[#allocation22 + $0x68] sm:$0xff]
        %v1446 = vld [vmem:[#allocation22 + $0x70] sm:$0xff]
        %v1447 = vld [vmem:[#allocation22 + $0x78] sm:$0xff]
        %v1448 = vld [vmem:[#allocation23] sm:$0xff]
        %v1449 = vld [vmem:[#allocation23 + $0x8] sm:$0xff]
        %v1450 = vld [vmem:[#allocation23 + $0x10] sm:$0xff]
        %v1451 = vld [vmem:[#allocation23 + $0x18] sm:$0xff]
        %v1452 = vld [vmem:[#allocation23 + $0x20] sm:$0xff]
        %v1453 = vld [vmem:[#allocation23 + $0x28] sm:$0xff]
        %v1454 = vld [vmem:[#allocation23 + $0x30] sm:$0xff]
        %v1455 = vld [vmem:[#allocation23 + $0x38] sm:$0xff]
        %v1456 = vld [vmem:[#allocation23 + $0x40] sm:$0xff]
        %v1457 = vld [vmem:[#allocation23 + $0x48] sm:$0xff]
        %v1458 = vld [vmem:[#allocation23 + $0x50] sm:$0xff]
        %v1459 = vld [vmem:[#allocation23 + $0x58] sm:$0xff]
        %v1460 = vld [vmem:[#allocation23 + $0x60] sm:$0xff]
        %v1461 = vld [vmem:[#allocation23 + $0x68] sm:$0xff]
        %v1462 = vld [vmem:[#allocation23 + $0x70] sm:$0xff]
        %v1463 = vld [vmem:[#allocation23 + $0x78] sm:$0xff]
        %s1464 = smul.u32 %s1427, 128
        %s1465 = scalar_lea.vmem [#allocation7], %s1464
        %v1466 = vld [vmem:[%s1465] sm:$0xff]
        %v1467 = vld [vmem:[%s1465 + $0x8] sm:$0xff]
        %v1468 = vld [vmem:[%s1465 + $0x10] sm:$0xff]
        %v1469 = vld [vmem:[%s1465 + $0x18] sm:$0xff]
        %v1470 = vld [vmem:[%s1465 + $0x20] sm:$0xff]
        %v1471 = vld [vmem:[%s1465 + $0x28] sm:$0xff]
        %v1472 = vld [vmem:[%s1465 + $0x30] sm:$0xff]
        %v1473 = vld [vmem:[%s1465 + $0x38] sm:$0xff]
        %v1474 = vld [vmem:[%s1465 + $0x40] sm:$0xff]
        %v1475 = vld [vmem:[%s1465 + $0x48] sm:$0xff]
        %v1476 = vld [vmem:[%s1465 + $0x50] sm:$0xff]
        %v1477 = vld [vmem:[%s1465 + $0x58] sm:$0xff]
        %v1478 = vld [vmem:[%s1465 + $0x60] sm:$0xff]
        %v1479 = vld [vmem:[%s1465 + $0x68] sm:$0xff]
        %v1480 = vld [vmem:[%s1465 + $0x70] sm:$0xff]
        %v1481 = vld [vmem:[%s1465 + $0x78] sm:$0xff]
        %s1482 = scalar_lea.vmem [#allocation10], %s1464
        %v1483 = vld [vmem:[%s1482] sm:$0xff]
        %v1484 = vld [vmem:[%s1482 + $0x8] sm:$0xff]
        %v1485 = vld [vmem:[%s1482 + $0x10] sm:$0xff]
        %v1486 = vld [vmem:[%s1482 + $0x18] sm:$0xff]
        %v1487 = vld [vmem:[%s1482 + $0x20] sm:$0xff]
        %v1488 = vld [vmem:[%s1482 + $0x28] sm:$0xff]
        %v1489 = vld [vmem:[%s1482 + $0x30] sm:$0xff]
        %v1490 = vld [vmem:[%s1482 + $0x38] sm:$0xff]
        %v1491 = vld [vmem:[%s1482 + $0x40] sm:$0xff]
        %v1492 = vld [vmem:[%s1482 + $0x48] sm:$0xff]
        %v1493 = vld [vmem:[%s1482 + $0x50] sm:$0xff]
        %v1494 = vld [vmem:[%s1482 + $0x58] sm:$0xff]
        %v1495 = vld [vmem:[%s1482 + $0x60] sm:$0xff]
        %v1496 = vld [vmem:[%s1482 + $0x68] sm:$0xff]
        %v1497 = vld [vmem:[%s1482 + $0x70] sm:$0xff]
        %v1498 = vld [vmem:[%s1482 + $0x78] sm:$0xff]
        %v1499 = vld [vmem:[#allocation12] sm:$0xff]
        %v1500 = vld [vmem:[#allocation12 + $0x8] sm:$0xff]
        %v1501 = vld [vmem:[#allocation12 + $0x10] sm:$0xff]
        %v1502 = vld [vmem:[#allocation12 + $0x18] sm:$0xff]
        %v1503 = vld [vmem:[#allocation12 + $0x20] sm:$0xff]
        %v1504 = vld [vmem:[#allocation12 + $0x28] sm:$0xff]
        %v1505 = vld [vmem:[#allocation12 + $0x30] sm:$0xff]
        %v1506 = vld [vmem:[#allocation12 + $0x38] sm:$0xff]
        %v1507 = vld [vmem:[#allocation12 + $0x40] sm:$0xff]
        %v1508 = vld [vmem:[#allocation12 + $0x48] sm:$0xff]
        %v1509 = vld [vmem:[#allocation12 + $0x50] sm:$0xff]
        %v1510 = vld [vmem:[#allocation12 + $0x58] sm:$0xff]
        %v1511 = vld [vmem:[#allocation12 + $0x60] sm:$0xff]
        %v1512 = vld [vmem:[#allocation12 + $0x68] sm:$0xff]
        %v1513 = vld [vmem:[#allocation12 + $0x70] sm:$0xff]
        %v1514 = vld [vmem:[#allocation12 + $0x78] sm:$0xff]
        %v1515 = vmul.f32 %v1466, %v1432
        %v1516 = vmul.f32 %v1467, %v1433
        %v1517 = vmul.f32 %v1468, %v1434
        %v1518 = vmul.f32 %v1469, %v1435
        %v1519 = vmul.f32 %v1470, %v1436
        %v1520 = vmul.f32 %v1471, %v1437
        %v1521 = vmul.f32 %v1472, %v1438
        %v1522 = vmul.f32 %v1473, %v1439
        %v1523 = vmul.f32 %v1474, %v1440
        %v1524 = vmul.f32 %v1475, %v1441
        %v1525 = vmul.f32 %v1476, %v1442
        %v1526 = vmul.f32 %v1477, %v1443
        %v1527 = vmul.f32 %v1478, %v1444
        %v1528 = vmul.f32 %v1479, %v1445
        %v1529 = vmul.f32 %v1480, %v1446
        %v1530 = vmul.f32 %v1481, %v1447
        %v1531 = vmul.f32 %v1483, %v1448
        %v1532 = vmul.f32 %v1484, %v1449
        %v1533 = vmul.f32 %v1485, %v1450
        %v1534 = vmul.f32 %v1486, %v1451
        %v1535 = vmul.f32 %v1487, %v1452
        %v1536 = vmul.f32 %v1488, %v1453
        %v1537 = vmul.f32 %v1489, %v1454
        %v1538 = vmul.f32 %v1490, %v1455
        %v1539 = vmul.f32 %v1491, %v1456
        %v1540 = vmul.f32 %v1492, %v1457
        %v1541 = vmul.f32 %v1493, %v1458
        %v1542 = vmul.f32 %v1494, %v1459
        %v1543 = vmul.f32 %v1495, %v1460
        %v1544 = vmul.f32 %v1496, %v1461
        %v1545 = vmul.f32 %v1497, %v1462
        %v1546 = vmul.f32 %v1498, %v1463
        %v1547 = vsub.f32 %v1515, %v1531
        %v1548 = vsub.f32 %v1516, %v1532
        %v1549 = vsub.f32 %v1517, %v1533
        %v1550 = vsub.f32 %v1518, %v1534
        %v1551 = vsub.f32 %v1519, %v1535
        %v1552 = vsub.f32 %v1520, %v1536
        %v1553 = vsub.f32 %v1521, %v1537
        %v1554 = vsub.f32 %v1522, %v1538
        %v1555 = vsub.f32 %v1523, %v1539
        %v1556 = vsub.f32 %v1524, %v1540
        %v1557 = vsub.f32 %v1525, %v1541
        %v1558 = vsub.f32 %v1526, %v1542
        %v1559 = vsub.f32 %v1527, %v1543
        %v1560 = vsub.f32 %v1528, %v1544
        %v1561 = vsub.f32 %v1529, %v1545
        %v1562 = vsub.f32 %v1530, %v1546
        %v1563 = vmul.f32 %v1466, %v1448
        %v1564 = vmul.f32 %v1467, %v1449
        %v1565 = vmul.f32 %v1468, %v1450
        %v1566 = vmul.f32 %v1469, %v1451
        %v1567 = vmul.f32 %v1470, %v1452
        %v1568 = vmul.f32 %v1471, %v1453
        %v1569 = vmul.f32 %v1472, %v1454
        %v1570 = vmul.f32 %v1473, %v1455
        %v1571 = vmul.f32 %v1474, %v1456
        %v1572 = vmul.f32 %v1475, %v1457
        %v1573 = vmul.f32 %v1476, %v1458
        %v1574 = vmul.f32 %v1477, %v1459
        %v1575 = vmul.f32 %v1478, %v1460
        %v1576 = vmul.f32 %v1479, %v1461
        %v1577 = vmul.f32 %v1480, %v1462
        %v1578 = vmul.f32 %v1481, %v1463
        %v1579 = vmul.f32 %v1483, %v1432
        %v1580 = vmul.f32 %v1484, %v1433
        %v1581 = vmul.f32 %v1485, %v1434
        %v1582 = vmul.f32 %v1486, %v1435
        %v1583 = vmul.f32 %v1487, %v1436
        %v1584 = vmul.f32 %v1488, %v1437
        %v1585 = vmul.f32 %v1489, %v1438
        %v1586 = vmul.f32 %v1490, %v1439
        %v1587 = vmul.f32 %v1491, %v1440
        %v1588 = vmul.f32 %v1492, %v1441
        %v1589 = vmul.f32 %v1493, %v1442
        %v1590 = vmul.f32 %v1494, %v1443
        %v1591 = vmul.f32 %v1495, %v1444
        %v1592 = vmul.f32 %v1496, %v1445
        %v1593 = vmul.f32 %v1497, %v1446
        %v1594 = vmul.f32 %v1498, %v1447
        %v1595 = vadd.f32 %v1563, %v1579
        %v1596 = vadd.f32 %v1564, %v1580
        %v1597 = vadd.f32 %v1565, %v1581
        %v1598 = vadd.f32 %v1566, %v1582
        %v1599 = vadd.f32 %v1567, %v1583
        %v1600 = vadd.f32 %v1568, %v1584
        %v1601 = vadd.f32 %v1569, %v1585
        %v1602 = vadd.f32 %v1570, %v1586
        %v1603 = vadd.f32 %v1571, %v1587
        %v1604 = vadd.f32 %v1572, %v1588
        %v1605 = vadd.f32 %v1573, %v1589
        %v1606 = vadd.f32 %v1574, %v1590
        %v1607 = vadd.f32 %v1575, %v1591
        %v1608 = vadd.f32 %v1576, %v1592
        %v1609 = vadd.f32 %v1577, %v1593
        %v1610 = vadd.f32 %v1578, %v1594
        %v1611 = vpack.c.bf16 %v1548, %v1547
        %v1612 = vpack.c.bf16 %v1550, %v1549
        %v1613 = vpack.c.bf16 %v1552, %v1551
        %v1614 = vpack.c.bf16 %v1554, %v1553
        %v1615 = vpack.c.bf16 %v1556, %v1555
        %v1616 = vpack.c.bf16 %v1558, %v1557
        %v1617 = vpack.c.bf16 %v1560, %v1559
        %v1618 = vpack.c.bf16 %v1562, %v1561
        %v1619 = vpack.c.bf16 %v1596, %v1595
        %v1620 = vpack.c.bf16 %v1598, %v1597
        %v1621 = vpack.c.bf16 %v1600, %v1599
        %v1622 = vpack.c.bf16 %v1602, %v1601
        %v1623 = vpack.c.bf16 %v1604, %v1603
        %v1624 = vpack.c.bf16 %v1606, %v1605
        %v1625 = vpack.c.bf16 %v1608, %v1607
        %v1626 = vpack.c.bf16 %v1610, %v1609
        %v1643 = vunpack.c.l.b16 %v144
        %v1644 = vunpack.c.l.b16 %v145
        %v1645 = vunpack.c.l.b16 %v146
        %v1646 = vunpack.c.l.b16 %v147
        %v1647 = vunpack.c.l.b16 %v148
        %v1648 = vunpack.c.l.b16 %v149
        %v1649 = vunpack.c.l.b16 %v150
        %v1650 = vunpack.c.l.b16 %v151
        %v1651 = vunpack.c.l.b16 %v152
        %v1652 = vunpack.c.l.b16 %v153
        %v1653 = vunpack.c.l.b16 %v154
        %v1654 = vunpack.c.l.b16 %v155
        %v1655 = vunpack.c.l.b16 %v156
        %v1656 = vunpack.c.l.b16 %v157
        %v1657 = vunpack.c.l.b16 %v158
        %v1658 = vunpack.c.l.b16 %v159
        %v1659 = vpack.c.b16 %v1644, %v1643
        %v1660 = vpack.c.b16 %v1646, %v1645
        %v1661 = vpack.c.b16 %v1648, %v1647
        %v1662 = vpack.c.b16 %v1650, %v1649
        %v1663 = vpack.c.b16 %v1652, %v1651
        %v1664 = vpack.c.b16 %v1654, %v1653
        %v1665 = vpack.c.b16 %v1656, %v1655
        %v1666 = vpack.c.b16 %v1658, %v1657
        %1675 = vmatpush.bf16.msra.mxu0 %v1618
        %1676 = vmatpush.bf16.msra.mxu0 %v1617
        %1677 = vmatpush.bf16.msra.mxu0 %v1616
        %1678 = vmatpush.bf16.msra.mxu0 %v1615
        %1679 = vmatpush.bf16.msra.mxu0 %v1614
        %1680 = vmatpush.bf16.msra.mxu0 %v1613
        %1681 = vmatpush.bf16.msra.mxu0 %v1612
        %1682 = vmatpush.bf16.msra.mxu0 %v1611
        %1683 = vmatmul.bf16.gmra.mxu0 %v1659
        %v1684 = vpop.f32.mrf.mxu0
        %v1685 = vadd.f32 0.0, %v1684
        %v1686 = vpop.f32.mrf.mxu0
        %v1687 = vadd.f32 0.0, %v1686
        %1688 = vmatmul.bf16.gmra.mxu0 %v1660
        %v1689 = vpop.f32.mrf.mxu0
        %v1690 = vadd.f32 0.0, %v1689
        %v1691 = vpop.f32.mrf.mxu0
        %v1692 = vadd.f32 0.0, %v1691
        %1693 = vmatmul.bf16.gmra.mxu0 %v1661
        %v1694 = vpop.f32.mrf.mxu0
        %v1695 = vadd.f32 0.0, %v1694
        %v1696 = vpop.f32.mrf.mxu0
        %v1697 = vadd.f32 0.0, %v1696
        %1698 = vmatmul.bf16.gmra.mxu0 %v1662
        %v1699 = vpop.f32.mrf.mxu0
        %v1700 = vadd.f32 0.0, %v1699
        %v1701 = vpop.f32.mrf.mxu0
        %v1702 = vadd.f32 0.0, %v1701
        %1703 = vmatmul.bf16.gmra.mxu0 %v1663
        %v1704 = vpop.f32.mrf.mxu0
        %v1705 = vadd.f32 0.0, %v1704
        %v1706 = vpop.f32.mrf.mxu0
        %v1707 = vadd.f32 0.0, %v1706
        %1708 = vmatmul.bf16.gmra.mxu0 %v1664
        %v1709 = vpop.f32.mrf.mxu0
        %v1710 = vadd.f32 0.0, %v1709
        %v1711 = vpop.f32.mrf.mxu0
        %v1712 = vadd.f32 0.0, %v1711
        %1713 = vmatmul.bf16.gmra.mxu0 %v1665
        %v1714 = vpop.f32.mrf.mxu0
        %v1715 = vadd.f32 0.0, %v1714
        %v1716 = vpop.f32.mrf.mxu0
        %v1717 = vadd.f32 0.0, %v1716
        %1718 = vmatmul.bf16.gmra.mxu0 %v1666
        %v1719 = vpop.f32.mrf.mxu0
        %v1720 = vadd.f32 0.0, %v1719
        %v1721 = vpop.f32.mrf.mxu0
        %v1722 = vadd.f32 0.0, %v1721
        %1723 = vdwg.mxu0
        %1724 = vmatpush.bf16.msra.mxu0 %v1626
        %1725 = vmatpush.bf16.msra.mxu0 %v1625
        %1726 = vmatpush.bf16.msra.mxu0 %v1624
        %1727 = vmatpush.bf16.msra.mxu0 %v1623
        %1728 = vmatpush.bf16.msra.mxu0 %v1622
        %1729 = vmatpush.bf16.msra.mxu0 %v1621
        %1730 = vmatpush.bf16.msra.mxu0 %v1620
        %1731 = vmatpush.bf16.msra.mxu0 %v1619
        %1732 = vmatmul.bf16.gmra.mxu0 %v240
        %v1733 = vpop.f32.mrf.mxu0
        %v1734 = vadd.f32 0.0, %v1733
        %v1735 = vpop.f32.mrf.mxu0
        %v1736 = vadd.f32 0.0, %v1735
        %1737 = vmatmul.bf16.gmra.mxu0 %v241
        %v1738 = vpop.f32.mrf.mxu0
        %v1739 = vadd.f32 0.0, %v1738
        %v1740 = vpop.f32.mrf.mxu0
        %v1741 = vadd.f32 0.0, %v1740
        %1742 = vmatmul.bf16.gmra.mxu0 %v242
        %v1743 = vpop.f32.mrf.mxu0
        %v1744 = vadd.f32 0.0, %v1743
        %v1745 = vpop.f32.mrf.mxu0
        %v1746 = vadd.f32 0.0, %v1745
        %1747 = vmatmul.bf16.gmra.mxu0 %v243
        %v1748 = vpop.f32.mrf.mxu0
        %v1749 = vadd.f32 0.0, %v1748
        %v1750 = vpop.f32.mrf.mxu0
        %v1751 = vadd.f32 0.0, %v1750
        %1752 = vmatmul.bf16.gmra.mxu0 %v244
        %v1753 = vpop.f32.mrf.mxu0
        %v1754 = vadd.f32 0.0, %v1753
        %v1755 = vpop.f32.mrf.mxu0
        %v1756 = vadd.f32 0.0, %v1755
        %1757 = vmatmul.bf16.gmra.mxu0 %v245
        %v1758 = vpop.f32.mrf.mxu0
        %v1759 = vadd.f32 0.0, %v1758
        %v1760 = vpop.f32.mrf.mxu0
        %v1761 = vadd.f32 0.0, %v1760
        %1762 = vmatmul.bf16.gmra.mxu0 %v246
        %v1763 = vpop.f32.mrf.mxu0
        %v1764 = vadd.f32 0.0, %v1763
        %v1765 = vpop.f32.mrf.mxu0
        %v1766 = vadd.f32 0.0, %v1765
        %1767 = vmatmul.bf16.gmra.mxu0 %v247
        %v1768 = vpop.f32.mrf.mxu0
        %v1769 = vadd.f32 0.0, %v1768
        %v1770 = vpop.f32.mrf.mxu0
        %v1771 = vadd.f32 0.0, %v1770
        %1772 = vdwg.mxu0
        %v1773 = vsub.f32 %v1685, %v1734
        %v1774 = vsub.f32 %v1687, %v1736
        %v1775 = vsub.f32 %v1690, %v1739
        %v1776 = vsub.f32 %v1692, %v1741
        %v1777 = vsub.f32 %v1695, %v1744
        %v1778 = vsub.f32 %v1697, %v1746
        %v1779 = vsub.f32 %v1700, %v1749
        %v1780 = vsub.f32 %v1702, %v1751
        %v1781 = vsub.f32 %v1705, %v1754
        %v1782 = vsub.f32 %v1707, %v1756
        %v1783 = vsub.f32 %v1710, %v1759
        %v1784 = vsub.f32 %v1712, %v1761
        %v1785 = vsub.f32 %v1715, %v1764
        %v1786 = vsub.f32 %v1717, %v1766
        %v1787 = vsub.f32 %v1720, %v1769
        %v1788 = vsub.f32 %v1722, %v1771
        %1789 = vmatpush.bf16.msra.mxu0 %v1618
        %1790 = vmatpush.bf16.msra.mxu0 %v1617
        %1791 = vmatpush.bf16.msra.mxu0 %v1616
        %1792 = vmatpush.bf16.msra.mxu0 %v1615
        %1793 = vmatpush.bf16.msra.mxu0 %v1614
        %1794 = vmatpush.bf16.msra.mxu0 %v1613
        %1795 = vmatpush.bf16.msra.mxu0 %v1612
        %1796 = vmatpush.bf16.msra.mxu0 %v1611
        %1797 = vmatmul.bf16.gmra.mxu0 %v240
        %v1798 = vpop.f32.mrf.mxu0
        %v1799 = vadd.f32 0.0, %v1798
        %v1800 = vpop.f32.mrf.mxu0
        %v1801 = vadd.f32 0.0, %v1800
        %1802 = vmatmul.bf16.gmra.mxu0 %v241
        %v1803 = vpop.f32.mrf.mxu0
        %v1804 = vadd.f32 0.0, %v1803
        %v1805 = vpop.f32.mrf.mxu0
        %v1806 = vadd.f32 0.0, %v1805
        %1807 = vmatmul.bf16.gmra.mxu0 %v242
        %v1808 = vpop.f32.mrf.mxu0
        %v1809 = vadd.f32 0.0, %v1808
        %v1810 = vpop.f32.mrf.mxu0
        %v1811 = vadd.f32 0.0, %v1810
        %1812 = vmatmul.bf16.gmra.mxu0 %v243
        %v1813 = vpop.f32.mrf.mxu0
        %v1814 = vadd.f32 0.0, %v1813
        %v1815 = vpop.f32.mrf.mxu0
        %v1816 = vadd.f32 0.0, %v1815
        %1817 = vmatmul.bf16.gmra.mxu0 %v244
        %v1818 = vpop.f32.mrf.mxu0
        %v1819 = vadd.f32 0.0, %v1818
        %v1820 = vpop.f32.mrf.mxu0
        %v1821 = vadd.f32 0.0, %v1820
        %1822 = vmatmul.bf16.gmra.mxu0 %v245
        %v1823 = vpop.f32.mrf.mxu0
        %v1824 = vadd.f32 0.0, %v1823
        %v1825 = vpop.f32.mrf.mxu0
        %v1826 = vadd.f32 0.0, %v1825
        %1827 = vmatmul.bf16.gmra.mxu0 %v246
        %v1828 = vpop.f32.mrf.mxu0
        %v1829 = vadd.f32 0.0, %v1828
        %v1830 = vpop.f32.mrf.mxu0
        %v1831 = vadd.f32 0.0, %v1830
        %1832 = vmatmul.bf16.gmra.mxu0 %v247
        %v1833 = vpop.f32.mrf.mxu0
        %v1834 = vadd.f32 0.0, %v1833
        %v1835 = vpop.f32.mrf.mxu0
        %v1836 = vadd.f32 0.0, %v1835
        %1837 = vdwg.mxu0
        %1838 = vmatpush.bf16.msra.mxu0 %v1626
        %1839 = vmatpush.bf16.msra.mxu0 %v1625
        %1840 = vmatpush.bf16.msra.mxu0 %v1624
        %1841 = vmatpush.bf16.msra.mxu0 %v1623
        %1842 = vmatpush.bf16.msra.mxu0 %v1622
        %1843 = vmatpush.bf16.msra.mxu0 %v1621
        %1844 = vmatpush.bf16.msra.mxu0 %v1620
        %1845 = vmatpush.bf16.msra.mxu0 %v1619
        %1846 = vmatmul.bf16.gmra.mxu0 %v1659
        %v1847 = vpop.f32.mrf.mxu0
        %v1848 = vadd.f32 %v1799, %v1847
        %v1849 = vpop.f32.mrf.mxu0
        %v1850 = vadd.f32 %v1801, %v1849
        %1851 = vmatmul.bf16.gmra.mxu0 %v1660
        %v1852 = vpop.f32.mrf.mxu0
        %v1853 = vadd.f32 %v1804, %v1852
        %v1854 = vpop.f32.mrf.mxu0
        %v1855 = vadd.f32 %v1806, %v1854
        %1856 = vmatmul.bf16.gmra.mxu0 %v1661
        %v1857 = vpop.f32.mrf.mxu0
        %v1858 = vadd.f32 %v1809, %v1857
        %v1859 = vpop.f32.mrf.mxu0
        %v1860 = vadd.f32 %v1811, %v1859
        %1861 = vmatmul.bf16.gmra.mxu0 %v1662
        %v1862 = vpop.f32.mrf.mxu0
        %v1863 = vadd.f32 %v1814, %v1862
        %v1864 = vpop.f32.mrf.mxu0
        %v1865 = vadd.f32 %v1816, %v1864
        %1866 = vmatmul.bf16.gmra.mxu0 %v1663
        %v1867 = vpop.f32.mrf.mxu0
        %v1868 = vadd.f32 %v1819, %v1867
        %v1869 = vpop.f32.mrf.mxu0
        %v1870 = vadd.f32 %v1821, %v1869
        %1871 = vmatmul.bf16.gmra.mxu0 %v1664
        %v1872 = vpop.f32.mrf.mxu0
        %v1873 = vadd.f32 %v1824, %v1872
        %v1874 = vpop.f32.mrf.mxu0
        %v1875 = vadd.f32 %v1826, %v1874
        %1876 = vmatmul.bf16.gmra.mxu0 %v1665
        %v1877 = vpop.f32.mrf.mxu0
        %v1878 = vadd.f32 %v1829, %v1877
        %v1879 = vpop.f32.mrf.mxu0
        %v1880 = vadd.f32 %v1831, %v1879
        %1881 = vmatmul.bf16.gmra.mxu0 %v1666
        %v1882 = vpop.f32.mrf.mxu0
        %v1883 = vadd.f32 %v1834, %v1882
        %v1884 = vpop.f32.mrf.mxu0
        %v1885 = vadd.f32 %v1836, %v1884
        %1886 = vdwg.mxu0
        %v1887 = vpack.c.bf16 %v1774, %v1773
        %v1888 = vpack.c.bf16 %v1776, %v1775
        %v1889 = vpack.c.bf16 %v1778, %v1777
        %v1890 = vpack.c.bf16 %v1780, %v1779
        %v1891 = vpack.c.bf16 %v1782, %v1781
        %v1892 = vpack.c.bf16 %v1784, %v1783
        %v1893 = vpack.c.bf16 %v1786, %v1785
        %v1894 = vpack.c.bf16 %v1788, %v1787
        %v1895 = vpack.c.bf16 %v1850, %v1848
        %v1896 = vpack.c.bf16 %v1855, %v1853
        %v1897 = vpack.c.bf16 %v1860, %v1858
        %v1898 = vpack.c.bf16 %v1865, %v1863
        %v1899 = vpack.c.bf16 %v1870, %v1868
        %v1900 = vpack.c.bf16 %v1875, %v1873
        %v1901 = vpack.c.bf16 %v1880, %v1878
        %v1902 = vpack.c.bf16 %v1885, %v1883
        %v1919 = vunpack.c.l.b16 %v176
        %v1920 = vunpack.c.l.b16 %v177
        %v1921 = vunpack.c.l.b16 %v178
        %v1922 = vunpack.c.l.b16 %v179
        %v1923 = vunpack.c.l.b16 %v180
        %v1924 = vunpack.c.l.b16 %v181
        %v1925 = vunpack.c.l.b16 %v182
        %v1926 = vunpack.c.l.b16 %v183
        %v1927 = vunpack.c.l.b16 %v184
        %v1928 = vunpack.c.l.b16 %v185
        %v1929 = vunpack.c.l.b16 %v186
        %v1930 = vunpack.c.l.b16 %v187
        %v1931 = vunpack.c.l.b16 %v188
        %v1932 = vunpack.c.l.b16 %v189
        %v1933 = vunpack.c.l.b16 %v190
        %v1934 = vunpack.c.l.b16 %v191
        %v1935 = vpack.c.b16 %v1920, %v1919
        %v1936 = vpack.c.b16 %v1922, %v1921
        %v1937 = vpack.c.b16 %v1924, %v1923
        %v1938 = vpack.c.b16 %v1926, %v1925
        %v1939 = vpack.c.b16 %v1928, %v1927
        %v1940 = vpack.c.b16 %v1930, %v1929
        %v1941 = vpack.c.b16 %v1932, %v1931
        %v1942 = vpack.c.b16 %v1934, %v1933
        %1951 = vmatpush.bf16.msra.mxu0 %v1942
        %1952 = vmatpush.bf16.msra.mxu0 %v1941
        %1953 = vmatpush.bf16.msra.mxu0 %v1940
        %1954 = vmatpush.bf16.msra.mxu0 %v1939
        %1955 = vmatpush.bf16.msra.mxu0 %v1938
        %1956 = vmatpush.bf16.msra.mxu0 %v1937
        %1957 = vmatpush.bf16.msra.mxu0 %v1936
        %1958 = vmatpush.bf16.msra.mxu0 %v1935
        %1959 = vmatmul.bf16.gmra.mxu0 %v1887
        %v1960 = vpop.f32.mrf.mxu0
        %v1961 = vadd.f32 0.0, %v1960
        %v1962 = vpop.f32.mrf.mxu0
        %v1963 = vadd.f32 0.0, %v1962
        %1964 = vmatmul.bf16.gmra.mxu0 %v1888
        %v1965 = vpop.f32.mrf.mxu0
        %v1966 = vadd.f32 0.0, %v1965
        %v1967 = vpop.f32.mrf.mxu0
        %v1968 = vadd.f32 0.0, %v1967
        %1969 = vmatmul.bf16.gmra.mxu0 %v1889
        %v1970 = vpop.f32.mrf.mxu0
        %v1971 = vadd.f32 0.0, %v1970
        %v1972 = vpop.f32.mrf.mxu0
        %v1973 = vadd.f32 0.0, %v1972
        %1974 = vmatmul.bf16.gmra.mxu0 %v1890
        %v1975 = vpop.f32.mrf.mxu0
        %v1976 = vadd.f32 0.0, %v1975
        %v1977 = vpop.f32.mrf.mxu0
        %v1978 = vadd.f32 0.0, %v1977
        %1979 = vmatmul.bf16.gmra.mxu0 %v1891
        %v1980 = vpop.f32.mrf.mxu0
        %v1981 = vadd.f32 0.0, %v1980
        %v1982 = vpop.f32.mrf.mxu0
        %v1983 = vadd.f32 0.0, %v1982
        %1984 = vmatmul.bf16.gmra.mxu0 %v1892
        %v1985 = vpop.f32.mrf.mxu0
        %v1986 = vadd.f32 0.0, %v1985
        %v1987 = vpop.f32.mrf.mxu0
        %v1988 = vadd.f32 0.0, %v1987
        %1989 = vmatmul.bf16.gmra.mxu0 %v1893
        %v1990 = vpop.f32.mrf.mxu0
        %v1991 = vadd.f32 0.0, %v1990
        %v1992 = vpop.f32.mrf.mxu0
        %v1993 = vadd.f32 0.0, %v1992
        %1994 = vmatmul.bf16.gmra.mxu0 %v1894
        %v1995 = vpop.f32.mrf.mxu0
        %v1996 = vadd.f32 0.0, %v1995
        %v1997 = vpop.f32.mrf.mxu0
        %v1998 = vadd.f32 0.0, %v1997
        %1999 = vdwg.mxu0
        %2000 = vmatpush.bf16.msra.mxu0 %v287
        %2001 = vmatpush.bf16.msra.mxu0 %v286
        %2002 = vmatpush.bf16.msra.mxu0 %v285
        %2003 = vmatpush.bf16.msra.mxu0 %v284
        %2004 = vmatpush.bf16.msra.mxu0 %v283
        %2005 = vmatpush.bf16.msra.mxu0 %v282
        %2006 = vmatpush.bf16.msra.mxu0 %v281
        %2007 = vmatpush.bf16.msra.mxu0 %v280
        %2008 = vmatmul.bf16.gmra.mxu0 %v1895
        %v2009 = vpop.f32.mrf.mxu0
        %v2010 = vadd.f32 0.0, %v2009
        %v2011 = vpop.f32.mrf.mxu0
        %v2012 = vadd.f32 0.0, %v2011
        %2013 = vmatmul.bf16.gmra.mxu0 %v1896
        %v2014 = vpop.f32.mrf.mxu0
        %v2015 = vadd.f32 0.0, %v2014
        %v2016 = vpop.f32.mrf.mxu0
        %v2017 = vadd.f32 0.0, %v2016
        %2018 = vmatmul.bf16.gmra.mxu0 %v1897
        %v2019 = vpop.f32.mrf.mxu0
        %v2020 = vadd.f32 0.0, %v2019
        %v2021 = vpop.f32.mrf.mxu0
        %v2022 = vadd.f32 0.0, %v2021
        %2023 = vmatmul.bf16.gmra.mxu0 %v1898
        %v2024 = vpop.f32.mrf.mxu0
        %v2025 = vadd.f32 0.0, %v2024
        %v2026 = vpop.f32.mrf.mxu0
        %v2027 = vadd.f32 0.0, %v2026
        %2028 = vmatmul.bf16.gmra.mxu0 %v1899
        %v2029 = vpop.f32.mrf.mxu0
        %v2030 = vadd.f32 0.0, %v2029
        %v2031 = vpop.f32.mrf.mxu0
        %v2032 = vadd.f32 0.0, %v2031
        %2033 = vmatmul.bf16.gmra.mxu0 %v1900
        %v2034 = vpop.f32.mrf.mxu0
        %v2035 = vadd.f32 0.0, %v2034
        %v2036 = vpop.f32.mrf.mxu0
        %v2037 = vadd.f32 0.0, %v2036
        %2038 = vmatmul.bf16.gmra.mxu0 %v1901
        %v2039 = vpop.f32.mrf.mxu0
        %v2040 = vadd.f32 0.0, %v2039
        %v2041 = vpop.f32.mrf.mxu0
        %v2042 = vadd.f32 0.0, %v2041
        %2043 = vmatmul.bf16.gmra.mxu0 %v1902
        %v2044 = vpop.f32.mrf.mxu0
        %v2045 = vadd.f32 0.0, %v2044
        %v2046 = vpop.f32.mrf.mxu0
        %v2047 = vadd.f32 0.0, %v2046
        %2048 = vdwg.mxu0
        %v2049 = vsub.f32 %v1961, %v2010
        %v2050 = vsub.f32 %v1963, %v2012
        %v2051 = vsub.f32 %v1966, %v2015
        %v2052 = vsub.f32 %v1968, %v2017
        %v2053 = vsub.f32 %v1971, %v2020
        %v2054 = vsub.f32 %v1973, %v2022
        %v2055 = vsub.f32 %v1976, %v2025
        %v2056 = vsub.f32 %v1978, %v2027
        %v2057 = vsub.f32 %v1981, %v2030
        %v2058 = vsub.f32 %v1983, %v2032
        %v2059 = vsub.f32 %v1986, %v2035
        %v2060 = vsub.f32 %v1988, %v2037
        %v2061 = vsub.f32 %v1991, %v2040
        %v2062 = vsub.f32 %v1993, %v2042
        %v2063 = vsub.f32 %v1996, %v2045
        %v2064 = vsub.f32 %v1998, %v2047
        %2065 = vmatpush.bf16.msra.mxu0 %v287
        %2066 = vmatpush.bf16.msra.mxu0 %v286
        %2067 = vmatpush.bf16.msra.mxu0 %v285
        %2068 = vmatpush.bf16.msra.mxu0 %v284
        %2069 = vmatpush.bf16.msra.mxu0 %v283
        %2070 = vmatpush.bf16.msra.mxu0 %v282
        %2071 = vmatpush.bf16.msra.mxu0 %v281
        %2072 = vmatpush.bf16.msra.mxu0 %v280
        %2073 = vmatmul.bf16.gmra.mxu0 %v1887
        %v2074 = vpop.f32.mrf.mxu0
        %v2075 = vadd.f32 0.0, %v2074
        %v2076 = vpop.f32.mrf.mxu0
        %v2077 = vadd.f32 0.0, %v2076
        %2078 = vmatmul.bf16.gmra.mxu0 %v1888
        %v2079 = vpop.f32.mrf.mxu0
        %v2080 = vadd.f32 0.0, %v2079
        %v2081 = vpop.f32.mrf.mxu0
        %v2082 = vadd.f32 0.0, %v2081
        %2083 = vmatmul.bf16.gmra.mxu0 %v1889
        %v2084 = vpop.f32.mrf.mxu0
        %v2085 = vadd.f32 0.0, %v2084
        %v2086 = vpop.f32.mrf.mxu0
        %v2087 = vadd.f32 0.0, %v2086
        %2088 = vmatmul.bf16.gmra.mxu0 %v1890
        %v2089 = vpop.f32.mrf.mxu0
        %v2090 = vadd.f32 0.0, %v2089
        %v2091 = vpop.f32.mrf.mxu0
        %v2092 = vadd.f32 0.0, %v2091
        %2093 = vmatmul.bf16.gmra.mxu0 %v1891
        %v2094 = vpop.f32.mrf.mxu0
        %v2095 = vadd.f32 0.0, %v2094
        %v2096 = vpop.f32.mrf.mxu0
        %v2097 = vadd.f32 0.0, %v2096
        %2098 = vmatmul.bf16.gmra.mxu0 %v1892
        %v2099 = vpop.f32.mrf.mxu0
        %v2100 = vadd.f32 0.0, %v2099
        %v2101 = vpop.f32.mrf.mxu0
        %v2102 = vadd.f32 0.0, %v2101
        %2103 = vmatmul.bf16.gmra.mxu0 %v1893
        %v2104 = vpop.f32.mrf.mxu0
        %v2105 = vadd.f32 0.0, %v2104
        %v2106 = vpop.f32.mrf.mxu0
        %v2107 = vadd.f32 0.0, %v2106
        %2108 = vmatmul.bf16.gmra.mxu0 %v1894
        %v2109 = vpop.f32.mrf.mxu0
        %v2110 = vadd.f32 0.0, %v2109
        %v2111 = vpop.f32.mrf.mxu0
        %v2112 = vadd.f32 0.0, %v2111
        %2113 = vdwg.mxu0
        %2114 = vmatpush.bf16.msra.mxu0 %v1942
        %2115 = vmatpush.bf16.msra.mxu0 %v1941
        %2116 = vmatpush.bf16.msra.mxu0 %v1940
        %2117 = vmatpush.bf16.msra.mxu0 %v1939
        %2118 = vmatpush.bf16.msra.mxu0 %v1938
        %2119 = vmatpush.bf16.msra.mxu0 %v1937
        %2120 = vmatpush.bf16.msra.mxu0 %v1936
        %2121 = vmatpush.bf16.msra.mxu0 %v1935
        %2122 = vmatmul.bf16.gmra.mxu0 %v1895
        %v2123 = vpop.f32.mrf.mxu0
        %v2124 = vadd.f32 %v2075, %v2123
        %v2125 = vpop.f32.mrf.mxu0
        %v2126 = vadd.f32 %v2077, %v2125
        %2127 = vmatmul.bf16.gmra.mxu0 %v1896
        %v2128 = vpop.f32.mrf.mxu0
        %v2129 = vadd.f32 %v2080, %v2128
        %v2130 = vpop.f32.mrf.mxu0
        %v2131 = vadd.f32 %v2082, %v2130
        %2132 = vmatmul.bf16.gmra.mxu0 %v1897
        %v2133 = vpop.f32.mrf.mxu0
        %v2134 = vadd.f32 %v2085, %v2133
        %v2135 = vpop.f32.mrf.mxu0
        %v2136 = vadd.f32 %v2087, %v2135
        %2137 = vmatmul.bf16.gmra.mxu0 %v1898
        %v2138 = vpop.f32.mrf.mxu0
        %v2139 = vadd.f32 %v2090, %v2138
        %v2140 = vpop.f32.mrf.mxu0
        %v2141 = vadd.f32 %v2092, %v2140
        %2142 = vmatmul.bf16.gmra.mxu0 %v1899
        %v2143 = vpop.f32.mrf.mxu0
        %v2144 = vadd.f32 %v2095, %v2143
        %v2145 = vpop.f32.mrf.mxu0
        %v2146 = vadd.f32 %v2097, %v2145
        %2147 = vmatmul.bf16.gmra.mxu0 %v1900
        %v2148 = vpop.f32.mrf.mxu0
        %v2149 = vadd.f32 %v2100, %v2148
        %v2150 = vpop.f32.mrf.mxu0
        %v2151 = vadd.f32 %v2102, %v2150
        %2152 = vmatmul.bf16.gmra.mxu0 %v1901
        %v2153 = vpop.f32.mrf.mxu0
        %v2154 = vadd.f32 %v2105, %v2153
        %v2155 = vpop.f32.mrf.mxu0
        %v2156 = vadd.f32 %v2107, %v2155
        %2157 = vmatmul.bf16.gmra.mxu0 %v1902
        %v2158 = vpop.f32.mrf.mxu0
        %v2159 = vadd.f32 %v2110, %v2158
        %v2160 = vpop.f32.mrf.mxu0
        %v2161 = vadd.f32 %v2112, %v2160
        %2162 = vdwg.mxu0
        %v2163 = vmul.f32 %v2049, %v1499
        %v2164 = vmul.f32 %v2050, %v1500
        %v2165 = vmul.f32 %v2051, %v1501
        %v2166 = vmul.f32 %v2052, %v1502
        %v2167 = vmul.f32 %v2053, %v1503
        %v2168 = vmul.f32 %v2054, %v1504
        %v2169 = vmul.f32 %v2055, %v1505
        %v2170 = vmul.f32 %v2056, %v1506
        %v2171 = vmul.f32 %v2057, %v1507
        %v2172 = vmul.f32 %v2058, %v1508
        %v2173 = vmul.f32 %v2059, %v1509
        %v2174 = vmul.f32 %v2060, %v1510
        %v2175 = vmul.f32 %v2061, %v1511
        %v2176 = vmul.f32 %v2062, %v1512
        %v2177 = vmul.f32 %v2063, %v1513
        %v2178 = vmul.f32 %v2064, %v1514
        %v2179 = vmul.f32 %v2124, %v1499
        %v2180 = vmul.f32 %v2126, %v1500
        %v2181 = vmul.f32 %v2129, %v1501
        %v2182 = vmul.f32 %v2131, %v1502
        %v2183 = vmul.f32 %v2134, %v1503
        %v2184 = vmul.f32 %v2136, %v1504
        %v2185 = vmul.f32 %v2139, %v1505
        %v2186 = vmul.f32 %v2141, %v1506
        %v2187 = vmul.f32 %v2144, %v1507
        %v2188 = vmul.f32 %v2146, %v1508
        %v2189 = vmul.f32 %v2149, %v1509
        %v2190 = vmul.f32 %v2151, %v1510
        %v2191 = vmul.f32 %v2154, %v1511
        %v2192 = vmul.f32 %v2156, %v1512
        %v2193 = vmul.f32 %v2159, %v1513
        %v2194 = vmul.f32 %v2161, %v1514
        %v2195 = vpack.c.bf16 %v2164, %v2163
        %v2196 = vpack.c.bf16 %v2166, %v2165
        %v2197 = vpack.c.bf16 %v2168, %v2167
        %v2198 = vpack.c.bf16 %v2170, %v2169
        %v2199 = vpack.c.bf16 %v2172, %v2171
        %v2200 = vpack.c.bf16 %v2174, %v2173
        %v2201 = vpack.c.bf16 %v2176, %v2175
        %v2202 = vpack.c.bf16 %v2178, %v2177
        %v2203 = vpack.c.bf16 %v2180, %v2179
        %v2204 = vpack.c.bf16 %v2182, %v2181
        %v2205 = vpack.c.bf16 %v2184, %v2183
        %v2206 = vpack.c.bf16 %v2186, %v2185
        %v2207 = vpack.c.bf16 %v2188, %v2187
        %v2208 = vpack.c.bf16 %v2190, %v2189
        %v2209 = vpack.c.bf16 %v2192, %v2191
        %v2210 = vpack.c.bf16 %v2194, %v2193
        %2211 = vmatpush.bf16.msra.mxu0 %v2202
        %2212 = vmatpush.bf16.msra.mxu0 %v2201
        %2213 = vmatpush.bf16.msra.mxu0 %v2200
        %2214 = vmatpush.bf16.msra.mxu0 %v2199
        %2215 = vmatpush.bf16.msra.mxu0 %v2198
        %2216 = vmatpush.bf16.msra.mxu0 %v2197
        %2217 = vmatpush.bf16.msra.mxu0 %v2196
        %2218 = vmatpush.bf16.msra.mxu0 %v2195
        %2219 = vmatmul.bf16.gmra.mxu0 %v1659
        %v2220 = vpop.f32.mrf.mxu0
        %v2221 = vadd.f32 0.0, %v2220
        %v2222 = vpop.f32.mrf.mxu0
        %v2223 = vadd.f32 0.0, %v2222
        %2224 = vmatmul.bf16.gmra.mxu0 %v1660
        %v2225 = vpop.f32.mrf.mxu0
        %v2226 = vadd.f32 0.0, %v2225
        %v2227 = vpop.f32.mrf.mxu0
        %v2228 = vadd.f32 0.0, %v2227
        %2229 = vmatmul.bf16.gmra.mxu0 %v1661
        %v2230 = vpop.f32.mrf.mxu0
        %v2231 = vadd.f32 0.0, %v2230
        %v2232 = vpop.f32.mrf.mxu0
        %v2233 = vadd.f32 0.0, %v2232
        %2234 = vmatmul.bf16.gmra.mxu0 %v1662
        %v2235 = vpop.f32.mrf.mxu0
        %v2236 = vadd.f32 0.0, %v2235
        %v2237 = vpop.f32.mrf.mxu0
        %v2238 = vadd.f32 0.0, %v2237
        %2239 = vmatmul.bf16.gmra.mxu0 %v1663
        %v2240 = vpop.f32.mrf.mxu0
        %v2241 = vadd.f32 0.0, %v2240
        %v2242 = vpop.f32.mrf.mxu0
        %v2243 = vadd.f32 0.0, %v2242
        %2244 = vmatmul.bf16.gmra.mxu0 %v1664
        %v2245 = vpop.f32.mrf.mxu0
        %v2246 = vadd.f32 0.0, %v2245
        %v2247 = vpop.f32.mrf.mxu0
        %v2248 = vadd.f32 0.0, %v2247
        %2249 = vmatmul.bf16.gmra.mxu0 %v1665
        %v2250 = vpop.f32.mrf.mxu0
        %v2251 = vadd.f32 0.0, %v2250
        %v2252 = vpop.f32.mrf.mxu0
        %v2253 = vadd.f32 0.0, %v2252
        %2254 = vmatmul.bf16.gmra.mxu0 %v1666
        %v2255 = vpop.f32.mrf.mxu0
        %v2256 = vadd.f32 0.0, %v2255
        %v2257 = vpop.f32.mrf.mxu0
        %v2258 = vadd.f32 0.0, %v2257
        %2259 = vdwg.mxu0
        %v2276 = vunpack.c.l.b16 %v160
        %v2277 = vunpack.c.l.b16 %v161
        %v2278 = vunpack.c.l.b16 %v162
        %v2279 = vunpack.c.l.b16 %v163
        %v2280 = vunpack.c.l.b16 %v164
        %v2281 = vunpack.c.l.b16 %v165
        %v2282 = vunpack.c.l.b16 %v166
        %v2283 = vunpack.c.l.b16 %v167
        %v2284 = vunpack.c.l.b16 %v168
        %v2285 = vunpack.c.l.b16 %v169
        %v2286 = vunpack.c.l.b16 %v170
        %v2287 = vunpack.c.l.b16 %v171
        %v2288 = vunpack.c.l.b16 %v172
        %v2289 = vunpack.c.l.b16 %v173
        %v2290 = vunpack.c.l.b16 %v174
        %v2291 = vunpack.c.l.b16 %v175
        %v2292 = vpack.c.b16 %v2277, %v2276
        %v2293 = vpack.c.b16 %v2279, %v2278
        %v2294 = vpack.c.b16 %v2281, %v2280
        %v2295 = vpack.c.b16 %v2283, %v2282
        %v2296 = vpack.c.b16 %v2285, %v2284
        %v2297 = vpack.c.b16 %v2287, %v2286
        %v2298 = vpack.c.b16 %v2289, %v2288
        %v2299 = vpack.c.b16 %v2291, %v2290
        %2308 = vmatpush.bf16.msra.mxu0 %v2210
        %2309 = vmatpush.bf16.msra.mxu0 %v2209
        %2310 = vmatpush.bf16.msra.mxu0 %v2208
        %2311 = vmatpush.bf16.msra.mxu0 %v2207
        %2312 = vmatpush.bf16.msra.mxu0 %v2206
        %2313 = vmatpush.bf16.msra.mxu0 %v2205
        %2314 = vmatpush.bf16.msra.mxu0 %v2204
        %2315 = vmatpush.bf16.msra.mxu0 %v2203
        %2316 = vmatmul.bf16.gmra.mxu0 %v2292
        %v2317 = vpop.f32.mrf.mxu0
        %v2318 = vadd.f32 0.0, %v2317
        %v2319 = vpop.f32.mrf.mxu0
        %v2320 = vadd.f32 0.0, %v2319
        %2321 = vmatmul.bf16.gmra.mxu0 %v2293
        %v2322 = vpop.f32.mrf.mxu0
        %v2323 = vadd.f32 0.0, %v2322
        %v2324 = vpop.f32.mrf.mxu0
        %v2325 = vadd.f32 0.0, %v2324
        %2326 = vmatmul.bf16.gmra.mxu0 %v2294
        %v2327 = vpop.f32.mrf.mxu0
        %v2328 = vadd.f32 0.0, %v2327
        %v2329 = vpop.f32.mrf.mxu0
        %v2330 = vadd.f32 0.0, %v2329
        %2331 = vmatmul.bf16.gmra.mxu0 %v2295
        %v2332 = vpop.f32.mrf.mxu0
        %v2333 = vadd.f32 0.0, %v2332
        %v2334 = vpop.f32.mrf.mxu0
        %v2335 = vadd.f32 0.0, %v2334
        %2336 = vmatmul.bf16.gmra.mxu0 %v2296
        %v2337 = vpop.f32.mrf.mxu0
        %v2338 = vadd.f32 0.0, %v2337
        %v2339 = vpop.f32.mrf.mxu0
        %v2340 = vadd.f32 0.0, %v2339
        %2341 = vmatmul.bf16.gmra.mxu0 %v2297
        %v2342 = vpop.f32.mrf.mxu0
        %v2343 = vadd.f32 0.0, %v2342
        %v2344 = vpop.f32.mrf.mxu0
        %v2345 = vadd.f32 0.0, %v2344
        %2346 = vmatmul.bf16.gmra.mxu0 %v2298
        %v2347 = vpop.f32.mrf.mxu0
        %v2348 = vadd.f32 0.0, %v2347
        %v2349 = vpop.f32.mrf.mxu0
        %v2350 = vadd.f32 0.0, %v2349
        %2351 = vmatmul.bf16.gmra.mxu0 %v2299
        %v2352 = vpop.f32.mrf.mxu0
        %v2353 = vadd.f32 0.0, %v2352
        %v2354 = vpop.f32.mrf.mxu0
        %v2355 = vadd.f32 0.0, %v2354
        %2356 = vdwg.mxu0
        %v2357 = vsub.f32 %v2221, %v2318
        %v2358 = vsub.f32 %v2223, %v2320
        %v2359 = vsub.f32 %v2226, %v2323
        %v2360 = vsub.f32 %v2228, %v2325
        %v2361 = vsub.f32 %v2231, %v2328
        %v2362 = vsub.f32 %v2233, %v2330
        %v2363 = vsub.f32 %v2236, %v2333
        %v2364 = vsub.f32 %v2238, %v2335
        %v2365 = vsub.f32 %v2241, %v2338
        %v2366 = vsub.f32 %v2243, %v2340
        %v2367 = vsub.f32 %v2246, %v2343
        %v2368 = vsub.f32 %v2248, %v2345
        %v2369 = vsub.f32 %v2251, %v2348
        %v2370 = vsub.f32 %v2253, %v2350
        %v2371 = vsub.f32 %v2256, %v2353
        %v2372 = vsub.f32 %v2258, %v2355
        %2373 = vmatpush.bf16.msra.mxu0 %v2202
        %2374 = vmatpush.bf16.msra.mxu0 %v2201
        %2375 = vmatpush.bf16.msra.mxu0 %v2200
        %2376 = vmatpush.bf16.msra.mxu0 %v2199
        %2377 = vmatpush.bf16.msra.mxu0 %v2198
        %2378 = vmatpush.bf16.msra.mxu0 %v2197
        %2379 = vmatpush.bf16.msra.mxu0 %v2196
        %2380 = vmatpush.bf16.msra.mxu0 %v2195
        %2381 = vmatmul.bf16.gmra.mxu0 %v2292
        %v2382 = vpop.f32.mrf.mxu0
        %v2383 = vadd.f32 0.0, %v2382
        %v2384 = vpop.f32.mrf.mxu0
        %v2385 = vadd.f32 0.0, %v2384
        %2386 = vmatmul.bf16.gmra.mxu0 %v2293
        %v2387 = vpop.f32.mrf.mxu0
        %v2388 = vadd.f32 0.0, %v2387
        %v2389 = vpop.f32.mrf.mxu0
        %v2390 = vadd.f32 0.0, %v2389
        %2391 = vmatmul.bf16.gmra.mxu0 %v2294
        %v2392 = vpop.f32.mrf.mxu0
        %v2393 = vadd.f32 0.0, %v2392
        %v2394 = vpop.f32.mrf.mxu0
        %v2395 = vadd.f32 0.0, %v2394
        %2396 = vmatmul.bf16.gmra.mxu0 %v2295
        %v2397 = vpop.f32.mrf.mxu0
        %v2398 = vadd.f32 0.0, %v2397
        %v2399 = vpop.f32.mrf.mxu0
        %v2400 = vadd.f32 0.0, %v2399
        %2401 = vmatmul.bf16.gmra.mxu0 %v2296
        %v2402 = vpop.f32.mrf.mxu0
        %v2403 = vadd.f32 0.0, %v2402
        %v2404 = vpop.f32.mrf.mxu0
        %v2405 = vadd.f32 0.0, %v2404
        %2406 = vmatmul.bf16.gmra.mxu0 %v2297
        %v2407 = vpop.f32.mrf.mxu0
        %v2408 = vadd.f32 0.0, %v2407
        %v2409 = vpop.f32.mrf.mxu0
        %v2410 = vadd.f32 0.0, %v2409
        %2411 = vmatmul.bf16.gmra.mxu0 %v2298
        %v2412 = vpop.f32.mrf.mxu0
        %v2413 = vadd.f32 0.0, %v2412
        %v2414 = vpop.f32.mrf.mxu0
        %v2415 = vadd.f32 0.0, %v2414
        %2416 = vmatmul.bf16.gmra.mxu0 %v2299
        %v2417 = vpop.f32.mrf.mxu0
        %v2418 = vadd.f32 0.0, %v2417
        %v2419 = vpop.f32.mrf.mxu0
        %v2420 = vadd.f32 0.0, %v2419
        %2421 = vdwg.mxu0
        %2422 = vmatpush.bf16.msra.mxu0 %v2210
        %2423 = vmatpush.bf16.msra.mxu0 %v2209
        %2424 = vmatpush.bf16.msra.mxu0 %v2208
        %2425 = vmatpush.bf16.msra.mxu0 %v2207
        %2426 = vmatpush.bf16.msra.mxu0 %v2206
        %2427 = vmatpush.bf16.msra.mxu0 %v2205
        %2428 = vmatpush.bf16.msra.mxu0 %v2204
        %2429 = vmatpush.bf16.msra.mxu0 %v2203
        %2430 = vmatmul.bf16.gmra.mxu0 %v1659
        %v2431 = vpop.f32.mrf.mxu0
        %v2432 = vadd.f32 %v2383, %v2431
        %v2433 = vpop.f32.mrf.mxu0
        %v2434 = vadd.f32 %v2385, %v2433
        %2435 = vmatmul.bf16.gmra.mxu0 %v1660
        %v2436 = vpop.f32.mrf.mxu0
        %v2437 = vadd.f32 %v2388, %v2436
        %v2438 = vpop.f32.mrf.mxu0
        %v2439 = vadd.f32 %v2390, %v2438
        %2440 = vmatmul.bf16.gmra.mxu0 %v1661
        %v2441 = vpop.f32.mrf.mxu0
        %v2442 = vadd.f32 %v2393, %v2441
        %v2443 = vpop.f32.mrf.mxu0
        %v2444 = vadd.f32 %v2395, %v2443
        %2445 = vmatmul.bf16.gmra.mxu0 %v1662
        %v2446 = vpop.f32.mrf.mxu0
        %v2447 = vadd.f32 %v2398, %v2446
        %v2448 = vpop.f32.mrf.mxu0
        %v2449 = vadd.f32 %v2400, %v2448
        %2450 = vmatmul.bf16.gmra.mxu0 %v1663
        %v2451 = vpop.f32.mrf.mxu0
        %v2452 = vadd.f32 %v2403, %v2451
        %v2453 = vpop.f32.mrf.mxu0
        %v2454 = vadd.f32 %v2405, %v2453
        %2455 = vmatmul.bf16.gmra.mxu0 %v1664
        %v2456 = vpop.f32.mrf.mxu0
        %v2457 = vadd.f32 %v2408, %v2456
        %v2458 = vpop.f32.mrf.mxu0
        %v2459 = vadd.f32 %v2410, %v2458
        %2460 = vmatmul.bf16.gmra.mxu0 %v1665
        %v2461 = vpop.f32.mrf.mxu0
        %v2462 = vadd.f32 %v2413, %v2461
        %v2463 = vpop.f32.mrf.mxu0
        %v2464 = vadd.f32 %v2415, %v2463
        %2465 = vmatmul.bf16.gmra.mxu0 %v1666
        %v2466 = vpop.f32.mrf.mxu0
        %v2467 = vadd.f32 %v2418, %v2466
        %v2468 = vpop.f32.mrf.mxu0
        %v2469 = vadd.f32 %v2420, %v2468
        %2470 = vdwg.mxu0
        %v2471 = vpack.c.bf16 %v2358, %v2357
        %v2472 = vpack.c.bf16 %v2360, %v2359
        %v2473 = vpack.c.bf16 %v2362, %v2361
        %v2474 = vpack.c.bf16 %v2364, %v2363
        %v2475 = vpack.c.bf16 %v2366, %v2365
        %v2476 = vpack.c.bf16 %v2368, %v2367
        %v2477 = vpack.c.bf16 %v2370, %v2369
        %v2478 = vpack.c.bf16 %v2372, %v2371
        %v2479 = vpack.c.bf16 %v2434, %v2432
        %v2480 = vpack.c.bf16 %v2439, %v2437
        %v2481 = vpack.c.bf16 %v2444, %v2442
        %v2482 = vpack.c.bf16 %v2449, %v2447
        %v2483 = vpack.c.bf16 %v2454, %v2452
        %v2484 = vpack.c.bf16 %v2459, %v2457
        %v2485 = vpack.c.bf16 %v2464, %v2462
        %v2486 = vpack.c.bf16 %v2469, %v2467
        %2487 = vmatpush.bf16.msra.mxu0 %v1942
        %2488 = vmatpush.bf16.msra.mxu0 %v1941
        %2489 = vmatpush.bf16.msra.mxu0 %v1940
        %2490 = vmatpush.bf16.msra.mxu0 %v1939
        %2491 = vmatpush.bf16.msra.mxu0 %v1938
        %2492 = vmatpush.bf16.msra.mxu0 %v1937
        %2493 = vmatpush.bf16.msra.mxu0 %v1936
        %2494 = vmatpush.bf16.msra.mxu0 %v1935
        %2495 = vmatmul.bf16.gmra.mxu0 %v2471
        %v2496 = vpop.f32.mrf.mxu0
        %v2497 = vadd.f32 0.0, %v2496
        %v2498 = vpop.f32.mrf.mxu0
        %v2499 = vadd.f32 0.0, %v2498
        %2500 = vmatmul.bf16.gmra.mxu0 %v2472
        %v2501 = vpop.f32.mrf.mxu0
        %v2502 = vadd.f32 0.0, %v2501
        %v2503 = vpop.f32.mrf.mxu0
        %v2504 = vadd.f32 0.0, %v2503
        %2505 = vmatmul.bf16.gmra.mxu0 %v2473
        %v2506 = vpop.f32.mrf.mxu0
        %v2507 = vadd.f32 0.0, %v2506
        %v2508 = vpop.f32.mrf.mxu0
        %v2509 = vadd.f32 0.0, %v2508
        %2510 = vmatmul.bf16.gmra.mxu0 %v2474
        %v2511 = vpop.f32.mrf.mxu0
        %v2512 = vadd.f32 0.0, %v2511
        %v2513 = vpop.f32.mrf.mxu0
        %v2514 = vadd.f32 0.0, %v2513
        %2515 = vmatmul.bf16.gmra.mxu0 %v2475
        %v2516 = vpop.f32.mrf.mxu0
        %v2517 = vadd.f32 0.0, %v2516
        %v2518 = vpop.f32.mrf.mxu0
        %v2519 = vadd.f32 0.0, %v2518
        %2520 = vmatmul.bf16.gmra.mxu0 %v2476
        %v2521 = vpop.f32.mrf.mxu0
        %v2522 = vadd.f32 0.0, %v2521
        %v2523 = vpop.f32.mrf.mxu0
        %v2524 = vadd.f32 0.0, %v2523
        %2525 = vmatmul.bf16.gmra.mxu0 %v2477
        %v2526 = vpop.f32.mrf.mxu0
        %v2527 = vadd.f32 0.0, %v2526
        %v2528 = vpop.f32.mrf.mxu0
        %v2529 = vadd.f32 0.0, %v2528
        %2530 = vmatmul.bf16.gmra.mxu0 %v2478
        %v2531 = vpop.f32.mrf.mxu0
        %v2532 = vadd.f32 0.0, %v2531
        %v2533 = vpop.f32.mrf.mxu0
        %v2534 = vadd.f32 0.0, %v2533
        %2535 = vdwg.mxu0
        %v2552 = vunpack.c.l.b16 %v192
        %v2553 = vunpack.c.l.b16 %v193
        %v2554 = vunpack.c.l.b16 %v194
        %v2555 = vunpack.c.l.b16 %v195
        %v2556 = vunpack.c.l.b16 %v196
        %v2557 = vunpack.c.l.b16 %v197
        %v2558 = vunpack.c.l.b16 %v198
        %v2559 = vunpack.c.l.b16 %v199
        %v2560 = vunpack.c.l.b16 %v200
        %v2561 = vunpack.c.l.b16 %v201
        %v2562 = vunpack.c.l.b16 %v202
        %v2563 = vunpack.c.l.b16 %v203
        %v2564 = vunpack.c.l.b16 %v204
        %v2565 = vunpack.c.l.b16 %v205
        %v2566 = vunpack.c.l.b16 %v206
        %v2567 = vunpack.c.l.b16 %v207
        %v2568 = vpack.c.b16 %v2553, %v2552
        %v2569 = vpack.c.b16 %v2555, %v2554
        %v2570 = vpack.c.b16 %v2557, %v2556
        %v2571 = vpack.c.b16 %v2559, %v2558
        %v2572 = vpack.c.b16 %v2561, %v2560
        %v2573 = vpack.c.b16 %v2563, %v2562
        %v2574 = vpack.c.b16 %v2565, %v2564
        %v2575 = vpack.c.b16 %v2567, %v2566
        %2584 = vmatpush.bf16.msra.mxu0 %v2575
        %2585 = vmatpush.bf16.msra.mxu0 %v2574
        %2586 = vmatpush.bf16.msra.mxu0 %v2573
        %2587 = vmatpush.bf16.msra.mxu0 %v2572
        %2588 = vmatpush.bf16.msra.mxu0 %v2571
        %2589 = vmatpush.bf16.msra.mxu0 %v2570
        %2590 = vmatpush.bf16.msra.mxu0 %v2569
        %2591 = vmatpush.bf16.msra.mxu0 %v2568
        %2592 = vmatmul.bf16.gmra.mxu0 %v2479
        %v2593 = vpop.f32.mrf.mxu0
        %v2594 = vadd.f32 0.0, %v2593
        %v2595 = vpop.f32.mrf.mxu0
        %v2596 = vadd.f32 0.0, %v2595
        %2597 = vmatmul.bf16.gmra.mxu0 %v2480
        %v2598 = vpop.f32.mrf.mxu0
        %v2599 = vadd.f32 0.0, %v2598
        %v2600 = vpop.f32.mrf.mxu0
        %v2601 = vadd.f32 0.0, %v2600
        %2602 = vmatmul.bf16.gmra.mxu0 %v2481
        %v2603 = vpop.f32.mrf.mxu0
        %v2604 = vadd.f32 0.0, %v2603
        %v2605 = vpop.f32.mrf.mxu0
        %v2606 = vadd.f32 0.0, %v2605
        %2607 = vmatmul.bf16.gmra.mxu0 %v2482
        %v2608 = vpop.f32.mrf.mxu0
        %v2609 = vadd.f32 0.0, %v2608
        %v2610 = vpop.f32.mrf.mxu0
        %v2611 = vadd.f32 0.0, %v2610
        %2612 = vmatmul.bf16.gmra.mxu0 %v2483
        %v2613 = vpop.f32.mrf.mxu0
        %v2614 = vadd.f32 0.0, %v2613
        %v2615 = vpop.f32.mrf.mxu0
        %v2616 = vadd.f32 0.0, %v2615
        %2617 = vmatmul.bf16.gmra.mxu0 %v2484
        %v2618 = vpop.f32.mrf.mxu0
        %v2619 = vadd.f32 0.0, %v2618
        %v2620 = vpop.f32.mrf.mxu0
        %v2621 = vadd.f32 0.0, %v2620
        %2622 = vmatmul.bf16.gmra.mxu0 %v2485
        %v2623 = vpop.f32.mrf.mxu0
        %v2624 = vadd.f32 0.0, %v2623
        %v2625 = vpop.f32.mrf.mxu0
        %v2626 = vadd.f32 0.0, %v2625
        %2627 = vmatmul.bf16.gmra.mxu0 %v2486
        %v2628 = vpop.f32.mrf.mxu0
        %v2629 = vadd.f32 0.0, %v2628
        %v2630 = vpop.f32.mrf.mxu0
        %v2631 = vadd.f32 0.0, %v2630
        %2632 = vdwg.mxu0
        %v2633 = vsub.f32 %v2497, %v2594
        %v2634 = vsub.f32 %v2499, %v2596
        %v2635 = vsub.f32 %v2502, %v2599
        %v2636 = vsub.f32 %v2504, %v2601
        %v2637 = vsub.f32 %v2507, %v2604
        %v2638 = vsub.f32 %v2509, %v2606
        %v2639 = vsub.f32 %v2512, %v2609
        %v2640 = vsub.f32 %v2514, %v2611
        %v2641 = vsub.f32 %v2517, %v2614
        %v2642 = vsub.f32 %v2519, %v2616
        %v2643 = vsub.f32 %v2522, %v2619
        %v2644 = vsub.f32 %v2524, %v2621
        %v2645 = vsub.f32 %v2527, %v2624
        %v2646 = vsub.f32 %v2529, %v2626
        %v2647 = vsub.f32 %v2532, %v2629
        %v2648 = vsub.f32 %v2534, %v2631
        %2649 = vmatpush.bf16.msra.mxu0 %v2575
        %2650 = vmatpush.bf16.msra.mxu0 %v2574
        %2651 = vmatpush.bf16.msra.mxu0 %v2573
        %2652 = vmatpush.bf16.msra.mxu0 %v2572
        %2653 = vmatpush.bf16.msra.mxu0 %v2571
        %2654 = vmatpush.bf16.msra.mxu0 %v2570
        %2655 = vmatpush.bf16.msra.mxu0 %v2569
        %2656 = vmatpush.bf16.msra.mxu0 %v2568
        %2657 = vmatmul.bf16.gmra.mxu0 %v2471
        %v2658 = vpop.f32.mrf.mxu0
        %v2659 = vadd.f32 0.0, %v2658
        %v2660 = vpop.f32.mrf.mxu0
        %v2661 = vadd.f32 0.0, %v2660
        %2662 = vmatmul.bf16.gmra.mxu0 %v2472
        %v2663 = vpop.f32.mrf.mxu0
        %v2664 = vadd.f32 0.0, %v2663
        %v2665 = vpop.f32.mrf.mxu0
        %v2666 = vadd.f32 0.0, %v2665
        %2667 = vmatmul.bf16.gmra.mxu0 %v2473
        %v2668 = vpop.f32.mrf.mxu0
        %v2669 = vadd.f32 0.0, %v2668
        %v2670 = vpop.f32.mrf.mxu0
        %v2671 = vadd.f32 0.0, %v2670
        %2672 = vmatmul.bf16.gmra.mxu0 %v2474
        %v2673 = vpop.f32.mrf.mxu0
        %v2674 = vadd.f32 0.0, %v2673
        %v2675 = vpop.f32.mrf.mxu0
        %v2676 = vadd.f32 0.0, %v2675
        %2677 = vmatmul.bf16.gmra.mxu0 %v2475
        %v2678 = vpop.f32.mrf.mxu0
        %v2679 = vadd.f32 0.0, %v2678
        %v2680 = vpop.f32.mrf.mxu0
        %v2681 = vadd.f32 0.0, %v2680
        %2682 = vmatmul.bf16.gmra.mxu0 %v2476
        %v2683 = vpop.f32.mrf.mxu0
        %v2684 = vadd.f32 0.0, %v2683
        %v2685 = vpop.f32.mrf.mxu0
        %v2686 = vadd.f32 0.0, %v2685
        %2687 = vmatmul.bf16.gmra.mxu0 %v2477
        %v2688 = vpop.f32.mrf.mxu0
        %v2689 = vadd.f32 0.0, %v2688
        %v2690 = vpop.f32.mrf.mxu0
        %v2691 = vadd.f32 0.0, %v2690
        %2692 = vmatmul.bf16.gmra.mxu0 %v2478
        %v2693 = vpop.f32.mrf.mxu0
        %v2694 = vadd.f32 0.0, %v2693
        %v2695 = vpop.f32.mrf.mxu0
        %v2696 = vadd.f32 0.0, %v2695
        %2697 = vdwg.mxu0
        %2698 = vmatpush.bf16.msra.mxu0 %v1942
        %2699 = vmatpush.bf16.msra.mxu0 %v1941
        %2700 = vmatpush.bf16.msra.mxu0 %v1940
        %2701 = vmatpush.bf16.msra.mxu0 %v1939
        %2702 = vmatpush.bf16.msra.mxu0 %v1938
        %2703 = vmatpush.bf16.msra.mxu0 %v1937
        %2704 = vmatpush.bf16.msra.mxu0 %v1936
        %2705 = vmatpush.bf16.msra.mxu0 %v1935
        %2706 = vmatmul.bf16.gmra.mxu0 %v2479
        %v2707 = vpop.f32.mrf.mxu0
        %v2708 = vadd.f32 %v2659, %v2707
        %v2709 = vpop.f32.mrf.mxu0
        %v2710 = vadd.f32 %v2661, %v2709
        %2711 = vmatmul.bf16.gmra.mxu0 %v2480
        %v2712 = vpop.f32.mrf.mxu0
        %v2713 = vadd.f32 %v2664, %v2712
        %v2714 = vpop.f32.mrf.mxu0
        %v2715 = vadd.f32 %v2666, %v2714
        %2716 = vmatmul.bf16.gmra.mxu0 %v2481
        %v2717 = vpop.f32.mrf.mxu0
        %v2718 = vadd.f32 %v2669, %v2717
        %v2719 = vpop.f32.mrf.mxu0
        %v2720 = vadd.f32 %v2671, %v2719
        %2721 = vmatmul.bf16.gmra.mxu0 %v2482
        %v2722 = vpop.f32.mrf.mxu0
        %v2723 = vadd.f32 %v2674, %v2722
        %v2724 = vpop.f32.mrf.mxu0
        %v2725 = vadd.f32 %v2676, %v2724
        %2726 = vmatmul.bf16.gmra.mxu0 %v2483
        %v2727 = vpop.f32.mrf.mxu0
        %v2728 = vadd.f32 %v2679, %v2727
        %v2729 = vpop.f32.mrf.mxu0
        %v2730 = vadd.f32 %v2681, %v2729
        %2731 = vmatmul.bf16.gmra.mxu0 %v2484
        %v2732 = vpop.f32.mrf.mxu0
        %v2733 = vadd.f32 %v2684, %v2732
        %v2734 = vpop.f32.mrf.mxu0
        %v2735 = vadd.f32 %v2686, %v2734
        %2736 = vmatmul.bf16.gmra.mxu0 %v2485
        %v2737 = vpop.f32.mrf.mxu0
        %v2738 = vadd.f32 %v2689, %v2737
        %v2739 = vpop.f32.mrf.mxu0
        %v2740 = vadd.f32 %v2691, %v2739
        %2741 = vmatmul.bf16.gmra.mxu0 %v2486
        %v2742 = vpop.f32.mrf.mxu0
        %v2743 = vadd.f32 %v2694, %v2742
        %v2744 = vpop.f32.mrf.mxu0
        %v2745 = vadd.f32 %v2696, %v2744
        %2746 = vdwg.mxu0
        %v2747 = vld [vmem:[#allocation5] sm:$0xff]
        %v2748 = vld [vmem:[#allocation5 + $0x8] sm:$0xff]
        %v2749 = vld [vmem:[#allocation5 + $0x10] sm:$0xff]
        %v2750 = vld [vmem:[#allocation5 + $0x18] sm:$0xff]
        %v2751 = vld [vmem:[#allocation5 + $0x20] sm:$0xff]
        %v2752 = vld [vmem:[#allocation5 + $0x28] sm:$0xff]
        %v2753 = vld [vmem:[#allocation5 + $0x30] sm:$0xff]
        %v2754 = vld [vmem:[#allocation5 + $0x38] sm:$0xff]
        %v2755 = vld [vmem:[#allocation5 + $0x40] sm:$0xff]
        %v2756 = vld [vmem:[#allocation5 + $0x48] sm:$0xff]
        %v2757 = vld [vmem:[#allocation5 + $0x50] sm:$0xff]
        %v2758 = vld [vmem:[#allocation5 + $0x58] sm:$0xff]
        %v2759 = vld [vmem:[#allocation5 + $0x60] sm:$0xff]
        %v2760 = vld [vmem:[#allocation5 + $0x68] sm:$0xff]
        %v2761 = vld [vmem:[#allocation5 + $0x70] sm:$0xff]
        %v2762 = vld [vmem:[#allocation5 + $0x78] sm:$0xff]
        %v2763 = vmul.f32 %v1466, %v2633
        %v2764 = vmul.f32 %v1467, %v2634
        %v2765 = vmul.f32 %v1468, %v2635
        %v2766 = vmul.f32 %v1469, %v2636
        %v2767 = vmul.f32 %v1470, %v2637
        %v2768 = vmul.f32 %v1471, %v2638
        %v2769 = vmul.f32 %v1472, %v2639
        %v2770 = vmul.f32 %v1473, %v2640
        %v2771 = vmul.f32 %v1474, %v2641
        %v2772 = vmul.f32 %v1475, %v2642
        %v2773 = vmul.f32 %v1476, %v2643
        %v2774 = vmul.f32 %v1477, %v2644
        %v2775 = vmul.f32 %v1478, %v2645
        %v2776 = vmul.f32 %v1479, %v2646
        %v2777 = vmul.f32 %v1480, %v2647
        %v2778 = vmul.f32 %v1481, %v2648
        %v2779 = vmul.f32 %v1483, %v2708
        %v2780 = vmul.f32 %v1484, %v2710
        %v2781 = vmul.f32 %v1485, %v2713
        %v2782 = vmul.f32 %v1486, %v2715
        %v2783 = vmul.f32 %v1487, %v2718
        %v2784 = vmul.f32 %v1488, %v2720
        %v2785 = vmul.f32 %v1489, %v2723
        %v2786 = vmul.f32 %v1490, %v2725
        %v2787 = vmul.f32 %v1491, %v2728
        %v2788 = vmul.f32 %v1492, %v2730
        %v2789 = vmul.f32 %v1493, %v2733
        %v2790 = vmul.f32 %v1494, %v2735
        %v2791 = vmul.f32 %v1495, %v2738
        %v2792 = vmul.f32 %v1496, %v2740
        %v2793 = vmul.f32 %v1497, %v2743
        %v2794 = vmul.f32 %v1498, %v2745
        %v2795 = vadd.f32 %v2763, %v2779
        %v2796 = vadd.f32 %v2764, %v2780
        %v2797 = vadd.f32 %v2765, %v2781
        %v2798 = vadd.f32 %v2766, %v2782
        %v2799 = vadd.f32 %v2767, %v2783
        %v2800 = vadd.f32 %v2768, %v2784
        %v2801 = vadd.f32 %v2769, %v2785
        %v2802 = vadd.f32 %v2770, %v2786
        %v2803 = vadd.f32 %v2771, %v2787
        %v2804 = vadd.f32 %v2772, %v2788
        %v2805 = vadd.f32 %v2773, %v2789
        %v2806 = vadd.f32 %v2774, %v2790
        %v2807 = vadd.f32 %v2775, %v2791
        %v2808 = vadd.f32 %v2776, %v2792
        %v2809 = vadd.f32 %v2777, %v2793
        %v2810 = vadd.f32 %v2778, %v2794
        %v2811 = vadd.f32 %v2747, %v2795
        %v2812 = vadd.f32 %v2748, %v2796
        %v2813 = vadd.f32 %v2749, %v2797
        %v2814 = vadd.f32 %v2750, %v2798
        %v2815 = vadd.f32 %v2751, %v2799
        %v2816 = vadd.f32 %v2752, %v2800
        %v2817 = vadd.f32 %v2753, %v2801
        %v2818 = vadd.f32 %v2754, %v2802
        %v2819 = vadd.f32 %v2755, %v2803
        %v2820 = vadd.f32 %v2756, %v2804
        %v2821 = vadd.f32 %v2757, %v2805
        %v2822 = vadd.f32 %v2758, %v2806
        %v2823 = vadd.f32 %v2759, %v2807
        %v2824 = vadd.f32 %v2760, %v2808
        %v2825 = vadd.f32 %v2761, %v2809
        %v2826 = vadd.f32 %v2762, %v2810
        %2827 = vst [vmem:[#allocation5] sm:$0xff] %v2811
        %2828 = vst [vmem:[#allocation5 + $0x8] sm:$0xff] %v2812
        %2829 = vst [vmem:[#allocation5 + $0x10] sm:$0xff] %v2813
        %2830 = vst [vmem:[#allocation5 + $0x18] sm:$0xff] %v2814
        %2831 = vst [vmem:[#allocation5 + $0x20] sm:$0xff] %v2815
        %2832 = vst [vmem:[#allocation5 + $0x28] sm:$0xff] %v2816
        %2833 = vst [vmem:[#allocation5 + $0x30] sm:$0xff] %v2817
        %2834 = vst [vmem:[#allocation5 + $0x38] sm:$0xff] %v2818
        %2835 = vst [vmem:[#allocation5 + $0x40] sm:$0xff] %v2819
        %2836 = vst [vmem:[#allocation5 + $0x48] sm:$0xff] %v2820
        %2837 = vst [vmem:[#allocation5 + $0x50] sm:$0xff] %v2821
        %2838 = vst [vmem:[#allocation5 + $0x58] sm:$0xff] %v2822
        %2839 = vst [vmem:[#allocation5 + $0x60] sm:$0xff] %v2823
        %2840 = vst [vmem:[#allocation5 + $0x68] sm:$0xff] %v2824
        %2841 = vst [vmem:[#allocation5 + $0x70] sm:$0xff] %v2825
        %2842 = vst [vmem:[#allocation5 + $0x78] sm:$0xff] %v2826
        %v2843 = vld [vmem:[#allocation6] sm:$0xff]
        %v2844 = vld [vmem:[#allocation6 + $0x8] sm:$0xff]
        %v2845 = vld [vmem:[#allocation6 + $0x10] sm:$0xff]
        %v2846 = vld [vmem:[#allocation6 + $0x18] sm:$0xff]
        %v2847 = vld [vmem:[#allocation6 + $0x20] sm:$0xff]
        %v2848 = vld [vmem:[#allocation6 + $0x28] sm:$0xff]
        %v2849 = vld [vmem:[#allocation6 + $0x30] sm:$0xff]
        %v2850 = vld [vmem:[#allocation6 + $0x38] sm:$0xff]
        %v2851 = vld [vmem:[#allocation6 + $0x40] sm:$0xff]
        %v2852 = vld [vmem:[#allocation6 + $0x48] sm:$0xff]
        %v2853 = vld [vmem:[#allocation6 + $0x50] sm:$0xff]
        %v2854 = vld [vmem:[#allocation6 + $0x58] sm:$0xff]
        %v2855 = vld [vmem:[#allocation6 + $0x60] sm:$0xff]
        %v2856 = vld [vmem:[#allocation6 + $0x68] sm:$0xff]
        %v2857 = vld [vmem:[#allocation6 + $0x70] sm:$0xff]
        %v2858 = vld [vmem:[#allocation6 + $0x78] sm:$0xff]
        %v2859 = vmul.f32 %v1466, %v2708
        %v2860 = vmul.f32 %v1467, %v2710
        %v2861 = vmul.f32 %v1468, %v2713
        %v2862 = vmul.f32 %v1469, %v2715
        %v2863 = vmul.f32 %v1470, %v2718
        %v2864 = vmul.f32 %v1471, %v2720
        %v2865 = vmul.f32 %v1472, %v2723
        %v2866 = vmul.f32 %v1473, %v2725
        %v2867 = vmul.f32 %v1474, %v2728
        %v2868 = vmul.f32 %v1475, %v2730
        %v2869 = vmul.f32 %v1476, %v2733
        %v2870 = vmul.f32 %v1477, %v2735
        %v2871 = vmul.f32 %v1478, %v2738
        %v2872 = vmul.f32 %v1479, %v2740
        %v2873 = vmul.f32 %v1480, %v2743
        %v2874 = vmul.f32 %v1481, %v2745
        %v2875 = vmul.f32 %v1483, %v2633
        %v2876 = vmul.f32 %v1484, %v2634
        %v2877 = vmul.f32 %v1485, %v2635
        %v2878 = vmul.f32 %v1486, %v2636
        %v2879 = vmul.f32 %v1487, %v2637
        %v2880 = vmul.f32 %v1488, %v2638
        %v2881 = vmul.f32 %v1489, %v2639
        %v2882 = vmul.f32 %v1490, %v2640
        %v2883 = vmul.f32 %v1491, %v2641
        %v2884 = vmul.f32 %v1492, %v2642
        %v2885 = vmul.f32 %v1493, %v2643
        %v2886 = vmul.f32 %v1494, %v2644
        %v2887 = vmul.f32 %v1495, %v2645
        %v2888 = vmul.f32 %v1496, %v2646
        %v2889 = vmul.f32 %v1497, %v2647
        %v2890 = vmul.f32 %v1498, %v2648
        %v2891 = vsub.f32 %v2859, %v2875
        %v2892 = vsub.f32 %v2860, %v2876
        %v2893 = vsub.f32 %v2861, %v2877
        %v2894 = vsub.f32 %v2862, %v2878
        %v2895 = vsub.f32 %v2863, %v2879
        %v2896 = vsub.f32 %v2864, %v2880
        %v2897 = vsub.f32 %v2865, %v2881
        %v2898 = vsub.f32 %v2866, %v2882
        %v2899 = vsub.f32 %v2867, %v2883
        %v2900 = vsub.f32 %v2868, %v2884
        %v2901 = vsub.f32 %v2869, %v2885
        %v2902 = vsub.f32 %v2870, %v2886
        %v2903 = vsub.f32 %v2871, %v2887
        %v2904 = vsub.f32 %v2872, %v2888
        %v2905 = vsub.f32 %v2873, %v2889
        %v2906 = vsub.f32 %v2874, %v2890
        %v2907 = vadd.f32 %v2843, %v2891
        %v2908 = vadd.f32 %v2844, %v2892
        %v2909 = vadd.f32 %v2845, %v2893
        %v2910 = vadd.f32 %v2846, %v2894
        %v2911 = vadd.f32 %v2847, %v2895
        %v2912 = vadd.f32 %v2848, %v2896
        %v2913 = vadd.f32 %v2849, %v2897
        %v2914 = vadd.f32 %v2850, %v2898
        %v2915 = vadd.f32 %v2851, %v2899
        %v2916 = vadd.f32 %v2852, %v2900
        %v2917 = vadd.f32 %v2853, %v2901
        %v2918 = vadd.f32 %v2854, %v2902
        %v2919 = vadd.f32 %v2855, %v2903
        %v2920 = vadd.f32 %v2856, %v2904
        %v2921 = vadd.f32 %v2857, %v2905
        %v2922 = vadd.f32 %v2858, %v2906
        %2923 = vst [vmem:[#allocation6] sm:$0xff] %v2907
        %2924 = vst [vmem:[#allocation6 + $0x8] sm:$0xff] %v2908
        %2925 = vst [vmem:[#allocation6 + $0x10] sm:$0xff] %v2909
        %2926 = vst [vmem:[#allocation6 + $0x18] sm:$0xff] %v2910
        %2927 = vst [vmem:[#allocation6 + $0x20] sm:$0xff] %v2911
        %2928 = vst [vmem:[#allocation6 + $0x28] sm:$0xff] %v2912
        %2929 = vst [vmem:[#allocation6 + $0x30] sm:$0xff] %v2913
        %2930 = vst [vmem:[#allocation6 + $0x38] sm:$0xff] %v2914
        %2931 = vst [vmem:[#allocation6 + $0x40] sm:$0xff] %v2915
        %2932 = vst [vmem:[#allocation6 + $0x48] sm:$0xff] %v2916
        %2933 = vst [vmem:[#allocation6 + $0x50] sm:$0xff] %v2917
        %2934 = vst [vmem:[#allocation6 + $0x58] sm:$0xff] %v2918
        %2935 = vst [vmem:[#allocation6 + $0x60] sm:$0xff] %v2919
        %2936 = vst [vmem:[#allocation6 + $0x68] sm:$0xff] %v2920
        %2937 = vst [vmem:[#allocation6 + $0x70] sm:$0xff] %v2921
        %2938 = vst [vmem:[#allocation6 + $0x78] sm:$0xff] %v2922
      $region96: #{tpu_custom_call.1} parent=88 // loop_footer
        %s1431 = sadd.s32 1, %s1427
      $region97: #{tpu_custom_call.1} parent=88 // loop_footer_branch
        %1426 = sbr.rel target = $region93
      $region98: #{tpu_custom_call.1} parent=88 // loop_exit
        _
      %v2939 = vld [vmem:[#allocation22] sm:$0xff]
      %v2940 = vld [vmem:[#allocation22 + $0x8] sm:$0xff]
      %v2941 = vld [vmem:[#allocation22 + $0x10] sm:$0xff]
      %v2942 = vld [vmem:[#allocation22 + $0x18] sm:$0xff]
      %v2943 = vld [vmem:[#allocation22 + $0x20] sm:$0xff]
      %v2944 = vld [vmem:[#allocation22 + $0x28] sm:$0xff]
      %v2945 = vld [vmem:[#allocation22 + $0x30] sm:$0xff]
      %v2946 = vld [vmem:[#allocation22 + $0x38] sm:$0xff]
      %v2947 = vld [vmem:[#allocation22 + $0x40] sm:$0xff]
      %v2948 = vld [vmem:[#allocation22 + $0x48] sm:$0xff]
      %v2949 = vld [vmem:[#allocation22 + $0x50] sm:$0xff]
      %v2950 = vld [vmem:[#allocation22 + $0x58] sm:$0xff]
      %v2951 = vld [vmem:[#allocation22 + $0x60] sm:$0xff]
      %v2952 = vld [vmem:[#allocation22 + $0x68] sm:$0xff]
      %v2953 = vld [vmem:[#allocation22 + $0x70] sm:$0xff]
      %v2954 = vld [vmem:[#allocation22 + $0x78] sm:$0xff]
      %v2955 = vld [vmem:[#allocation5] sm:$0xff]
      %v2956 = vld [vmem:[#allocation5 + $0x8] sm:$0xff]
      %v2957 = vld [vmem:[#allocation5 + $0x10] sm:$0xff]
      %v2958 = vld [vmem:[#allocation5 + $0x18] sm:$0xff]
      %v2959 = vld [vmem:[#allocation5 + $0x20] sm:$0xff]
      %v2960 = vld [vmem:[#allocation5 + $0x28] sm:$0xff]
      %v2961 = vld [vmem:[#allocation5 + $0x30] sm:$0xff]
      %v2962 = vld [vmem:[#allocation5 + $0x38] sm:$0xff]
      %v2963 = vld [vmem:[#allocation5 + $0x40] sm:$0xff]
      %v2964 = vld [vmem:[#allocation5 + $0x48] sm:$0xff]
      %v2965 = vld [vmem:[#allocation5 + $0x50] sm:$0xff]
      %v2966 = vld [vmem:[#allocation5 + $0x58] sm:$0xff]
      %v2967 = vld [vmem:[#allocation5 + $0x60] sm:$0xff]
      %v2968 = vld [vmem:[#allocation5 + $0x68] sm:$0xff]
      %v2969 = vld [vmem:[#allocation5 + $0x70] sm:$0xff]
      %v2970 = vld [vmem:[#allocation5 + $0x78] sm:$0xff]
      %v2971 = vld [vmem:[#allocation19] sm:$0xff]
      %v2972 = vld [vmem:[#allocation19 + $0x8] sm:$0xff]
      %v2973 = vld [vmem:[#allocation19 + $0x10] sm:$0xff]
      %v2974 = vld [vmem:[#allocation19 + $0x18] sm:$0xff]
      %v2975 = vld [vmem:[#allocation19 + $0x20] sm:$0xff]
      %v2976 = vld [vmem:[#allocation19 + $0x28] sm:$0xff]
      %v2977 = vld [vmem:[#allocation19 + $0x30] sm:$0xff]
      %v2978 = vld [vmem:[#allocation19 + $0x38] sm:$0xff]
      %v2979 = vld [vmem:[#allocation19 + $0x40] sm:$0xff]
      %v2980 = vld [vmem:[#allocation19 + $0x48] sm:$0xff]
      %v2981 = vld [vmem:[#allocation19 + $0x50] sm:$0xff]
      %v2982 = vld [vmem:[#allocation19 + $0x58] sm:$0xff]
      %v2983 = vld [vmem:[#allocation19 + $0x60] sm:$0xff]
      %v2984 = vld [vmem:[#allocation19 + $0x68] sm:$0xff]
      %v2985 = vld [vmem:[#allocation19 + $0x70] sm:$0xff]
      %v2986 = vld [vmem:[#allocation19 + $0x78] sm:$0xff]
      %v2987 = vsub.f32 %v2955, %v2971
      %v2988 = vsub.f32 %v2956, %v2972
      %v2989 = vsub.f32 %v2957, %v2973
      %v2990 = vsub.f32 %v2958, %v2974
      %v2991 = vsub.f32 %v2959, %v2975
      %v2992 = vsub.f32 %v2960, %v2976
      %v2993 = vsub.f32 %v2961, %v2977
      %v2994 = vsub.f32 %v2962, %v2978
      %v2995 = vsub.f32 %v2963, %v2979
      %v2996 = vsub.f32 %v2964, %v2980
      %v2997 = vsub.f32 %v2965, %v2981
      %v2998 = vsub.f32 %v2966, %v2982
      %v2999 = vsub.f32 %v2967, %v2983
      %v3000 = vsub.f32 %v2968, %v2984
      %v3001 = vsub.f32 %v2969, %v2985
      %v3002 = vsub.f32 %v2970, %v2986
      %v3003 = vsub.f32 %v2939, %v2987
      %v3004 = vsub.f32 %v2940, %v2988
      %v3005 = vsub.f32 %v2941, %v2989
      %v3006 = vsub.f32 %v2942, %v2990
      %v3007 = vsub.f32 %v2943, %v2991
      %v3008 = vsub.f32 %v2944, %v2992
      %v3009 = vsub.f32 %v2945, %v2993
      %v3010 = vsub.f32 %v2946, %v2994
      %v3011 = vsub.f32 %v2947, %v2995
      %v3012 = vsub.f32 %v2948, %v2996
      %v3013 = vsub.f32 %v2949, %v2997
      %v3014 = vsub.f32 %v2950, %v2998
      %v3015 = vsub.f32 %v2951, %v2999
      %v3016 = vsub.f32 %v2952, %v3000
      %v3017 = vsub.f32 %v2953, %v3001
      %v3018 = vsub.f32 %v2954, %v3002
      %v3019 = vld [vmem:[#allocation23] sm:$0xff]
      %v3020 = vld [vmem:[#allocation23 + $0x8] sm:$0xff]
      %v3021 = vld [vmem:[#allocation23 + $0x10] sm:$0xff]
      %v3022 = vld [vmem:[#allocation23 + $0x18] sm:$0xff]
      %v3023 = vld [vmem:[#allocation23 + $0x20] sm:$0xff]
      %v3024 = vld [vmem:[#allocation23 + $0x28] sm:$0xff]
      %v3025 = vld [vmem:[#allocation23 + $0x30] sm:$0xff]
      %v3026 = vld [vmem:[#allocation23 + $0x38] sm:$0xff]
      %v3027 = vld [vmem:[#allocation23 + $0x40] sm:$0xff]
      %v3028 = vld [vmem:[#allocation23 + $0x48] sm:$0xff]
      %v3029 = vld [vmem:[#allocation23 + $0x50] sm:$0xff]
      %v3030 = vld [vmem:[#allocation23 + $0x58] sm:$0xff]
      %v3031 = vld [vmem:[#allocation23 + $0x60] sm:$0xff]
      %v3032 = vld [vmem:[#allocation23 + $0x68] sm:$0xff]
      %v3033 = vld [vmem:[#allocation23 + $0x70] sm:$0xff]
      %v3034 = vld [vmem:[#allocation23 + $0x78] sm:$0xff]
      %v3035 = vld [vmem:[#allocation6] sm:$0xff]
      %v3036 = vld [vmem:[#allocation6 + $0x8] sm:$0xff]
      %v3037 = vld [vmem:[#allocation6 + $0x10] sm:$0xff]
      %v3038 = vld [vmem:[#allocation6 + $0x18] sm:$0xff]
      %v3039 = vld [vmem:[#allocation6 + $0x20] sm:$0xff]
      %v3040 = vld [vmem:[#allocation6 + $0x28] sm:$0xff]
      %v3041 = vld [vmem:[#allocation6 + $0x30] sm:$0xff]
      %v3042 = vld [vmem:[#allocation6 + $0x38] sm:$0xff]
      %v3043 = vld [vmem:[#allocation6 + $0x40] sm:$0xff]
      %v3044 = vld [vmem:[#allocation6 + $0x48] sm:$0xff]
      %v3045 = vld [vmem:[#allocation6 + $0x50] sm:$0xff]
      %v3046 = vld [vmem:[#allocation6 + $0x58] sm:$0xff]
      %v3047 = vld [vmem:[#allocation6 + $0x60] sm:$0xff]
      %v3048 = vld [vmem:[#allocation6 + $0x68] sm:$0xff]
      %v3049 = vld [vmem:[#allocation6 + $0x70] sm:$0xff]
      %v3050 = vld [vmem:[#allocation6 + $0x78] sm:$0xff]
      %v3051 = vld [vmem:[#allocation20] sm:$0xff]
      %v3052 = vld [vmem:[#allocation20 + $0x8] sm:$0xff]
      %v3053 = vld [vmem:[#allocation20 + $0x10] sm:$0xff]
      %v3054 = vld [vmem:[#allocation20 + $0x18] sm:$0xff]
      %v3055 = vld [vmem:[#allocation20 + $0x20] sm:$0xff]
      %v3056 = vld [vmem:[#allocation20 + $0x28] sm:$0xff]
      %v3057 = vld [vmem:[#allocation20 + $0x30] sm:$0xff]
      %v3058 = vld [vmem:[#allocation20 + $0x38] sm:$0xff]
      %v3059 = vld [vmem:[#allocation20 + $0x40] sm:$0xff]
      %v3060 = vld [vmem:[#allocation20 + $0x48] sm:$0xff]
      %v3061 = vld [vmem:[#allocation20 + $0x50] sm:$0xff]
      %v3062 = vld [vmem:[#allocation20 + $0x58] sm:$0xff]
      %v3063 = vld [vmem:[#allocation20 + $0x60] sm:$0xff]
      %v3064 = vld [vmem:[#allocation20 + $0x68] sm:$0xff]
      %v3065 = vld [vmem:[#allocation20 + $0x70] sm:$0xff]
      %v3066 = vld [vmem:[#allocation20 + $0x78] sm:$0xff]
      %v3067 = vsub.f32 %v3035, %v3051
      %v3068 = vsub.f32 %v3036, %v3052
      %v3069 = vsub.f32 %v3037, %v3053
      %v3070 = vsub.f32 %v3038, %v3054
      %v3071 = vsub.f32 %v3039, %v3055
      %v3072 = vsub.f32 %v3040, %v3056
      %v3073 = vsub.f32 %v3041, %v3057
      %v3074 = vsub.f32 %v3042, %v3058
      %v3075 = vsub.f32 %v3043, %v3059
      %v3076 = vsub.f32 %v3044, %v3060
      %v3077 = vsub.f32 %v3045, %v3061
      %v3078 = vsub.f32 %v3046, %v3062
      %v3079 = vsub.f32 %v3047, %v3063
      %v3080 = vsub.f32 %v3048, %v3064
      %v3081 = vsub.f32 %v3049, %v3065
      %v3082 = vsub.f32 %v3050, %v3066
      %v3083 = vsub.f32 %v3019, %v3067
      %v3084 = vsub.f32 %v3020, %v3068
      %v3085 = vsub.f32 %v3021, %v3069
      %v3086 = vsub.f32 %v3022, %v3070
      %v3087 = vsub.f32 %v3023, %v3071
      %v3088 = vsub.f32 %v3024, %v3072
      %v3089 = vsub.f32 %v3025, %v3073
      %v3090 = vsub.f32 %v3026, %v3074
      %v3091 = vsub.f32 %v3027, %v3075
      %v3092 = vsub.f32 %v3028, %v3076
      %v3093 = vsub.f32 %v3029, %v3077
      %v3094 = vsub.f32 %v3030, %v3078
      %v3095 = vsub.f32 %v3031, %v3079
      %v3096 = vsub.f32 %v3032, %v3080
      %v3097 = vsub.f32 %v3033, %v3081
      %v3098 = vsub.f32 %v3034, %v3082
      %v3099 = vmul.f32 %v3003, %v3003
      %v3100 = vmul.f32 %v3004, %v3004
      %v3101 = vmul.f32 %v3005, %v3005
      %v3102 = vmul.f32 %v3006, %v3006
      %v3103 = vmul.f32 %v3007, %v3007
      %v3104 = vmul.f32 %v3008, %v3008
      %v3105 = vmul.f32 %v3009, %v3009
      %v3106 = vmul.f32 %v3010, %v3010
      %v3107 = vmul.f32 %v3011, %v3011
      %v3108 = vmul.f32 %v3012, %v3012
      %v3109 = vmul.f32 %v3013, %v3013
      %v3110 = vmul.f32 %v3014, %v3014
      %v3111 = vmul.f32 %v3015, %v3015
      %v3112 = vmul.f32 %v3016, %v3016
      %v3113 = vmul.f32 %v3017, %v3017
      %v3114 = vmul.f32 %v3018, %v3018
      %v3115 = vmul.f32 %v3083, %v3083
      %v3116 = vmul.f32 %v3084, %v3084
      %v3117 = vmul.f32 %v3085, %v3085
      %v3118 = vmul.f32 %v3086, %v3086
      %v3119 = vmul.f32 %v3087, %v3087
      %v3120 = vmul.f32 %v3088, %v3088
      %v3121 = vmul.f32 %v3089, %v3089
      %v3122 = vmul.f32 %v3090, %v3090
      %v3123 = vmul.f32 %v3091, %v3091
      %v3124 = vmul.f32 %v3092, %v3092
      %v3125 = vmul.f32 %v3093, %v3093
      %v3126 = vmul.f32 %v3094, %v3094
      %v3127 = vmul.f32 %v3095, %v3095
      %v3128 = vmul.f32 %v3096, %v3096
      %v3129 = vmul.f32 %v3097, %v3097
      %v3130 = vmul.f32 %v3098, %v3098
      %v3131 = vadd.f32 %v3099, %v3115
      %v3132 = vadd.f32 %v3100, %v3116
      %v3133 = vadd.f32 %v3101, %v3117
      %v3134 = vadd.f32 %v3102, %v3118
      %v3135 = vadd.f32 %v3103, %v3119
      %v3136 = vadd.f32 %v3104, %v3120
      %v3137 = vadd.f32 %v3105, %v3121
      %v3138 = vadd.f32 %v3106, %v3122
      %v3139 = vadd.f32 %v3107, %v3123
      %v3140 = vadd.f32 %v3108, %v3124
      %v3141 = vadd.f32 %v3109, %v3125
      %v3142 = vadd.f32 %v3110, %v3126
      %v3143 = vadd.f32 %v3111, %v3127
      %v3144 = vadd.f32 %v3112, %v3128
      %v3145 = vadd.f32 %v3113, %v3129
      %v3146 = vadd.f32 %v3114, %v3130
      %v3147 = vadd.f32 %v3131, 1e-24
      %v3148 = vadd.f32 %v3132, 1e-24
      %v3149 = vadd.f32 %v3133, 1e-24
      %v3150 = vadd.f32 %v3134, 1e-24
      %v3151 = vadd.f32 %v3135, 1e-24
      %v3152 = vadd.f32 %v3136, 1e-24
      %v3153 = vadd.f32 %v3137, 1e-24
      %v3154 = vadd.f32 %v3138, 1e-24
      %v3155 = vadd.f32 %v3139, 1e-24
      %v3156 = vadd.f32 %v3140, 1e-24
      %v3157 = vadd.f32 %v3141, 1e-24
      %v3158 = vadd.f32 %v3142, 1e-24
      %v3159 = vadd.f32 %v3143, 1e-24
      %v3160 = vadd.f32 %v3144, 1e-24
      %v3161 = vadd.f32 %v3145, 1e-24
      %v3162 = vadd.f32 %v3146, 1e-24
      %v3163 = vrsqrt.pop %v3147
      %v3164 = vmul.f32 %v3163, %v3147
      %v3165 = vmul.f32 %v3164, %v3163
      %v3166 = vmul.f32 0.5, %v3165
      %v3167 = vsub.f32 1.5, %v3166
      %v3168 = vmul.f32 %v3163, %v3167
      %vm3169 = vweird.f32 %v3147
      %vm3170 = vweird.f32 %v3163
      %vm3171 = vmor %vm3169, %vm3170
      %v3172 = vsel %vm3171, %v3163, %v3168
      %v3173 = vrsqrt.pop %v3148
      %v3174 = vmul.f32 %v3173, %v3148
      %v3175 = vmul.f32 %v3174, %v3173
      %v3176 = vmul.f32 0.5, %v3175
      %v3177 = vsub.f32 1.5, %v3176
      %v3178 = vmul.f32 %v3173, %v3177
      %vm3179 = vweird.f32 %v3148
      %vm3180 = vweird.f32 %v3173
      %vm3181 = vmor %vm3179, %vm3180
      %v3182 = vsel %vm3181, %v3173, %v3178
      %v3183 = vrsqrt.pop %v3149
      %v3184 = vmul.f32 %v3183, %v3149
      %v3185 = vmul.f32 %v3184, %v3183
      %v3186 = vmul.f32 0.5, %v3185
      %v3187 = vsub.f32 1.5, %v3186
      %v3188 = vmul.f32 %v3183, %v3187
      %vm3189 = vweird.f32 %v3149
      %vm3190 = vweird.f32 %v3183
      %vm3191 = vmor %vm3189, %vm3190
      %v3192 = vsel %vm3191, %v3183, %v3188
      %v3193 = vrsqrt.pop %v3150
      %v3194 = vmul.f32 %v3193, %v3150
      %v3195 = vmul.f32 %v3194, %v3193
      %v3196 = vmul.f32 0.5, %v3195
      %v3197 = vsub.f32 1.5, %v3196
      %v3198 = vmul.f32 %v3193, %v3197
      %vm3199 = vweird.f32 %v3150
      %vm3200 = vweird.f32 %v3193
      %vm3201 = vmor %vm3199, %vm3200
      %v3202 = vsel %vm3201, %v3193, %v3198
      %v3203 = vrsqrt.pop %v3151
      %v3204 = vmul.f32 %v3203, %v3151
      %v3205 = vmul.f32 %v3204, %v3203
      %v3206 = vmul.f32 0.5, %v3205
      %v3207 = vsub.f32 1.5, %v3206
      %v3208 = vmul.f32 %v3203, %v3207
      %vm3209 = vweird.f32 %v3151
      %vm3210 = vweird.f32 %v3203
      %vm3211 = vmor %vm3209, %vm3210
      %v3212 = vsel %vm3211, %v3203, %v3208
      %v3213 = vrsqrt.pop %v3152
      %v3214 = vmul.f32 %v3213, %v3152
      %v3215 = vmul.f32 %v3214, %v3213
      %v3216 = vmul.f32 0.5, %v3215
      %v3217 = vsub.f32 1.5, %v3216
      %v3218 = vmul.f32 %v3213, %v3217
      %vm3219 = vweird.f32 %v3152
      %vm3220 = vweird.f32 %v3213
      %vm3221 = vmor %vm3219, %vm3220
      %v3222 = vsel %vm3221, %v3213, %v3218
      %v3223 = vrsqrt.pop %v3153
      %v3224 = vmul.f32 %v3223, %v3153
      %v3225 = vmul.f32 %v3224, %v3223
      %v3226 = vmul.f32 0.5, %v3225
      %v3227 = vsub.f32 1.5, %v3226
      %v3228 = vmul.f32 %v3223, %v3227
      %vm3229 = vweird.f32 %v3153
      %vm3230 = vweird.f32 %v3223
      %vm3231 = vmor %vm3229, %vm3230
      %v3232 = vsel %vm3231, %v3223, %v3228
      %v3233 = vrsqrt.pop %v3154
      %v3234 = vmul.f32 %v3233, %v3154
      %v3235 = vmul.f32 %v3234, %v3233
      %v3236 = vmul.f32 0.5, %v3235
      %v3237 = vsub.f32 1.5, %v3236
      %v3238 = vmul.f32 %v3233, %v3237
      %vm3239 = vweird.f32 %v3154
      %vm3240 = vweird.f32 %v3233
      %vm3241 = vmor %vm3239, %vm3240
      %v3242 = vsel %vm3241, %v3233, %v3238
      %v3243 = vrsqrt.pop %v3155
      %v3244 = vmul.f32 %v3243, %v3155
      %v3245 = vmul.f32 %v3244, %v3243
      %v3246 = vmul.f32 0.5, %v3245
      %v3247 = vsub.f32 1.5, %v3246
      %v3248 = vmul.f32 %v3243, %v3247
      %vm3249 = vweird.f32 %v3155
      %vm3250 = vweird.f32 %v3243
      %vm3251 = vmor %vm3249, %vm3250
      %v3252 = vsel %vm3251, %v3243, %v3248
      %v3253 = vrsqrt.pop %v3156
      %v3254 = vmul.f32 %v3253, %v3156
      %v3255 = vmul.f32 %v3254, %v3253
      %v3256 = vmul.f32 0.5, %v3255
      %v3257 = vsub.f32 1.5, %v3256
      %v3258 = vmul.f32 %v3253, %v3257
      %vm3259 = vweird.f32 %v3156
      %vm3260 = vweird.f32 %v3253
      %vm3261 = vmor %vm3259, %vm3260
      %v3262 = vsel %vm3261, %v3253, %v3258
      %v3263 = vrsqrt.pop %v3157
      %v3264 = vmul.f32 %v3263, %v3157
      %v3265 = vmul.f32 %v3264, %v3263
      %v3266 = vmul.f32 0.5, %v3265
      %v3267 = vsub.f32 1.5, %v3266
      %v3268 = vmul.f32 %v3263, %v3267
      %vm3269 = vweird.f32 %v3157
      %vm3270 = vweird.f32 %v3263
      %vm3271 = vmor %vm3269, %vm3270
      %v3272 = vsel %vm3271, %v3263, %v3268
      %v3273 = vrsqrt.pop %v3158
      %v3274 = vmul.f32 %v3273, %v3158
      %v3275 = vmul.f32 %v3274, %v3273
      %v3276 = vmul.f32 0.5, %v3275
      %v3277 = vsub.f32 1.5, %v3276
      %v3278 = vmul.f32 %v3273, %v3277
      %vm3279 = vweird.f32 %v3158
      %vm3280 = vweird.f32 %v3273
      %vm3281 = vmor %vm3279, %vm3280
      %v3282 = vsel %vm3281, %v3273, %v3278
      %v3283 = vrsqrt.pop %v3159
      %v3284 = vmul.f32 %v3283, %v3159
      %v3285 = vmul.f32 %v3284, %v3283
      %v3286 = vmul.f32 0.5, %v3285
      %v3287 = vsub.f32 1.5, %v3286
      %v3288 = vmul.f32 %v3283, %v3287
      %vm3289 = vweird.f32 %v3159
      %vm3290 = vweird.f32 %v3283
      %vm3291 = vmor %vm3289, %vm3290
      %v3292 = vsel %vm3291, %v3283, %v3288
      %v3293 = vrsqrt.pop %v3160
      %v3294 = vmul.f32 %v3293, %v3160
      %v3295 = vmul.f32 %v3294, %v3293
      %v3296 = vmul.f32 0.5, %v3295
      %v3297 = vsub.f32 1.5, %v3296
      %v3298 = vmul.f32 %v3293, %v3297
      %vm3299 = vweird.f32 %v3160
      %vm3300 = vweird.f32 %v3293
      %vm3301 = vmor %vm3299, %vm3300
      %v3302 = vsel %vm3301, %v3293, %v3298
      %v3303 = vrsqrt.pop %v3161
      %v3304 = vmul.f32 %v3303, %v3161
      %v3305 = vmul.f32 %v3304, %v3303
      %v3306 = vmul.f32 0.5, %v3305
      %v3307 = vsub.f32 1.5, %v3306
      %v3308 = vmul.f32 %v3303, %v3307
      %vm3309 = vweird.f32 %v3161
      %vm3310 = vweird.f32 %v3303
      %vm3311 = vmor %vm3309, %vm3310
      %v3312 = vsel %vm3311, %v3303, %v3308
      %v3313 = vrsqrt.pop %v3162
      %v3314 = vmul.f32 %v3313, %v3162
      %v3315 = vmul.f32 %v3314, %v3313
      %v3316 = vmul.f32 0.5, %v3315
      %v3317 = vsub.f32 1.5, %v3316
      %v3318 = vmul.f32 %v3313, %v3317
      %vm3319 = vweird.f32 %v3162
      %vm3320 = vweird.f32 %v3313
      %vm3321 = vmor %vm3319, %vm3320
      %v3322 = vsel %vm3321, %v3313, %v3318
      %v3323 = vmul.f32 %v3172, 0.005
      %v3324 = vmul.f32 %v3182, 0.005
      %v3325 = vmul.f32 %v3192, 0.005
      %v3326 = vmul.f32 %v3202, 0.005
      %v3327 = vmul.f32 %v3212, 0.005
      %v3328 = vmul.f32 %v3222, 0.005
      %v3329 = vmul.f32 %v3232, 0.005
      %v3330 = vmul.f32 %v3242, 0.005
      %v3331 = vmul.f32 %v3252, 0.005
      %v3332 = vmul.f32 %v3262, 0.005
      %v3333 = vmul.f32 %v3272, 0.005
      %v3334 = vmul.f32 %v3282, 0.005
      %v3335 = vmul.f32 %v3292, 0.005
      %v3336 = vmul.f32 %v3302, 0.005
      %v3337 = vmul.f32 %v3312, 0.005
      %v3338 = vmul.f32 %v3322, 0.005
      %v3339 = vsub.f32 1.0, %v3323
      %v3340 = vsub.f32 1.0, %v3324
      %v3341 = vsub.f32 1.0, %v3325
      %v3342 = vsub.f32 1.0, %v3326
      %v3343 = vsub.f32 1.0, %v3327
      %v3344 = vsub.f32 1.0, %v3328
      %v3345 = vsub.f32 1.0, %v3329
      %v3346 = vsub.f32 1.0, %v3330
      %v3347 = vsub.f32 1.0, %v3331
      %v3348 = vsub.f32 1.0, %v3332
      %v3349 = vsub.f32 1.0, %v3333
      %v3350 = vsub.f32 1.0, %v3334
      %v3351 = vsub.f32 1.0, %v3335
      %v3352 = vsub.f32 1.0, %v3336
      %v3353 = vsub.f32 1.0, %v3337
      %v3354 = vsub.f32 1.0, %v3338
      %v3355 = vmax.f32 %v3339, 0.0
      %v3356 = vmax.f32 %v3340, 0.0
      %v3357 = vmax.f32 %v3341, 0.0
      %v3358 = vmax.f32 %v3342, 0.0
      %v3359 = vmax.f32 %v3343, 0.0
      %v3360 = vmax.f32 %v3344, 0.0
      %v3361 = vmax.f32 %v3345, 0.0
      %v3362 = vmax.f32 %v3346, 0.0
      %v3363 = vmax.f32 %v3347, 0.0
      %v3364 = vmax.f32 %v3348, 0.0
      %v3365 = vmax.f32 %v3349, 0.0
      %v3366 = vmax.f32 %v3350, 0.0
      %v3367 = vmax.f32 %v3351, 0.0
      %v3368 = vmax.f32 %v3352, 0.0
      %v3369 = vmax.f32 %v3353, 0.0
      %v3370 = vmax.f32 %v3354, 0.0
      %v3371 = vmul.f32 %v3003, %v3355
      %v3372 = vmul.f32 %v3004, %v3356
      %v3373 = vmul.f32 %v3005, %v3357
      %v3374 = vmul.f32 %v3006, %v3358
      %v3375 = vmul.f32 %v3007, %v3359
      %v3376 = vmul.f32 %v3008, %v3360
      %v3377 = vmul.f32 %v3009, %v3361
      %v3378 = vmul.f32 %v3010, %v3362
      %v3379 = vmul.f32 %v3011, %v3363
      %v3380 = vmul.f32 %v3012, %v3364
      %v3381 = vmul.f32 %v3013, %v3365
      %v3382 = vmul.f32 %v3014, %v3366
      %v3383 = vmul.f32 %v3015, %v3367
      %v3384 = vmul.f32 %v3016, %v3368
      %v3385 = vmul.f32 %v3017, %v3369
      %v3386 = vmul.f32 %v3018, %v3370
      %3387 = vst [vmem:[#allocation22] sm:$0xff] %v3371
      %3388 = vst [vmem:[#allocation22 + $0x8] sm:$0xff] %v3372
      %3389 = vst [vmem:[#allocation22 + $0x10] sm:$0xff] %v3373
      %3390 = vst [vmem:[#allocation22 + $0x18] sm:$0xff] %v3374
      %3391 = vst [vmem:[#allocation22 + $0x20] sm:$0xff] %v3375
      %3392 = vst [vmem:[#allocation22 + $0x28] sm:$0xff] %v3376
      %3393 = vst [vmem:[#allocation22 + $0x30] sm:$0xff] %v3377
      %3394 = vst [vmem:[#allocation22 + $0x38] sm:$0xff] %v3378
      %3395 = vst [vmem:[#allocation22 + $0x40] sm:$0xff] %v3379
      %3396 = vst [vmem:[#allocation22 + $0x48] sm:$0xff] %v3380
      %3397 = vst [vmem:[#allocation22 + $0x50] sm:$0xff] %v3381
      %3398 = vst [vmem:[#allocation22 + $0x58] sm:$0xff] %v3382
      %3399 = vst [vmem:[#allocation22 + $0x60] sm:$0xff] %v3383
      %3400 = vst [vmem:[#allocation22 + $0x68] sm:$0xff] %v3384
      %3401 = vst [vmem:[#allocation22 + $0x70] sm:$0xff] %v3385
      %3402 = vst [vmem:[#allocation22 + $0x78] sm:$0xff] %v3386
      %v3403 = vmul.f32 %v3083, %v3355
      %v3404 = vmul.f32 %v3084, %v3356
      %v3405 = vmul.f32 %v3085, %v3357
      %v3406 = vmul.f32 %v3086, %v3358
      %v3407 = vmul.f32 %v3087, %v3359
      %v3408 = vmul.f32 %v3088, %v3360
      %v3409 = vmul.f32 %v3089, %v3361
      %v3410 = vmul.f32 %v3090, %v3362
      %v3411 = vmul.f32 %v3091, %v3363
      %v3412 = vmul.f32 %v3092, %v3364
      %v3413 = vmul.f32 %v3093, %v3365
      %v3414 = vmul.f32 %v3094, %v3366
      %v3415 = vmul.f32 %v3095, %v3367
      %v3416 = vmul.f32 %v3096, %v3368
      %v3417 = vmul.f32 %v3097, %v3369
      %v3418 = vmul.f32 %v3098, %v3370
      %3419 = vst [vmem:[#allocation23] sm:$0xff] %v3403
      %3420 = vst [vmem:[#allocation23 + $0x8] sm:$0xff] %v3404
      %3421 = vst [vmem:[#allocation23 + $0x10] sm:$0xff] %v3405
      %3422 = vst [vmem:[#allocation23 + $0x18] sm:$0xff] %v3406
      %3423 = vst [vmem:[#allocation23 + $0x20] sm:$0xff] %v3407
      %3424 = vst [vmem:[#allocation23 + $0x28] sm:$0xff] %v3408
      %3425 = vst [vmem:[#allocation23 + $0x30] sm:$0xff] %v3409
      %3426 = vst [vmem:[#allocation23 + $0x38] sm:$0xff] %v3410
      %3427 = vst [vmem:[#allocation23 + $0x40] sm:$0xff] %v3411
      %3428 = vst [vmem:[#allocation23 + $0x48] sm:$0xff] %v3412
      %3429 = vst [vmem:[#allocation23 + $0x50] sm:$0xff] %v3413
      %3430 = vst [vmem:[#allocation23 + $0x58] sm:$0xff] %v3414
      %3431 = vst [vmem:[#allocation23 + $0x60] sm:$0xff] %v3415
      %3432 = vst [vmem:[#allocation23 + $0x68] sm:$0xff] %v3416
      %3433 = vst [vmem:[#allocation23 + $0x70] sm:$0xff] %v3417
      %3434 = vst [vmem:[#allocation23 + $0x78] sm:$0xff] %v3418
    $region89: #{tpu_custom_call.1} parent=1 // loop_footer
      %s1393 = sadd.s32 1, %s1389
    $region90: #{tpu_custom_call.1} parent=1 // loop_footer_branch
      %1388 = sbr.rel target = $region86
    $region91: #{tpu_custom_call.1} parent=1 // loop_exit
      _
    // Predicated region
    $region99: #{tpu_custom_call.1} parent=1 // pred_check
      _
    $region100: #{tpu_custom_call.1} parent=1 // pred_check_branch
      %3436 = sbr.rel (0) target = $region102
    $region101: #{tpu_custom_call.1} parent=1 // pred_region
      %3438 = vsyncadd [#allocation9], 0
      %s3439 = sshll.u32 [#allocation19], 4
      %s3440 = int_to_ptr.vmem [resolvable:$true] %s3439
      %s3441 = sshll.u32 %s9, 4
      %s3442 = int_to_ptr.hbm [resolvable:$true] %s3441
      %3447 = dma.vmem_to_hbm [thread:$0]  %s3440, 2048, %s3442, [#allocation9], 128, 128, 8
    $region102: #{tpu_custom_call.1} parent=1 // pred_fallthru
      _
    // Predicated region
    $region103: #{tpu_custom_call.1} parent=1 // pred_check
      _
    $region104: #{tpu_custom_call.1} parent=1 // pred_check_branch
      %3449 = sbr.rel (0) target = $region106
    $region105: #{tpu_custom_call.1} parent=1 // pred_region
      %3451 = vsyncadd [#allocation21], 0
      %s3452 = sshll.u32 [#allocation20], 4
      %s3453 = int_to_ptr.vmem [resolvable:$true] %s3452
      %s3454 = sshll.u32 %s10, 4
      %s3455 = int_to_ptr.hbm [resolvable:$true] %s3454
      %3460 = dma.vmem_to_hbm [thread:$0]  %s3453, 2048, %s3455, [#allocation21], 128, 128, 8
    $region106: #{tpu_custom_call.1} parent=1 // pred_fallthru
      _
    // Predicated region
    $region107: #{tpu_custom_call.1} parent=1 // pred_check
      _
    $region108: #{tpu_custom_call.1} parent=1 // pred_check_branch
      %3462 = sbr.rel (0) target = $region110
    $region109: #{tpu_custom_call.1} parent=1 // pred_region
      %3464 = vsyncadd [#allocation21], 0
      %s3465 = sshll.u32 [#allocation22], 4
      %s3466 = int_to_ptr.vmem [resolvable:$true] %s3465
      %s3467 = sshll.u32 %s11, 4
      %s3468 = int_to_ptr.hbm [resolvable:$true] %s3467
      %3473 = dma.vmem_to_hbm [thread:$0]  %s3466, 2048, %s3468, [#allocation21], 128, 128, 8
    $region110: #{tpu_custom_call.1} parent=1 // pred_fallthru
      _
    // Predicated region
    $region111: #{tpu_custom_call.1} parent=1 // pred_check
      _
    $region112: #{tpu_custom_call.1} parent=1 // pred_check_branch
      %3475 = sbr.rel (0) target = $region114
    $region113: #{tpu_custom_call.1} parent=1 // pred_region
      %3477 = vsyncadd [#allocation24], 0
      %s3478 = sshll.u32 [#allocation23], 4
      %s3479 = int_to_ptr.vmem [resolvable:$true] %s3478
      %s3480 = sshll.u32 %s12, 4
      %s3481 = int_to_ptr.hbm [resolvable:$true] %s3480
      %3486 = dma.vmem_to_hbm [thread:$0]  %s3479, 2048, %s3481, [#allocation24], 128, 128, 8
    $region114: #{tpu_custom_call.1} parent=1 // pred_fallthru
      _
    // Predicated region
    $region115: #{tpu_custom_call.1} parent=1 // pred_check
      _
    $region116: #{tpu_custom_call.1} parent=1 // pred_check_branch
      %3488 = sbr.rel (0) target = $region118
    $region117: #{tpu_custom_call.1} parent=1 // pred_region
      %3490 = dma.done [#allocation9], 2048
    $region118: #{tpu_custom_call.1} parent=1 // pred_fallthru
      _
    // Predicated region
    $region119: #{tpu_custom_call.1} parent=1 // pred_check
      _
    $region120: #{tpu_custom_call.1} parent=1 // pred_check_branch
      %3492 = sbr.rel (0) target = $region122
    $region121: #{tpu_custom_call.1} parent=1 // pred_region
      %3494 = dma.done [#allocation21], 2048
    $region122: #{tpu_custom_call.1} parent=1 // pred_fallthru
      _
    // Predicated region
    $region123: #{tpu_custom_call.1} parent=1 // pred_check
      _
    $region124: #{tpu_custom_call.1} parent=1 // pred_check_branch
      %3496 = sbr.rel (0) target = $region126
    $region125: #{tpu_custom_call.1} parent=1 // pred_region
      %3498 = dma.done [#allocation21], 2048
    $region126: #{tpu_custom_call.1} parent=1 // pred_fallthru
      _
    // Predicated region
    $region127: #{tpu_custom_call.1} parent=1 // pred_check
      _
    $region128: #{tpu_custom_call.1} parent=1 // pred_check_branch
      %3500 = sbr.rel (0) target = $region130
    $region129: #{tpu_custom_call.1} parent=1 // pred_region
      %3502 = dma.done [#allocation24], 2048
    $region130: #{tpu_custom_call.1} parent=1 // pred_fallthru
      _
    %3503 = vsyncpa [#allocation8], 1
    %3504 = vsyncpa [#allocation11], 1
    %3505 = vsyncpa [#allocation14], 1
    %3506 = vsyncpa [#allocation17], 1
    %3507 = vsyncpa [#allocation9], 1
    %3508 = vsyncpa [#allocation21], 1
    %3509 = vsyncpa [#allocation24], 1
  %3510 = vsyncmov [#allocation4]
  %s3511 = vpop.sfrf %3510
  %p3512 = scmp.eq.s32.totalorder %s3511, 0
  %p3513 = pneg %p3512
  %3515 = shalt.err (%p3513)
  %s3516 = scalar_lea.sflag [#allocation4], 1
  %3517 = vsyncmov %s3516
  %s3518 = vpop.sfrf %3517
  %p3519 = scmp.eq.s32.totalorder %s3518, 0
  %p3520 = pneg %p3519
  %3522 = shalt.err (%p3520)
  %s3523 = scalar_lea.sflag [#allocation4], 2
  %3524 = vsyncmov %s3523
  %s3525 = vpop.sfrf %3524
  %p3526 = scmp.eq.s32.totalorder %s3525, 0
  %p3527 = pneg %p3526
  %3529 = shalt.err (%p3527)
  %s3530 = scalar_lea.sflag [#allocation4], 3
  %3531 = vsyncmov %s3530
  %s3532 = vpop.sfrf %3531
  %p3533 = scmp.eq.s32.totalorder %s3532, 0
  %p3534 = pneg %p3533
  %3536 = shalt.err (%p3534)

</llo_original>
